<compile_context>
chip_gen: v6e
topology: v6e:2x2x1
jax: 0.10.0
libtpu: 0.0.40
codegen_flags: <defaults>
</compile_context>

<pallas_src>
import functools
import math

import jax
import jax.numpy as jnp
from jax.experimental import pallas as pl
from jax.experimental.pallas import tpu as pltpu


def _layernorm(x, gamma, beta, eps=1e-5):
    # x: (R, E) f32; gamma/beta: (1, E) f32
    mean = jnp.mean(x, axis=-1, keepdims=True)
    var = jnp.mean(jnp.square(x - mean), axis=-1, keepdims=True)
    return (x - mean) * jax.lax.rsqrt(var + eps) * gamma + beta


def transformer_block_kernel(
    x_ref,                              # (R, E) token-row block (R = seqs_per_block * S)
    wq_ref, wk_ref, wv_ref,             # (E, E) each, pre-transposed (in, out)
    bq_ref, bk_ref, bv_ref,             # (1, E) f32
    wo_ref, bo_ref,                     # (E, E) pre-transposed, (1, E)
    ln1_g_ref, ln1_b_ref,               # (1, E), (1, E)
    w1_ref, b1_ref,                     # (E, H), (1, H)
    w2_ref, b2_ref,                     # (H, E), (1, E)
    ln2_g_ref, ln2_b_ref,               # (1, E), (1, E)
    o_ref,                              # (R, E)
    *,
    num_heads,
    seq_len,
    compute_dtype,
):
    R, E = x_ref.shape
    tb = R // seq_len                   # whole sequences in this row block
    hd = E // num_heads
    scale = 1.0 / math.sqrt(hd)
    use_approx = compute_dtype != jnp.float32

    # Matmul operand (bf16 by default); the f32 view of x is *not* kept live — it is
    # re-read from x_ref at the LayerNorm-1 residual to cut spill traffic.
    x_c = x_ref[...].astype(compute_dtype)

    # --- Q / K / V projections: (R, E) x (E, E), pre-transposed weights, f32 accumulation ---
    # Scale is folded into q (PyTorch scales the full in-projection, bias included).
    q = (jnp.dot(x_c, wq_ref[...], preferred_element_type=jnp.float32) + bq_ref[...]) * scale
    k = jnp.dot(x_c, wk_ref[...], preferred_element_type=jnp.float32) + bk_ref[...]
    v = jnp.dot(x_c, wv_ref[...], preferred_element_type=jnp.float32) + bv_ref[...]
    q = q.astype(compute_dtype).reshape(tb, seq_len, E)
    k = k.astype(compute_dtype).reshape(tb, seq_len, E)
    v = v.astype(compute_dtype).reshape(tb, seq_len, E)

    # --- Multi-head self-attention (attn_mask=None, dropout off) ---
    # Heads unrolled; each head's context is immediately pushed through its W_o row-slice
    # and accumulated, so no (R, E) context slab is ever stored to a VMEM scratch
    # (no masked sub-128-lane stores, no scratch readback).
    wo = wo_ref[...]                                                   # (E, E), loaded once
    attn_out = None
    for h in range(num_heads):
        sl = slice(h * hd, (h + 1) * hd)
        qh = q[:, :, sl]                                               # (tb, S, hd)
        kh = k[:, :, sl]
        vh = v[:, :, sl]
        s = jnp.einsum("bqd,bkd->bqk", qh, kh,
                       preferred_element_type=jnp.float32)            # (tb, S, S) f32
        s = s - jnp.max(s, axis=-1, keepdims=True)
        p = jnp.exp(s)
        p = p * pl.reciprocal(jnp.sum(p, axis=-1, keepdims=True), approx=use_approx)
        ctx_h = jnp.einsum("bqk,bkd->bqd", p.astype(compute_dtype), vh,
                           preferred_element_type=jnp.float32)        # (tb, S, hd) f32
        part = jnp.dot(ctx_h.reshape(R, hd).astype(compute_dtype), wo[sl, :],
                       preferred_element_type=jnp.float32)            # (R, E) f32
        attn_out = part if attn_out is None else attn_out + part
    attn_out = attn_out + bo_ref[...]

    # --- residual + LayerNorm 1 (f32); x re-read here to keep its f32 live range short ---
    h1 = _layernorm(x_ref[...].astype(jnp.float32) + attn_out, ln1_g_ref[...], ln1_b_ref[...])

    # --- FFN: Linear -> ReLU -> (Dropout: identity) -> Linear -> (Dropout: identity) ---
    ff = (
        jnp.dot(h1.astype(compute_dtype), w1_ref[...], preferred_element_type=jnp.float32)
        + b1_ref[...]
    )
    ff = jnp.maximum(ff, 0.0)
    ff = (
        jnp.dot(ff.astype(compute_dtype), w2_ref[...], preferred_element_type=jnp.float32)
        + b2_ref[...]
    )

    # --- residual + LayerNorm 2 (f32) ---
    out = _layernorm(h1 + ff, ln2_g_ref[...], ln2_b_ref[...])
    o_ref[...] = out.astype(o_ref.dtype)


def _nbytes(a):
    return int(math.prod(a.shape)) * jnp.dtype(a.dtype).itemsize


def transformer_block(x, params, num_heads, *, compute_dtype=jnp.bfloat16,
                      target_rows=256, out_dtype=None):
    """x: (B, S, E). params: dict of PyTorch-convention weights. Returns (B, S, E)."""
    B, S, E = x.shape
    assert E % num_heads == 0, "embed_dim must be divisible by num_attention_heads"
    H = params["ff_w1"].shape[0]
    cd = compute_dtype
    out_dtype = x.dtype if out_dtype is None else out_dtype

    # ---- wrapper-side weight prep: split packed QKV, pre-transpose, cast matmul weights ----
    w_in, b_in = params["w_in"], params["b_in"]
    wq = w_in[:E].T.astype(cd)                       # (E_in, E_out)
    wk = w_in[E:2 * E].T.astype(cd)
    wv = w_in[2 * E:].T.astype(cd)
    bq = b_in[:E].reshape(1, E).astype(jnp.float32)
    bk = b_in[E:2 * E].reshape(1, E).astype(jnp.float32)
    bv = b_in[2 * E:].reshape(1, E).astype(jnp.float32)
    wo = params["w_out"].T.astype(cd)                # (E, E)
    bo = params["b_out"].reshape(1, E).astype(jnp.float32)
    ln1_g = params["ln1_g"].reshape(1, E).astype(jnp.float32)
    ln1_b = params["ln1_b"].reshape(1, E).astype(jnp.float32)
    w1 = params["ff_w1"].T.astype(cd)                # (E, H)
    b1 = params["ff_b1"].reshape(1, H).astype(jnp.float32)
    w2 = params["ff_w2"].T.astype(cd)                # (H, E)
    b2 = params["ff_b2"].reshape(1, E).astype(jnp.float32)
    ln2_g = params["ln2_g"].reshape(1, E).astype(jnp.float32)
    ln2_b = params["ln2_b"].reshape(1, E).astype(jnp.float32)

    weight_args = [wq, wk, wv, bq, bk, bv, wo, bo,
                   ln1_g, ln1_b, w1, b1, w2, b2, ln2_g, ln2_b]

    # ---- row-block tiling: whole sequences per block, ~target_rows rows (multiple of 256
    #      fills the v6e/v7x 256x256 MXU; 128-multiples suffice on v5e), but always prefer
    #      >= 2 grid blocks when B >= 2 so v7x's second TensorCore is used. ----
    tokens = B * S
    max_seqs = max(1, target_rows // S) if S <= target_rows else 1
    cap = min(B, max_seqs)
    if B >= 2:
        cap = max(1, min(cap, B // 2))
    seqs_per_block = 1
    for cand in range(cap, 0, -1):
        if B % cand == 0:
            seqs_per_block = cand
            break
    block_rows = seqs_per_block * S
    if block_rows % 8 != 0 and block_rows != tokens:
        seqs_per_block, block_rows = B, tokens       # fall back to full-array block (always legal)
    num_blocks = B // seqs_per_block

    x2 = x.reshape(tokens, E)   # free wrapper-side reshape; last dim E is the lane dim

    # ---- explicit VMEM budget (weights + double-buffered I/O blocks + live intermediates) ----
    def vmem_limit(single_buffer):
        cdsz = jnp.dtype(cd).itemsize
        wbytes = sum(_nbytes(a) for a in weight_args) * (1 if single_buffer else 2)
        io = 2 * block_rows * E * (jnp.dtype(x.dtype).itemsize + jnp.dtype(out_dtype).itemsize)
        interm = (block_rows * E * (3 * cdsz + 3 * 4)       # q/k/v + attn_out/h1/ff-out f32 slabs
                  + block_rows * H * 4                      # FFN hidden f32
                  + 2 * seqs_per_block * S * S * 4)         # per-head score + prob matrices
        limit = wbytes + io + interm + (8 << 20)            # headroom for compiler spills
        limit = max(limit, 32 << 20)
        try:
            cap_bytes = int(pltpu.get_tpu_info().vmem_capacity_bytes)
        except Exception:
            cap_bytes = 64 << 20                             # safe across v5e/v6e/v7x
        return int(min(limit, cap_bytes))

    kernel = functools.partial(
        transformer_block_kernel,
        num_heads=num_heads,
        seq_len=S,
        compute_dtype=cd,
    )

    def make_call(single_buffer):
        def const_spec(a):
            zeros = (0,) * a.ndim
            idx = lambda i, _z=zeros: _z
            if single_buffer:
                # Constant index map -> the block never changes; single-buffer to halve
                # the VMEM these weights pin (critical on v7x's 64 MiB VMEM).
                return pl.BlockSpec(a.shape, idx, pipeline_mode=pl.Buffered(1))
            return pl.BlockSpec(a.shape, idx)

        in_specs = [pl.BlockSpec((block_rows, E), lambda i: (i, 0))]
        in_specs += [const_spec(a) for a in weight_args]
        out_spec = pl.BlockSpec((block_rows, E), lambda i: (i, 0))

        return pl.pallas_call(
            kernel,
            out_shape=jax.ShapeDtypeStruct((tokens, E), out_dtype),
            grid=(num_blocks,),
            in_specs=in_specs,
            out_specs=out_spec,
            compiler_params=pltpu.CompilerParams(
                dimension_semantics=("parallel",),
                vmem_limit_bytes=vmem_limit(single_buffer)),
        )

    try:
        out2 = make_call(True)(x2, *weight_args)
    except Exception:
        # TODO(synk): pipeline_mode=pl.Buffered(1) rejected by this jax version;
        #             falling back to default double-buffered constant weights.
        out2 = make_call(False)(x2, *weight_args)

    return out2.reshape(B, S, E)


def transformer_block_reference(x, p, num_heads):
    """Pure-JAX reference mirroring the PyTorch forward (eval-mode dropout, no mask)."""
    B, S, E = x.shape
    hd = E // num_heads
    qkv = x @ p["w_in"].T + p["b_in"]
    q, k, v = qkv[..., :E], qkv[..., E:2 * E], qkv[..., 2 * E:]

    def split_heads(t):  # (B, S, E) -> (B, nH, S, hd)
        return t.reshape(B, S, num_heads, hd).transpose(0, 2, 1, 3)

    qh, kh, vh = split_heads(q), split_heads(k), split_heads(v)
    s = jnp.einsum("bhqd,bhkd->bhqk", qh, kh) / math.sqrt(hd)
    pattn = jax.nn.softmax(s, axis=-1)
    o = jnp.einsum("bhqk,bhkd->bhqd", pattn, vh).transpose(0, 2, 1, 3).reshape(B, S, E)
    attn_out = o @ p["w_out"].T + p["b_out"]

    def ln(t, g, b, eps=1e-5):
        m = jnp.mean(t, axis=-1, keepdims=True)
        var = jnp.mean((t - m) ** 2, axis=-1, keepdims=True)
        return (t - m) * jax.lax.rsqrt(var + eps) * g + b

    h1 = ln(x + attn_out, p["ln1_g"], p["ln1_b"])
    ff = jnp.maximum(h1 @ p["ff_w1"].T + p["ff_b1"], 0.0) @ p["ff_w2"].T + p["ff_b2"]
    return ln(h1 + ff, p["ln2_g"], p["ln2_b"])


if __name__ == "__main__":
    B, S, E = 2, 8, 32
    NUM_HEADS = 4
    FF_HIDDEN = 4 * E  # ff_hidden_dim default
    # TODO(synk): dropout_rate=0.1 is a no-op here (inference semantics); training-mode dropout not modeled.

    key = jax.random.PRNGKey(0)
    ks = jax.random.split(key, 10)

    def init(k, shape, scale=0.1):
        return (scale * jax.random.normal(k, shape)).astype(jnp.float32)

    params = {
        "w_in": init(ks[0], (3 * E, E)),
        "b_in": init(ks[1], (3 * E,)),
        "w_out": init(ks[2], (E, E)),
        "b_out": init(ks[3], (E,)),
        "ln1_g": jnp.ones((E,), jnp.float32),
        "ln1_b": jnp.zeros((E,), jnp.float32),
        "ff_w1": init(ks[4], (FF_HIDDEN, E)),
        "ff_b1": init(ks[5], (FF_HIDDEN,)),
        "ff_w2": init(ks[6], (E, FF_HIDDEN)),
        "ff_b2": init(ks[7], (E,)),
        "ln2_g": jnp.ones((E,), jnp.float32),
        "ln2_b": jnp.zeros((E,), jnp.float32),
    }
    x = jax.random.normal(ks[8], (B, S, E), jnp.float32)

    ref = transformer_block_reference(x, params, NUM_HEADS)

    # Exact-precision path (f32 matmul operands): tight check against the reference.
    out_f32 = jax.block_until_ready(
        transformer_block(x, params, NUM_HEADS, compute_dtype=jnp.float32))
    assert out_f32.shape == (B, S, E)
    assert jnp.allclose(out_f32, ref, atol=1e-4, rtol=1e-4), (
        f"f32 path max abs err {jnp.max(jnp.abs(out_f32 - ref))}"
    )

    # Default throughput path (bf16 matmul operands, f32 accumulation): looser tolerance.
    # Note: pl.reciprocal(approx=True) gives a tiny systematic softmax-normalization bias.
    out_bf16 = jax.block_until_ready(transformer_block(x, params, NUM_HEADS))
    assert out_bf16.shape == (B, S, E)
    assert jnp.allclose(out_bf16, ref, atol=3e-2, rtol=3e-2), (
        f"bf16 path max abs err {jnp.max(jnp.abs(out_bf16 - ref))}"
    )

    print("KERNEL_OK")
</pallas_src>

<mosaic_0001>
module attributes {stable_mosaic.version = 11 : i64} {
  func.func @transformer_block_kernel(%arg0: i32, %arg1: memref<8x32xf32, #tpu.memory_space<vmem>>, %arg2: memref<32x32xf32, #tpu.memory_space<vmem>>, %arg3: memref<32x32xf32, #tpu.memory_space<vmem>>, %arg4: memref<32x32xf32, #tpu.memory_space<vmem>>, %arg5: memref<1x32xf32, #tpu.memory_space<vmem>>, %arg6: memref<1x32xf32, #tpu.memory_space<vmem>>, %arg7: memref<1x32xf32, #tpu.memory_space<vmem>>, %arg8: memref<32x32xf32, #tpu.memory_space<vmem>>, %arg9: memref<1x32xf32, #tpu.memory_space<vmem>>, %arg10: memref<1x32xf32, #tpu.memory_space<vmem>>, %arg11: memref<1x32xf32, #tpu.memory_space<vmem>>, %arg12: memref<32x128xf32, #tpu.memory_space<vmem>>, %arg13: memref<1x128xf32, #tpu.memory_space<vmem>>, %arg14: memref<128x32xf32, #tpu.memory_space<vmem>>, %arg15: memref<1x32xf32, #tpu.memory_space<vmem>>, %arg16: memref<1x32xf32, #tpu.memory_space<vmem>>, %arg17: memref<1x32xf32, #tpu.memory_space<vmem>>, %arg18: memref<8x32xf32, #tpu.memory_space<vmem>>) attributes {dimension_semantics = [#tpu.dimension_semantics<parallel>], iteration_bounds = array<i64: 2>, scalar_prefetch = 0 : i64, scratch_operands = 0 : i64, tpu.core_type = #tpu.core_type<tc>, window_params = [{transform_indices = @transform_0, window_bounds = array<i64: 8, 32>}, {pipeline_mode = #tpu.pipeline_mode<synchronous>, transform_indices = @transform_1, window_bounds = array<i64: 32, 32>}, {pipeline_mode = #tpu.pipeline_mode<synchronous>, transform_indices = @transform_2, window_bounds = array<i64: 32, 32>}, {pipeline_mode = #tpu.pipeline_mode<synchronous>, transform_indices = @transform_3, window_bounds = array<i64: 32, 32>}, {pipeline_mode = #tpu.pipeline_mode<synchronous>, transform_indices = @transform_4, window_bounds = array<i64: 1, 32>}, {pipeline_mode = #tpu.pipeline_mode<synchronous>, transform_indices = @transform_5, window_bounds = array<i64: 1, 32>}, {pipeline_mode = #tpu.pipeline_mode<synchronous>, transform_indices = @transform_6, window_bounds = array<i64: 1, 32>}, {pipeline_mode = #tpu.pipeline_mode<synchronous>, transform_indices = @transform_7, window_bounds = array<i64: 32, 32>}, {pipeline_mode = #tpu.pipeline_mode<synchronous>, transform_indices = @transform_8, window_bounds = array<i64: 1, 32>}, {pipeline_mode = #tpu.pipeline_mode<synchronous>, transform_indices = @transform_9, window_bounds = array<i64: 1, 32>}, {pipeline_mode = #tpu.pipeline_mode<synchronous>, transform_indices = @transform_10, window_bounds = array<i64: 1, 32>}, {pipeline_mode = #tpu.pipeline_mode<synchronous>, transform_indices = @transform_11, window_bounds = array<i64: 32, 128>}, {pipeline_mode = #tpu.pipeline_mode<synchronous>, transform_indices = @transform_12, window_bounds = array<i64: 1, 128>}, {pipeline_mode = #tpu.pipeline_mode<synchronous>, transform_indices = @transform_13, window_bounds = array<i64: 128, 32>}, {pipeline_mode = #tpu.pipeline_mode<synchronous>, transform_indices = @transform_14, window_bounds = array<i64: 1, 32>}, {pipeline_mode = #tpu.pipeline_mode<synchronous>, transform_indices = @transform_15, window_bounds = array<i64: 1, 32>}, {pipeline_mode = #tpu.pipeline_mode<synchronous>, transform_indices = @transform_16, window_bounds = array<i64: 1, 32>}, {transform_indices = @transform_17, window_bounds = array<i64: 8, 32>}]} {
    %c0 = arith.constant 0 : index
    %c0_0 = arith.constant 0 : index
    %0 = vector.load %arg1[%c0, %c0_0] : memref<8x32xf32, #tpu.memory_space<vmem>>, vector<8x32xf32>
    %c0_1 = arith.constant 0 : index
    %c0_2 = arith.constant 0 : index
    %1 = vector.load %arg2[%c0_1, %c0_2] : memref<32x32xf32, #tpu.memory_space<vmem>>, vector<32x32xf32>
    %cst = arith.constant dense<0.000000e+00> : vector<8x32xf32>
    %2 = tpu.matmul %0, %1, %cst {dimension_numbers = #tpu.dot_dimension_numbers<[1], [0], [0], [1], [0, 0, 1, 1], [], []>} : vector<8x32xf32>, vector<32x32xf32>, vector<8x32xf32> -> vector<8x32xf32>
    %c0_3 = arith.constant 0 : index
    %c0_4 = arith.constant 0 : index
    %3 = vector.load %arg5[%c0_3, %c0_4] : memref<1x32xf32, #tpu.memory_space<vmem>>, vector<1x32xf32>
    %4 = vector.broadcast %3 : vector<1x32xf32> to vector<8x32xf32>
    %5 = arith.addf %2, %4 : vector<8x32xf32>
    %cst_5 = arith.constant 0.353553385 : f32
    %6 = vector.broadcast %cst_5 : f32 to vector<8x32xf32>
    %7 = arith.mulf %5, %6 : vector<8x32xf32>
    %c0_6 = arith.constant 0 : index
    %c0_7 = arith.constant 0 : index
    %8 = vector.load %arg3[%c0_6, %c0_7] : memref<32x32xf32, #tpu.memory_space<vmem>>, vector<32x32xf32>
    %cst_8 = arith.constant dense<0.000000e+00> : vector<8x32xf32>
    %9 = tpu.matmul %0, %8, %cst_8 {dimension_numbers = #tpu.dot_dimension_numbers<[1], [0], [0], [1], [0, 0, 1, 1], [], []>} : vector<8x32xf32>, vector<32x32xf32>, vector<8x32xf32> -> vector<8x32xf32>
    %c0_9 = arith.constant 0 : index
    %c0_10 = arith.constant 0 : index
    %10 = vector.load %arg6[%c0_9, %c0_10] : memref<1x32xf32, #tpu.memory_space<vmem>>, vector<1x32xf32>
    %11 = vector.broadcast %10 : vector<1x32xf32> to vector<8x32xf32>
    %12 = arith.addf %9, %11 : vector<8x32xf32>
    %c0_11 = arith.constant 0 : index
    %c0_12 = arith.constant 0 : index
    %13 = vector.load %arg4[%c0_11, %c0_12] : memref<32x32xf32, #tpu.memory_space<vmem>>, vector<32x32xf32>
    %cst_13 = arith.constant dense<0.000000e+00> : vector<8x32xf32>
    %14 = tpu.matmul %0, %13, %cst_13 {dimension_numbers = #tpu.dot_dimension_numbers<[1], [0], [0], [1], [0, 0, 1, 1], [], []>} : vector<8x32xf32>, vector<32x32xf32>, vector<8x32xf32> -> vector<8x32xf32>
    %c0_14 = arith.constant 0 : index
    %c0_15 = arith.constant 0 : index
    %15 = vector.load %arg7[%c0_14, %c0_15] : memref<1x32xf32, #tpu.memory_space<vmem>>, vector<1x32xf32>
    %16 = vector.broadcast %15 : vector<1x32xf32> to vector<8x32xf32>
    %17 = arith.addf %14, %16 : vector<8x32xf32>
    %18 = vector.shape_cast %7 : vector<8x32xf32> to vector<1x8x32xf32>
    %19 = vector.shape_cast %12 : vector<8x32xf32> to vector<1x8x32xf32>
    %20 = vector.shape_cast %17 : vector<8x32xf32> to vector<1x8x32xf32>
    %c0_16 = arith.constant 0 : index
    %c0_17 = arith.constant 0 : index
    %21 = vector.load %arg8[%c0_16, %c0_17] : memref<32x32xf32, #tpu.memory_space<vmem>>, vector<32x32xf32>
    %22 = vector.extract_strided_slice %18 {offsets = [0, 0, 0], sizes = [1, 8, 8], strides = [1, 1, 1]} : vector<1x8x32xf32> to vector<1x8x8xf32>
    %23 = vector.extract_strided_slice %19 {offsets = [0, 0, 0], sizes = [1, 8, 8], strides = [1, 1, 1]} : vector<1x8x32xf32> to vector<1x8x8xf32>
    %24 = vector.extract_strided_slice %20 {offsets = [0, 0, 0], sizes = [1, 8, 8], strides = [1, 1, 1]} : vector<1x8x32xf32> to vector<1x8x8xf32>
    "tpu.trace_start"() <{level = 10 : i32, message = "bqd,bkd->bqk"}> : () -> ()
    %cst_18 = arith.constant dense<0.000000e+00> : vector<1x8x8xf32>
    %25 = tpu.matmul %22, %23, %cst_18 {dimension_numbers = #tpu.dot_dimension_numbers<[2], [2], [1], [1], [0, 0, 0, 1, 1, 1], [0], [0]>} : vector<1x8x8xf32>, vector<1x8x8xf32>, vector<1x8x8xf32> -> vector<1x8x8xf32>
    "tpu.trace_stop"() : () -> ()
    %cst_19 = arith.constant dense<0xFF800000> : vector<1x8xf32>
    %26 = vector.multi_reduction <maximumf>, %25, %cst_19 [2] : vector<1x8x8xf32> to vector<1x8xf32>
    %27 = vector.shape_cast %26 : vector<1x8xf32> to vector<1x8x1xf32>
    %28 = vector.broadcast %27 : vector<1x8x1xf32> to vector<1x8x8xf32>
    %29 = arith.subf %25, %28 : vector<1x8x8xf32>
    %30 = math.exp %29 : vector<1x8x8xf32>
    %cst_20 = arith.constant dense<0.000000e+00> : vector<1x8xf32>
    %31 = vector.multi_reduction <add>, %30, %cst_20 [2] : vector<1x8x8xf32> to vector<1x8xf32>
    %32 = vector.shape_cast %31 : vector<1x8xf32> to vector<1x8x1xf32>
    %33 = tpu.reciprocal %32 : vector<1x8x1xf32> -> vector<1x8x1xf32>
    %34 = vector.broadcast %33 : vector<1x8x1xf32> to vector<1x8x8xf32>
    %35 = arith.mulf %30, %34 : vector<1x8x8xf32>
    "tpu.trace_start"() <{level = 10 : i32, message = "bqk,bkd->bqd"}> : () -> ()
    %cst_21 = arith.constant dense<0.000000e+00> : vector<1x8x8xf32>
    %36 = tpu.matmul %35, %24, %cst_21 {dimension_numbers = #tpu.dot_dimension_numbers<[2], [1], [1], [2], [0, 0, 0, 1, 1, 2], [0], [0]>} : vector<1x8x8xf32>, vector<1x8x8xf32>, vector<1x8x8xf32> -> vector<1x8x8xf32>
    "tpu.trace_stop"() : () -> ()
    %37 = vector.shape_cast %36 : vector<1x8x8xf32> to vector<8x8xf32>
    %38 = vector.extract_strided_slice %21 {offsets = [0, 0], sizes = [8, 32], strides = [1, 1]} : vector<32x32xf32> to vector<8x32xf32>
    %cst_22 = arith.constant dense<0.000000e+00> : vector<8x32xf32>
    %39 = tpu.matmul %37, %38, %cst_22 {dimension_numbers = #tpu.dot_dimension_numbers<[1], [0], [0], [1], [0, 0, 1, 1], [], []>} : vector<8x8xf32>, vector<8x32xf32>, vector<8x32xf32> -> vector<8x32xf32>
    %40 = vector.extract_strided_slice %18 {offsets = [0, 0, 8], sizes = [1, 8, 8], strides = [1, 1, 1]} : vector<1x8x32xf32> to vector<1x8x8xf32>
    %41 = vector.extract_strided_slice %19 {offsets = [0, 0, 8], sizes = [1, 8, 8], strides = [1, 1, 1]} : vector<1x8x32xf32> to vector<1x8x8xf32>
    %42 = vector.extract_strided_slice %20 {offsets = [0, 0, 8], sizes = [1, 8, 8], strides = [1, 1, 1]} : vector<1x8x32xf32> to vector<1x8x8xf32>
    "tpu.trace_start"() <{level = 10 : i32, message = "bqd,bkd->bqk"}> : () -> ()
    %cst_23 = arith.constant dense<0.000000e+00> : vector<1x8x8xf32>
    %43 = tpu.matmul %40, %41, %cst_23 {dimension_numbers = #tpu.dot_dimension_numbers<[2], [2], [1], [1], [0, 0, 0, 1, 1, 1], [0], [0]>} : vector<1x8x8xf32>, vector<1x8x8xf32>, vector<1x8x8xf32> -> vector<1x8x8xf32>
    "tpu.trace_stop"() : () -> ()
    %cst_24 = arith.constant dense<0xFF800000> : vector<1x8xf32>
    %44 = vector.multi_reduction <maximumf>, %43, %cst_24 [2] : vector<1x8x8xf32> to vector<1x8xf32>
    %45 = vector.shape_cast %44 : vector<1x8xf32> to vector<1x8x1xf32>
    %46 = vector.broadcast %45 : vector<1x8x1xf32> to vector<1x8x8xf32>
    %47 = arith.subf %43, %46 : vector<1x8x8xf32>
    %48 = math.exp %47 : vector<1x8x8xf32>
    %cst_25 = arith.constant dense<0.000000e+00> : vector<1x8xf32>
    %49 = vector.multi_reduction <add>, %48, %cst_25 [2] : vector<1x8x8xf32> to vector<1x8xf32>
    %50 = vector.shape_cast %49 : vector<1x8xf32> to vector<1x8x1xf32>
    %51 = tpu.reciprocal %50 : vector<1x8x1xf32> -> vector<1x8x1xf32>
    %52 = vector.broadcast %51 : vector<1x8x1xf32> to vector<1x8x8xf32>
    %53 = arith.mulf %48, %52 : vector<1x8x8xf32>
    "tpu.trace_start"() <{level = 10 : i32, message = "bqk,bkd->bqd"}> : () -> ()
    %cst_26 = arith.constant dense<0.000000e+00> : vector<1x8x8xf32>
    %54 = tpu.matmul %53, %42, %cst_26 {dimension_numbers = #tpu.dot_dimension_numbers<[2], [1], [1], [2], [0, 0, 0, 1, 1, 2], [0], [0]>} : vector<1x8x8xf32>, vector<1x8x8xf32>, vector<1x8x8xf32> -> vector<1x8x8xf32>
    "tpu.trace_stop"() : () -> ()
    %55 = vector.shape_cast %54 : vector<1x8x8xf32> to vector<8x8xf32>
    %56 = vector.extract_strided_slice %21 {offsets = [8, 0], sizes = [8, 32], strides = [1, 1]} : vector<32x32xf32> to vector<8x32xf32>
    %cst_27 = arith.constant dense<0.000000e+00> : vector<8x32xf32>
    %57 = tpu.matmul %55, %56, %cst_27 {dimension_numbers = #tpu.dot_dimension_numbers<[1], [0], [0], [1], [0, 0, 1, 1], [], []>} : vector<8x8xf32>, vector<8x32xf32>, vector<8x32xf32> -> vector<8x32xf32>
    %58 = arith.addf %39, %57 : vector<8x32xf32>
    %59 = vector.extract_strided_slice %18 {offsets = [0, 0, 16], sizes = [1, 8, 8], strides = [1, 1, 1]} : vector<1x8x32xf32> to vector<1x8x8xf32>
    %60 = vector.extract_strided_slice %19 {offsets = [0, 0, 16], sizes = [1, 8, 8], strides = [1, 1, 1]} : vector<1x8x32xf32> to vector<1x8x8xf32>
    %61 = vector.extract_strided_slice %20 {offsets = [0, 0, 16], sizes = [1, 8, 8], strides = [1, 1, 1]} : vector<1x8x32xf32> to vector<1x8x8xf32>
    "tpu.trace_start"() <{level = 10 : i32, message = "bqd,bkd->bqk"}> : () -> ()
    %cst_28 = arith.constant dense<0.000000e+00> : vector<1x8x8xf32>
    %62 = tpu.matmul %59, %60, %cst_28 {dimension_numbers = #tpu.dot_dimension_numbers<[2], [2], [1], [1], [0, 0, 0, 1, 1, 1], [0], [0]>} : vector<1x8x8xf32>, vector<1x8x8xf32>, vector<1x8x8xf32> -> vector<1x8x8xf32>
    "tpu.trace_stop"() : () -> ()
    %cst_29 = arith.constant dense<0xFF800000> : vector<1x8xf32>
    %63 = vector.multi_reduction <maximumf>, %62, %cst_29 [2] : vector<1x8x8xf32> to vector<1x8xf32>
    %64 = vector.shape_cast %63 : vector<1x8xf32> to vector<1x8x1xf32>
    %65 = vector.broadcast %64 : vector<1x8x1xf32> to vector<1x8x8xf32>
    %66 = arith.subf %62, %65 : vector<1x8x8xf32>
    %67 = math.exp %66 : vector<1x8x8xf32>
    %cst_30 = arith.constant dense<0.000000e+00> : vector<1x8xf32>
    %68 = vector.multi_reduction <add>, %67, %cst_30 [2] : vector<1x8x8xf32> to vector<1x8xf32>
    %69 = vector.shape_cast %68 : vector<1x8xf32> to vector<1x8x1xf32>
    %70 = tpu.reciprocal %69 : vector<1x8x1xf32> -> vector<1x8x1xf32>
    %71 = vector.broadcast %70 : vector<1x8x1xf32> to vector<1x8x8xf32>
    %72 = arith.mulf %67, %71 : vector<1x8x8xf32>
    "tpu.trace_start"() <{level = 10 : i32, message = "bqk,bkd->bqd"}> : () -> ()
    %cst_31 = arith.constant dense<0.000000e+00> : vector<1x8x8xf32>
    %73 = tpu.matmul %72, %61, %cst_31 {dimension_numbers = #tpu.dot_dimension_numbers<[2], [1], [1], [2], [0, 0, 0, 1, 1, 2], [0], [0]>} : vector<1x8x8xf32>, vector<1x8x8xf32>, vector<1x8x8xf32> -> vector<1x8x8xf32>
    "tpu.trace_stop"() : () -> ()
    %74 = vector.shape_cast %73 : vector<1x8x8xf32> to vector<8x8xf32>
    %75 = vector.extract_strided_slice %21 {offsets = [16, 0], sizes = [8, 32], strides = [1, 1]} : vector<32x32xf32> to vector<8x32xf32>
    %cst_32 = arith.constant dense<0.000000e+00> : vector<8x32xf32>
    %76 = tpu.matmul %74, %75, %cst_32 {dimension_numbers = #tpu.dot_dimension_numbers<[1], [0], [0], [1], [0, 0, 1, 1], [], []>} : vector<8x8xf32>, vector<8x32xf32>, vector<8x32xf32> -> vector<8x32xf32>
    %77 = arith.addf %58, %76 : vector<8x32xf32>
    %78 = vector.extract_strided_slice %18 {offsets = [0, 0, 24], sizes = [1, 8, 8], strides = [1, 1, 1]} : vector<1x8x32xf32> to vector<1x8x8xf32>
    %79 = vector.extract_strided_slice %19 {offsets = [0, 0, 24], sizes = [1, 8, 8], strides = [1, 1, 1]} : vector<1x8x32xf32> to vector<1x8x8xf32>
    %80 = vector.extract_strided_slice %20 {offsets = [0, 0, 24], sizes = [1, 8, 8], strides = [1, 1, 1]} : vector<1x8x32xf32> to vector<1x8x8xf32>
    "tpu.trace_start"() <{level = 10 : i32, message = "bqd,bkd->bqk"}> : () -> ()
    %cst_33 = arith.constant dense<0.000000e+00> : vector<1x8x8xf32>
    %81 = tpu.matmul %78, %79, %cst_33 {dimension_numbers = #tpu.dot_dimension_numbers<[2], [2], [1], [1], [0, 0, 0, 1, 1, 1], [0], [0]>} : vector<1x8x8xf32>, vector<1x8x8xf32>, vector<1x8x8xf32> -> vector<1x8x8xf32>
    "tpu.trace_stop"() : () -> ()
    %cst_34 = arith.constant dense<0xFF800000> : vector<1x8xf32>
    %82 = vector.multi_reduction <maximumf>, %81, %cst_34 [2] : vector<1x8x8xf32> to vector<1x8xf32>
    %83 = vector.shape_cast %82 : vector<1x8xf32> to vector<1x8x1xf32>
    %84 = vector.broadcast %83 : vector<1x8x1xf32> to vector<1x8x8xf32>
    %85 = arith.subf %81, %84 : vector<1x8x8xf32>
    %86 = math.exp %85 : vector<1x8x8xf32>
    %cst_35 = arith.constant dense<0.000000e+00> : vector<1x8xf32>
    %87 = vector.multi_reduction <add>, %86, %cst_35 [2] : vector<1x8x8xf32> to vector<1x8xf32>
    %88 = vector.shape_cast %87 : vector<1x8xf32> to vector<1x8x1xf32>
    %89 = tpu.reciprocal %88 : vector<1x8x1xf32> -> vector<1x8x1xf32>
    %90 = vector.broadcast %89 : vector<1x8x1xf32> to vector<1x8x8xf32>
    %91 = arith.mulf %86, %90 : vector<1x8x8xf32>
    "tpu.trace_start"() <{level = 10 : i32, message = "bqk,bkd->bqd"}> : () -> ()
    %cst_36 = arith.constant dense<0.000000e+00> : vector<1x8x8xf32>
    %92 = tpu.matmul %91, %80, %cst_36 {dimension_numbers = #tpu.dot_dimension_numbers<[2], [1], [1], [2], [0, 0, 0, 1, 1, 2], [0], [0]>} : vector<1x8x8xf32>, vector<1x8x8xf32>, vector<1x8x8xf32> -> vector<1x8x8xf32>
    "tpu.trace_stop"() : () -> ()
    %93 = vector.shape_cast %92 : vector<1x8x8xf32> to vector<8x8xf32>
    %94 = vector.extract_strided_slice %21 {offsets = [24, 0], sizes = [8, 32], strides = [1, 1]} : vector<32x32xf32> to vector<8x32xf32>
    %cst_37 = arith.constant dense<0.000000e+00> : vector<8x32xf32>
    %95 = tpu.matmul %93, %94, %cst_37 {dimension_numbers = #tpu.dot_dimension_numbers<[1], [0], [0], [1], [0, 0, 1, 1], [], []>} : vector<8x8xf32>, vector<8x32xf32>, vector<8x32xf32> -> vector<8x32xf32>
    %96 = arith.addf %77, %95 : vector<8x32xf32>
    %c0_38 = arith.constant 0 : index
    %c0_39 = arith.constant 0 : index
    %97 = vector.load %arg9[%c0_38, %c0_39] : memref<1x32xf32, #tpu.memory_space<vmem>>, vector<1x32xf32>
    %98 = vector.broadcast %97 : vector<1x32xf32> to vector<8x32xf32>
    %99 = arith.addf %96, %98 : vector<8x32xf32>
    %c0_40 = arith.constant 0 : index
    %c0_41 = arith.constant 0 : index
    %100 = vector.load %arg1[%c0_40, %c0_41] : memref<8x32xf32, #tpu.memory_space<vmem>>, vector<8x32xf32>
    %101 = arith.addf %100, %99 : vector<8x32xf32>
    %c0_42 = arith.constant 0 : index
    %c0_43 = arith.constant 0 : index
    %102 = vector.load %arg10[%c0_42, %c0_43] : memref<1x32xf32, #tpu.memory_space<vmem>>, vector<1x32xf32>
    %c0_44 = arith.constant 0 : index
    %c0_45 = arith.constant 0 : index
    %103 = vector.load %arg11[%c0_44, %c0_45] : memref<1x32xf32, #tpu.memory_space<vmem>>, vector<1x32xf32>
    %cst_46 = arith.constant dense<0.000000e+00> : vector<8xf32>
    %104 = vector.multi_reduction <add>, %101, %cst_46 [1] : vector<8x32xf32> to vector<8xf32>
    %105 = vector.shape_cast %104 : vector<8xf32> to vector<8x1xf32>
    %cst_47 = arith.constant 3.200000e+01 : f32
    %106 = vector.broadcast %cst_47 : f32 to vector<8x1xf32>
    %107 = arith.divf %105, %106 : vector<8x1xf32>
    %108 = vector.broadcast %107 : vector<8x1xf32> to vector<8x32xf32>
    %109 = arith.subf %101, %108 : vector<8x32xf32>
    %110 = arith.mulf %109, %109 : vector<8x32xf32>
    %cst_48 = arith.constant dense<0.000000e+00> : vector<8xf32>
    %111 = vector.multi_reduction <add>, %110, %cst_48 [1] : vector<8x32xf32> to vector<8xf32>
    %112 = vector.shape_cast %111 : vector<8xf32> to vector<8x1xf32>
    %cst_49 = arith.constant 3.200000e+01 : f32
    %113 = vector.broadcast %cst_49 : f32 to vector<8x1xf32>
    %114 = arith.divf %112, %113 : vector<8x1xf32>
    %115 = vector.broadcast %107 : vector<8x1xf32> to vector<8x32xf32>
    %116 = arith.subf %101, %115 : vector<8x32xf32>
    %cst_50 = arith.constant 9.99999974E-6 : f32
    %117 = vector.broadcast %cst_50 : f32 to vector<8x1xf32>
    %118 = arith.addf %114, %117 : vector<8x1xf32>
    %119 = math.rsqrt %118 : vector<8x1xf32>
    %120 = vector.broadcast %119 : vector<8x1xf32> to vector<8x32xf32>
    %121 = arith.mulf %116, %120 : vector<8x32xf32>
    %122 = vector.broadcast %102 : vector<1x32xf32> to vector<8x32xf32>
    %123 = arith.mulf %121, %122 : vector<8x32xf32>
    %124 = vector.broadcast %103 : vector<1x32xf32> to vector<8x32xf32>
    %125 = arith.addf %123, %124 : vector<8x32xf32>
    %c0_51 = arith.constant 0 : index
    %c0_52 = arith.constant 0 : index
    %126 = vector.load %arg12[%c0_51, %c0_52] : memref<32x128xf32, #tpu.memory_space<vmem>>, vector<32x128xf32>
    %cst_53 = arith.constant dense<0.000000e+00> : vector<8x128xf32>
    %127 = tpu.matmul %125, %126, %cst_53 {dimension_numbers = #tpu.dot_dimension_numbers<[1], [0], [0], [1], [0, 0, 1, 1], [], []>} : vector<8x32xf32>, vector<32x128xf32>, vector<8x128xf32> -> vector<8x128xf32>
    %c0_54 = arith.constant 0 : index
    %c0_55 = arith.constant 0 : index
    %128 = vector.load %arg13[%c0_54, %c0_55] : memref<1x128xf32, #tpu.memory_space<vmem>>, vector<1x128xf32>
    %129 = vector.broadcast %128 : vector<1x128xf32> to vector<8x128xf32>
    %130 = arith.addf %127, %129 : vector<8x128xf32>
    %cst_56 = arith.constant 0.000000e+00 : f32
    %131 = vector.broadcast %cst_56 : f32 to vector<8x128xf32>
    %132 = arith.maximumf %130, %131 : vector<8x128xf32>
    %c0_57 = arith.constant 0 : index
    %c0_58 = arith.constant 0 : index
    %133 = vector.load %arg14[%c0_57, %c0_58] : memref<128x32xf32, #tpu.memory_space<vmem>>, vector<128x32xf32>
    %cst_59 = arith.constant dense<0.000000e+00> : vector<8x32xf32>
    %134 = tpu.matmul %132, %133, %cst_59 {dimension_numbers = #tpu.dot_dimension_numbers<[1], [0], [0], [1], [0, 0, 1, 1], [], []>} : vector<8x128xf32>, vector<128x32xf32>, vector<8x32xf32> -> vector<8x32xf32>
    %c0_60 = arith.constant 0 : index
    %c0_61 = arith.constant 0 : index
    %135 = vector.load %arg15[%c0_60, %c0_61] : memref<1x32xf32, #tpu.memory_space<vmem>>, vector<1x32xf32>
    %136 = vector.broadcast %135 : vector<1x32xf32> to vector<8x32xf32>
    %137 = arith.addf %134, %136 : vector<8x32xf32>
    %138 = arith.addf %125, %137 : vector<8x32xf32>
    %c0_62 = arith.constant 0 : index
    %c0_63 = arith.constant 0 : index
    %139 = vector.load %arg16[%c0_62, %c0_63] : memref<1x32xf32, #tpu.memory_space<vmem>>, vector<1x32xf32>
    %c0_64 = arith.constant 0 : index
    %c0_65 = arith.constant 0 : index
    %140 = vector.load %arg17[%c0_64, %c0_65] : memref<1x32xf32, #tpu.memory_space<vmem>>, vector<1x32xf32>
    %cst_66 = arith.constant dense<0.000000e+00> : vector<8xf32>
    %141 = vector.multi_reduction <add>, %138, %cst_66 [1] : vector<8x32xf32> to vector<8xf32>
    %142 = vector.shape_cast %141 : vector<8xf32> to vector<8x1xf32>
    %cst_67 = arith.constant 3.200000e+01 : f32
    %143 = vector.broadcast %cst_67 : f32 to vector<8x1xf32>
    %144 = arith.divf %142, %143 : vector<8x1xf32>
    %145 = vector.broadcast %144 : vector<8x1xf32> to vector<8x32xf32>
    %146 = arith.subf %138, %145 : vector<8x32xf32>
    %147 = arith.mulf %146, %146 : vector<8x32xf32>
    %cst_68 = arith.constant dense<0.000000e+00> : vector<8xf32>
    %148 = vector.multi_reduction <add>, %147, %cst_68 [1] : vector<8x32xf32> to vector<8xf32>
    %149 = vector.shape_cast %148 : vector<8xf32> to vector<8x1xf32>
    %cst_69 = arith.constant 3.200000e+01 : f32
    %150 = vector.broadcast %cst_69 : f32 to vector<8x1xf32>
    %151 = arith.divf %149, %150 : vector<8x1xf32>
    %152 = vector.broadcast %144 : vector<8x1xf32> to vector<8x32xf32>
    %153 = arith.subf %138, %152 : vector<8x32xf32>
    %cst_70 = arith.constant 9.99999974E-6 : f32
    %154 = vector.broadcast %cst_70 : f32 to vector<8x1xf32>
    %155 = arith.addf %151, %154 : vector<8x1xf32>
    %156 = math.rsqrt %155 : vector<8x1xf32>
    %157 = vector.broadcast %156 : vector<8x1xf32> to vector<8x32xf32>
    %158 = arith.mulf %153, %157 : vector<8x32xf32>
    %159 = vector.broadcast %139 : vector<1x32xf32> to vector<8x32xf32>
    %160 = arith.mulf %158, %159 : vector<8x32xf32>
    %161 = vector.broadcast %140 : vector<1x32xf32> to vector<8x32xf32>
    %162 = arith.addf %160, %161 : vector<8x32xf32>
    %c0_71 = arith.constant 0 : index
    %c0_72 = arith.constant 0 : index
    %163 = vector.load %arg18[%c0_71, %c0_72] : memref<8x32xf32, #tpu.memory_space<vmem>>, vector<8x32xf32>
    tpu.vector_store %arg18[%c0_71, %c0_72], %162 {strides = array<i32>} : memref<8x32xf32, #tpu.memory_space<vmem>>, vector<8x32xf32>,
    return
  }
  func.func @transform_0(%arg0: i32) -> (i32, i32) {
    %c0_i32 = arith.constant 0 : i32
    %c0_i32_0 = arith.constant 0 : i32
    return %arg0, %c0_i32 : i32, i32
  }
  func.func @transform_1(%arg0: i32) -> (i32, i32) {
    %c0_i32 = arith.constant 0 : i32
    %c0_i32_0 = arith.constant 0 : i32
    %c0_i32_1 = arith.constant 0 : i32
    return %c0_i32, %c0_i32_0 : i32, i32
  }
  func.func @transform_2(%arg0: i32) -> (i32, i32) {
    %c0_i32 = arith.constant 0 : i32
    %c0_i32_0 = arith.constant 0 : i32
    %c0_i32_1 = arith.constant 0 : i32
    return %c0_i32, %c0_i32_0 : i32, i32
  }
  func.func @transform_3(%arg0: i32) -> (i32, i32) {
    %c0_i32 = arith.constant 0 : i32
    %c0_i32_0 = arith.constant 0 : i32
    %c0_i32_1 = arith.constant 0 : i32
    return %c0_i32, %c0_i32_0 : i32, i32
  }
  func.func @transform_4(%arg0: i32) -> (i32, i32) {
    %c0_i32 = arith.constant 0 : i32
    %c0_i32_0 = arith.constant 0 : i32
    %c0_i32_1 = arith.constant 0 : i32
    return %c0_i32, %c0_i32_0 : i32, i32
  }
  func.func @transform_5(%arg0: i32) -> (i32, i32) {
    %c0_i32 = arith.constant 0 : i32
    %c0_i32_0 = arith.constant 0 : i32
    %c0_i32_1 = arith.constant 0 : i32
    return %c0_i32, %c0_i32_0 : i32, i32
  }
  func.func @transform_6(%arg0: i32) -> (i32, i32) {
    %c0_i32 = arith.constant 0 : i32
    %c0_i32_0 = arith.constant 0 : i32
    %c0_i32_1 = arith.constant 0 : i32
    return %c0_i32, %c0_i32_0 : i32, i32
  }
  func.func @transform_7(%arg0: i32) -> (i32, i32) {
    %c0_i32 = arith.constant 0 : i32
    %c0_i32_0 = arith.constant 0 : i32
    %c0_i32_1 = arith.constant 0 : i32
    return %c0_i32, %c0_i32_0 : i32, i32
  }
  func.func @transform_8(%arg0: i32) -> (i32, i32) {
    %c0_i32 = arith.constant 0 : i32
    %c0_i32_0 = arith.constant 0 : i32
    %c0_i32_1 = arith.constant 0 : i32
    return %c0_i32, %c0_i32_0 : i32, i32
  }
  func.func @transform_9(%arg0: i32) -> (i32, i32) {
    %c0_i32 = arith.constant 0 : i32
    %c0_i32_0 = arith.constant 0 : i32
    %c0_i32_1 = arith.constant 0 : i32
    return %c0_i32, %c0_i32_0 : i32, i32
  }
  func.func @transform_10(%arg0: i32) -> (i32, i32) {
    %c0_i32 = arith.constant 0 : i32
    %c0_i32_0 = arith.constant 0 : i32
    %c0_i32_1 = arith.constant 0 : i32
    return %c0_i32, %c0_i32_0 : i32, i32
  }
  func.func @transform_11(%arg0: i32) -> (i32, i32) {
    %c0_i32 = arith.constant 0 : i32
    %c0_i32_0 = arith.constant 0 : i32
    %c0_i32_1 = arith.constant 0 : i32
    return %c0_i32, %c0_i32_0 : i32, i32
  }
  func.func @transform_12(%arg0: i32) -> (i32, i32) {
    %c0_i32 = arith.constant 0 : i32
    %c0_i32_0 = arith.constant 0 : i32
    %c0_i32_1 = arith.constant 0 : i32
    return %c0_i32, %c0_i32_0 : i32, i32
  }
  func.func @transform_13(%arg0: i32) -> (i32, i32) {
    %c0_i32 = arith.constant 0 : i32
    %c0_i32_0 = arith.constant 0 : i32
    %c0_i32_1 = arith.constant 0 : i32
    return %c0_i32, %c0_i32_0 : i32, i32
  }
  func.func @transform_14(%arg0: i32) -> (i32, i32) {
    %c0_i32 = arith.constant 0 : i32
    %c0_i32_0 = arith.constant 0 : i32
    %c0_i32_1 = arith.constant 0 : i32
    return %c0_i32, %c0_i32_0 : i32, i32
  }
  func.func @transform_15(%arg0: i32) -> (i32, i32) {
    %c0_i32 = arith.constant 0 : i32
    %c0_i32_0 = arith.constant 0 : i32
    %c0_i32_1 = arith.constant 0 : i32
    return %c0_i32, %c0_i32_0 : i32, i32
  }
  func.func @transform_16(%arg0: i32) -> (i32, i32) {
    %c0_i32 = arith.constant 0 : i32
    %c0_i32_0 = arith.constant 0 : i32
    %c0_i32_1 = arith.constant 0 : i32
    return %c0_i32, %c0_i32_0 : i32, i32
  }
  func.func @transform_17(%arg0: i32) -> (i32, i32) {
    %c0_i32 = arith.constant 0 : i32
    %c0_i32_0 = arith.constant 0 : i32
    return %arg0, %c0_i32 : i32, i32
  }
}

module attributes {stable_mosaic.version = 11 : i64} {
  func.func @transformer_block_kernel(%arg0: i32, %arg1: memref<8x32xf32, #tpu.memory_space<vmem>>, %arg2: memref<32x32xf32, #tpu.memory_space<vmem>>, %arg3: memref<32x32xf32, #tpu.memory_space<vmem>>, %arg4: memref<32x32xf32, #tpu.memory_space<vmem>>, %arg5: memref<1x32xf32, #tpu.memory_space<vmem>>, %arg6: memref<1x32xf32, #tpu.memory_space<vmem>>, %arg7: memref<1x32xf32, #tpu.memory_space<vmem>>, %arg8: memref<32x32xf32, #tpu.memory_space<vmem>>, %arg9: memref<1x32xf32, #tpu.memory_space<vmem>>, %arg10: memref<1x32xf32, #tpu.memory_space<vmem>>, %arg11: memref<1x32xf32, #tpu.memory_space<vmem>>, %arg12: memref<32x128xf32, #tpu.memory_space<vmem>>, %arg13: memref<1x128xf32, #tpu.memory_space<vmem>>, %arg14: memref<128x32xf32, #tpu.memory_space<vmem>>, %arg15: memref<1x32xf32, #tpu.memory_space<vmem>>, %arg16: memref<1x32xf32, #tpu.memory_space<vmem>>, %arg17: memref<1x32xf32, #tpu.memory_space<vmem>>, %arg18: memref<8x32xf32, #tpu.memory_space<vmem>>) attributes {dimension_semantics = [#tpu.dimension_semantics<parallel>], iteration_bounds = array<i64: 2>, scalar_prefetch = 0 : i64, scratch_operands = 0 : i64, tpu.core_type = #tpu.core_type<tc>, window_params = [{transform_indices = @transform_0, window_bounds = array<i64: 8, 32>}, {pipeline_mode = #tpu.pipeline_mode<synchronous>, transform_indices = @transform_1, window_bounds = array<i64: 32, 32>}, {pipeline_mode = #tpu.pipeline_mode<synchronous>, transform_indices = @transform_2, window_bounds = array<i64: 32, 32>}, {pipeline_mode = #tpu.pipeline_mode<synchronous>, transform_indices = @transform_3, window_bounds = array<i64: 32, 32>}, {pipeline_mode = #tpu.pipeline_mode<synchronous>, transform_indices = @transform_4, window_bounds = array<i64: 1, 32>}, {pipeline_mode = #tpu.pipeline_mode<synchronous>, transform_indices = @transform_5, window_bounds = array<i64: 1, 32>}, {pipeline_mode = #tpu.pipeline_mode<synchronous>, transform_indices = @transform_6, window_bounds = array<i64: 1, 32>}, {pipeline_mode = #tpu.pipeline_mode<synchronous>, transform_indices = @transform_7, window_bounds = array<i64: 32, 32>}, {pipeline_mode = #tpu.pipeline_mode<synchronous>, transform_indices = @transform_8, window_bounds = array<i64: 1, 32>}, {pipeline_mode = #tpu.pipeline_mode<synchronous>, transform_indices = @transform_9, window_bounds = array<i64: 1, 32>}, {pipeline_mode = #tpu.pipeline_mode<synchronous>, transform_indices = @transform_10, window_bounds = array<i64: 1, 32>}, {pipeline_mode = #tpu.pipeline_mode<synchronous>, transform_indices = @transform_11, window_bounds = array<i64: 32, 128>}, {pipeline_mode = #tpu.pipeline_mode<synchronous>, transform_indices = @transform_12, window_bounds = array<i64: 1, 128>}, {pipeline_mode = #tpu.pipeline_mode<synchronous>, transform_indices = @transform_13, window_bounds = array<i64: 128, 32>}, {pipeline_mode = #tpu.pipeline_mode<synchronous>, transform_indices = @transform_14, window_bounds = array<i64: 1, 32>}, {pipeline_mode = #tpu.pipeline_mode<synchronous>, transform_indices = @transform_15, window_bounds = array<i64: 1, 32>}, {pipeline_mode = #tpu.pipeline_mode<synchronous>, transform_indices = @transform_16, window_bounds = array<i64: 1, 32>}, {transform_indices = @transform_17, window_bounds = array<i64: 8, 32>}]} {
    %c0 = arith.constant 0 : index
    %c0_0 = arith.constant 0 : index
    %0 = vector.load %arg1[%c0, %c0_0] : memref<8x32xf32, #tpu.memory_space<vmem>>, vector<8x32xf32>
    %c0_1 = arith.constant 0 : index
    %c0_2 = arith.constant 0 : index
    %1 = vector.load %arg2[%c0_1, %c0_2] : memref<32x32xf32, #tpu.memory_space<vmem>>, vector<32x32xf32>
    %cst = arith.constant dense<0.000000e+00> : vector<8x32xf32>
    %2 = tpu.matmul %0, %1, %cst {dimension_numbers = #tpu.dot_dimension_numbers<[1], [0], [0], [1], [0, 0, 1, 1], [], []>} : vector<8x32xf32>, vector<32x32xf32>, vector<8x32xf32> -> vector<8x32xf32>
    %c0_3 = arith.constant 0 : index
    %c0_4 = arith.constant 0 : index
    %3 = vector.load %arg5[%c0_3, %c0_4] : memref<1x32xf32, #tpu.memory_space<vmem>>, vector<1x32xf32>
    %4 = vector.broadcast %3 : vector<1x32xf32> to vector<8x32xf32>
    %5 = arith.addf %2, %4 : vector<8x32xf32>
    %cst_5 = arith.constant 0.353553385 : f32
    %6 = vector.broadcast %cst_5 : f32 to vector<8x32xf32>
    %7 = arith.mulf %5, %6 : vector<8x32xf32>
    %c0_6 = arith.constant 0 : index
    %c0_7 = arith.constant 0 : index
    %8 = vector.load %arg3[%c0_6, %c0_7] : memref<32x32xf32, #tpu.memory_space<vmem>>, vector<32x32xf32>
    %cst_8 = arith.constant dense<0.000000e+00> : vector<8x32xf32>
    %9 = tpu.matmul %0, %8, %cst_8 {dimension_numbers = #tpu.dot_dimension_numbers<[1], [0], [0], [1], [0, 0, 1, 1], [], []>} : vector<8x32xf32>, vector<32x32xf32>, vector<8x32xf32> -> vector<8x32xf32>
    %c0_9 = arith.constant 0 : index
    %c0_10 = arith.constant 0 : index
    %10 = vector.load %arg6[%c0_9, %c0_10] : memref<1x32xf32, #tpu.memory_space<vmem>>, vector<1x32xf32>
    %11 = vector.broadcast %10 : vector<1x32xf32> to vector<8x32xf32>
    %12 = arith.addf %9, %11 : vector<8x32xf32>
    %c0_11 = arith.constant 0 : index
    %c0_12 = arith.constant 0 : index
    %13 = vector.load %arg4[%c0_11, %c0_12] : memref<32x32xf32, #tpu.memory_space<vmem>>, vector<32x32xf32>
    %cst_13 = arith.constant dense<0.000000e+00> : vector<8x32xf32>
    %14 = tpu.matmul %0, %13, %cst_13 {dimension_numbers = #tpu.dot_dimension_numbers<[1], [0], [0], [1], [0, 0, 1, 1], [], []>} : vector<8x32xf32>, vector<32x32xf32>, vector<8x32xf32> -> vector<8x32xf32>
    %c0_14 = arith.constant 0 : index
    %c0_15 = arith.constant 0 : index
    %15 = vector.load %arg7[%c0_14, %c0_15] : memref<1x32xf32, #tpu.memory_space<vmem>>, vector<1x32xf32>
    %16 = vector.broadcast %15 : vector<1x32xf32> to vector<8x32xf32>
    %17 = arith.addf %14, %16 : vector<8x32xf32>
    %18 = vector.shape_cast %7 : vector<8x32xf32> to vector<1x8x32xf32>
    %19 = vector.shape_cast %12 : vector<8x32xf32> to vector<1x8x32xf32>
    %20 = vector.shape_cast %17 : vector<8x32xf32> to vector<1x8x32xf32>
    %c0_16 = arith.constant 0 : index
    %c0_17 = arith.constant 0 : index
    %21 = vector.load %arg8[%c0_16, %c0_17] : memref<32x32xf32, #tpu.memory_space<vmem>>, vector<32x32xf32>
    %22 = vector.extract_strided_slice %18 {offsets = [0, 0, 0], sizes = [1, 8, 8], strides = [1, 1, 1]} : vector<1x8x32xf32> to vector<1x8x8xf32>
    %23 = vector.extract_strided_slice %19 {offsets = [0, 0, 0], sizes = [1, 8, 8], strides = [1, 1, 1]} : vector<1x8x32xf32> to vector<1x8x8xf32>
    %24 = vector.extract_strided_slice %20 {offsets = [0, 0, 0], sizes = [1, 8, 8], strides = [1, 1, 1]} : vector<1x8x32xf32> to vector<1x8x8xf32>
    "tpu.trace_start"() <{level = 10 : i32, message = "bqd,bkd->bqk"}> : () -> ()
    %cst_18 = arith.constant dense<0.000000e+00> : vector<1x8x8xf32>
    %25 = tpu.matmul %22, %23, %cst_18 {dimension_numbers = #tpu.dot_dimension_numbers<[2], [2], [1], [1], [0, 0, 0, 1, 1, 1], [0], [0]>} : vector<1x8x8xf32>, vector<1x8x8xf32>, vector<1x8x8xf32> -> vector<1x8x8xf32>
    "tpu.trace_stop"() : () -> ()
    %cst_19 = arith.constant dense<0xFF800000> : vector<1x8xf32>
    %26 = vector.multi_reduction <maximumf>, %25, %cst_19 [2] : vector<1x8x8xf32> to vector<1x8xf32>
    %27 = vector.shape_cast %26 : vector<1x8xf32> to vector<1x8x1xf32>
    %28 = vector.broadcast %27 : vector<1x8x1xf32> to vector<1x8x8xf32>
    %29 = arith.subf %25, %28 : vector<1x8x8xf32>
    %30 = math.exp %29 : vector<1x8x8xf32>
    %cst_20 = arith.constant dense<0.000000e+00> : vector<1x8xf32>
    %31 = vector.multi_reduction <add>, %30, %cst_20 [2] : vector<1x8x8xf32> to vector<1x8xf32>
    %32 = vector.shape_cast %31 : vector<1x8xf32> to vector<1x8x1xf32>
    %33 = tpu.reciprocal %32 : vector<1x8x1xf32> -> vector<1x8x1xf32>
    %34 = vector.broadcast %33 : vector<1x8x1xf32> to vector<1x8x8xf32>
    %35 = arith.mulf %30, %34 : vector<1x8x8xf32>
    "tpu.trace_start"() <{level = 10 : i32, message = "bqk,bkd->bqd"}> : () -> ()
    %cst_21 = arith.constant dense<0.000000e+00> : vector<1x8x8xf32>
    %36 = tpu.matmul %35, %24, %cst_21 {dimension_numbers = #tpu.dot_dimension_numbers<[2], [1], [1], [2], [0, 0, 0, 1, 1, 2], [0], [0]>} : vector<1x8x8xf32>, vector<1x8x8xf32>, vector<1x8x8xf32> -> vector<1x8x8xf32>
    "tpu.trace_stop"() : () -> ()
    %37 = vector.shape_cast %36 : vector<1x8x8xf32> to vector<8x8xf32>
    %38 = vector.extract_strided_slice %21 {offsets = [0, 0], sizes = [8, 32], strides = [1, 1]} : vector<32x32xf32> to vector<8x32xf32>
    %cst_22 = arith.constant dense<0.000000e+00> : vector<8x32xf32>
    %39 = tpu.matmul %37, %38, %cst_22 {dimension_numbers = #tpu.dot_dimension_numbers<[1], [0], [0], [1], [0, 0, 1, 1], [], []>} : vector<8x8xf32>, vector<8x32xf32>, vector<8x32xf32> -> vector<8x32xf32>
    %40 = vector.extract_strided_slice %18 {offsets = [0, 0, 8], sizes = [1, 8, 8], strides = [1, 1, 1]} : vector<1x8x32xf32> to vector<1x8x8xf32>
    %41 = vector.extract_strided_slice %19 {offsets = [0, 0, 8], sizes = [1, 8, 8], strides = [1, 1, 1]} : vector<1x8x32xf32> to vector<1x8x8xf32>
    %42 = vector.extract_strided_slice %20 {offsets = [0, 0, 8], sizes = [1, 8, 8], strides = [1, 1, 1]} : vector<1x8x32xf32> to vector<1x8x8xf32>
    "tpu.trace_start"() <{level = 10 : i32, message = "bqd,bkd->bqk"}> : () -> ()
    %cst_23 = arith.constant dense<0.000000e+00> : vector<1x8x8xf32>
    %43 = tpu.matmul %40, %41, %cst_23 {dimension_numbers = #tpu.dot_dimension_numbers<[2], [2], [1], [1], [0, 0, 0, 1, 1, 1], [0], [0]>} : vector<1x8x8xf32>, vector<1x8x8xf32>, vector<1x8x8xf32> -> vector<1x8x8xf32>
    "tpu.trace_stop"() : () -> ()
    %cst_24 = arith.constant dense<0xFF800000> : vector<1x8xf32>
    %44 = vector.multi_reduction <maximumf>, %43, %cst_24 [2] : vector<1x8x8xf32> to vector<1x8xf32>
    %45 = vector.shape_cast %44 : vector<1x8xf32> to vector<1x8x1xf32>
    %46 = vector.broadcast %45 : vector<1x8x1xf32> to vector<1x8x8xf32>
    %47 = arith.subf %43, %46 : vector<1x8x8xf32>
    %48 = math.exp %47 : vector<1x8x8xf32>
    %cst_25 = arith.constant dense<0.000000e+00> : vector<1x8xf32>
    %49 = vector.multi_reduction <add>, %48, %cst_25 [2] : vector<1x8x8xf32> to vector<1x8xf32>
    %50 = vector.shape_cast %49 : vector<1x8xf32> to vector<1x8x1xf32>
    %51 = tpu.reciprocal %50 : vector<1x8x1xf32> -> vector<1x8x1xf32>
    %52 = vector.broadcast %51 : vector<1x8x1xf32> to vector<1x8x8xf32>
    %53 = arith.mulf %48, %52 : vector<1x8x8xf32>
    "tpu.trace_start"() <{level = 10 : i32, message = "bqk,bkd->bqd"}> : () -> ()
    %cst_26 = arith.constant dense<0.000000e+00> : vector<1x8x8xf32>
    %54 = tpu.matmul %53, %42, %cst_26 {dimension_numbers = #tpu.dot_dimension_numbers<[2], [1], [1], [2], [0, 0, 0, 1, 1, 2], [0], [0]>} : vector<1x8x8xf32>, vector<1x8x8xf32>, vector<1x8x8xf32> -> vector<1x8x8xf32>
    "tpu.trace_stop"() : () -> ()
    %55 = vector.shape_cast %54 : vector<1x8x8xf32> to vector<8x8xf32>
    %56 = vector.extract_strided_slice %21 {offsets = [8, 0], sizes = [8, 32], strides = [1, 1]} : vector<32x32xf32> to vector<8x32xf32>
    %cst_27 = arith.constant dense<0.000000e+00> : vector<8x32xf32>
    %57 = tpu.matmul %55, %56, %cst_27 {dimension_numbers = #tpu.dot_dimension_numbers<[1], [0], [0], [1], [0, 0, 1, 1], [], []>} : vector<8x8xf32>, vector<8x32xf32>, vector<8x32xf32> -> vector<8x32xf32>
    %58 = arith.addf %39, %57 : vector<8x32xf32>
    %59 = vector.extract_strided_slice %18 {offsets = [0, 0, 16], sizes = [1, 8, 8], strides = [1, 1, 1]} : vector<1x8x32xf32> to vector<1x8x8xf32>
    %60 = vector.extract_strided_slice %19 {offsets = [0, 0, 16], sizes = [1, 8, 8], strides = [1, 1, 1]} : vector<1x8x32xf32> to vector<1x8x8xf32>
    %61 = vector.extract_strided_slice %20 {offsets = [0, 0, 16], sizes = [1, 8, 8], strides = [1, 1, 1]} : vector<1x8x32xf32> to vector<1x8x8xf32>
    "tpu.trace_start"() <{level = 10 : i32, message = "bqd,bkd->bqk"}> : () -> ()
    %cst_28 = arith.constant dense<0.000000e+00> : vector<1x8x8xf32>
    %62 = tpu.matmul %59, %60, %cst_28 {dimension_numbers = #tpu.dot_dimension_numbers<[2], [2], [1], [1], [0, 0, 0, 1, 1, 1], [0], [0]>} : vector<1x8x8xf32>, vector<1x8x8xf32>, vector<1x8x8xf32> -> vector<1x8x8xf32>
    "tpu.trace_stop"() : () -> ()
    %cst_29 = arith.constant dense<0xFF800000> : vector<1x8xf32>
    %63 = vector.multi_reduction <maximumf>, %62, %cst_29 [2] : vector<1x8x8xf32> to vector<1x8xf32>
    %64 = vector.shape_cast %63 : vector<1x8xf32> to vector<1x8x1xf32>
    %65 = vector.broadcast %64 : vector<1x8x1xf32> to vector<1x8x8xf32>
    %66 = arith.subf %62, %65 : vector<1x8x8xf32>
    %67 = math.exp %66 : vector<1x8x8xf32>
    %cst_30 = arith.constant dense<0.000000e+00> : vector<1x8xf32>
    %68 = vector.multi_reduction <add>, %67, %cst_30 [2] : vector<1x8x8xf32> to vector<1x8xf32>
    %69 = vector.shape_cast %68 : vector<1x8xf32> to vector<1x8x1xf32>
    %70 = tpu.reciprocal %69 : vector<1x8x1xf32> -> vector<1x8x1xf32>
    %71 = vector.broadcast %70 : vector<1x8x1xf32> to vector<1x8x8xf32>
    %72 = arith.mulf %67, %71 : vector<1x8x8xf32>
    "tpu.trace_start"() <{level = 10 : i32, message = "bqk,bkd->bqd"}> : () -> ()
    %cst_31 = arith.constant dense<0.000000e+00> : vector<1x8x8xf32>
    %73 = tpu.matmul %72, %61, %cst_31 {dimension_numbers = #tpu.dot_dimension_numbers<[2], [1], [1], [2], [0, 0, 0, 1, 1, 2], [0], [0]>} : vector<1x8x8xf32>, vector<1x8x8xf32>, vector<1x8x8xf32> -> vector<1x8x8xf32>
    "tpu.trace_stop"() : () -> ()
    %74 = vector.shape_cast %73 : vector<1x8x8xf32> to vector<8x8xf32>
    %75 = vector.extract_strided_slice %21 {offsets = [16, 0], sizes = [8, 32], strides = [1, 1]} : vector<32x32xf32> to vector<8x32xf32>
    %cst_32 = arith.constant dense<0.000000e+00> : vector<8x32xf32>
    %76 = tpu.matmul %74, %75, %cst_32 {dimension_numbers = #tpu.dot_dimension_numbers<[1], [0], [0], [1], [0, 0, 1, 1], [], []>} : vector<8x8xf32>, vector<8x32xf32>, vector<8x32xf32> -> vector<8x32xf32>
    %77 = arith.addf %58, %76 : vector<8x32xf32>
    %78 = vector.extract_strided_slice %18 {offsets = [0, 0, 24], sizes = [1, 8, 8], strides = [1, 1, 1]} : vector<1x8x32xf32> to vector<1x8x8xf32>
    %79 = vector.extract_strided_slice %19 {offsets = [0, 0, 24], sizes = [1, 8, 8], strides = [1, 1, 1]} : vector<1x8x32xf32> to vector<1x8x8xf32>
    %80 = vector.extract_strided_slice %20 {offsets = [0, 0, 24], sizes = [1, 8, 8], strides = [1, 1, 1]} : vector<1x8x32xf32> to vector<1x8x8xf32>
    "tpu.trace_start"() <{level = 10 : i32, message = "bqd,bkd->bqk"}> : () -> ()
    %cst_33 = arith.constant dense<0.000000e+00> : vector<1x8x8xf32>
    %81 = tpu.matmul %78, %79, %cst_33 {dimension_numbers = #tpu.dot_dimension_numbers<[2], [2], [1], [1], [0, 0, 0, 1, 1, 1], [0], [0]>} : vector<1x8x8xf32>, vector<1x8x8xf32>, vector<1x8x8xf32> -> vector<1x8x8xf32>
    "tpu.trace_stop"() : () -> ()
    %cst_34 = arith.constant dense<0xFF800000> : vector<1x8xf32>
    %82 = vector.multi_reduction <maximumf>, %81, %cst_34 [2] : vector<1x8x8xf32> to vector<1x8xf32>
    %83 = vector.shape_cast %82 : vector<1x8xf32> to vector<1x8x1xf32>
    %84 = vector.broadcast %83 : vector<1x8x1xf32> to vector<1x8x8xf32>
    %85 = arith.subf %81, %84 : vector<1x8x8xf32>
    %86 = math.exp %85 : vector<1x8x8xf32>
    %cst_35 = arith.constant dense<0.000000e+00> : vector<1x8xf32>
    %87 = vector.multi_reduction <add>, %86, %cst_35 [2] : vector<1x8x8xf32> to vector<1x8xf32>
    %88 = vector.shape_cast %87 : vector<1x8xf32> to vector<1x8x1xf32>
    %89 = tpu.reciprocal %88 : vector<1x8x1xf32> -> vector<1x8x1xf32>
    %90 = vector.broadcast %89 : vector<1x8x1xf32> to vector<1x8x8xf32>
    %91 = arith.mulf %86, %90 : vector<1x8x8xf32>
    "tpu.trace_start"() <{level = 10 : i32, message = "bqk,bkd->bqd"}> : () -> ()
    %cst_36 = arith.constant dense<0.000000e+00> : vector<1x8x8xf32>
    %92 = tpu.matmul %91, %80, %cst_36 {dimension_numbers = #tpu.dot_dimension_numbers<[2], [1], [1], [2], [0, 0, 0, 1, 1, 2], [0], [0]>} : vector<1x8x8xf32>, vector<1x8x8xf32>, vector<1x8x8xf32> -> vector<1x8x8xf32>
    "tpu.trace_stop"() : () -> ()
    %93 = vector.shape_cast %92 : vector<1x8x8xf32> to vector<8x8xf32>
    %94 = vector.extract_strided_slice %21 {offsets = [24, 0], sizes = [8, 32], strides = [1, 1]} : vector<32x32xf32> to vector<8x32xf32>
    %cst_37 = arith.constant dense<0.000000e+00> : vector<8x32xf32>
    %95 = tpu.matmul %93, %94, %cst_37 {dimension_numbers = #tpu.dot_dimension_numbers<[1], [0], [0], [1], [0, 0, 1, 1], [], []>} : vector<8x8xf32>, vector<8x32xf32>, vector<8x32xf32> -> vector<8x32xf32>
    %96 = arith.addf %77, %95 : vector<8x32xf32>
    %c0_38 = arith.constant 0 : index
    %c0_39 = arith.constant 0 : index
    %97 = vector.load %arg9[%c0_38, %c0_39] : memref<1x32xf32, #tpu.memory_space<vmem>>, vector<1x32xf32>
    %98 = vector.broadcast %97 : vector<1x32xf32> to vector<8x32xf32>
    %99 = arith.addf %96, %98 : vector<8x32xf32>
    %c0_40 = arith.constant 0 : index
    %c0_41 = arith.constant 0 : index
    %100 = vector.load %arg1[%c0_40, %c0_41] : memref<8x32xf32, #tpu.memory_space<vmem>>, vector<8x32xf32>
    %101 = arith.addf %100, %99 : vector<8x32xf32>
    %c0_42 = arith.constant 0 : index
    %c0_43 = arith.constant 0 : index
    %102 = vector.load %arg10[%c0_42, %c0_43] : memref<1x32xf32, #tpu.memory_space<vmem>>, vector<1x32xf32>
    %c0_44 = arith.constant 0 : index
    %c0_45 = arith.constant 0 : index
    %103 = vector.load %arg11[%c0_44, %c0_45] : memref<1x32xf32, #tpu.memory_space<vmem>>, vector<1x32xf32>
    %cst_46 = arith.constant dense<0.000000e+00> : vector<8xf32>
    %104 = vector.multi_reduction <add>, %101, %cst_46 [1] : vector<8x32xf32> to vector<8xf32>
    %105 = vector.shape_cast %104 : vector<8xf32> to vector<8x1xf32>
    %cst_47 = arith.constant 3.200000e+01 : f32
    %106 = vector.broadcast %cst_47 : f32 to vector<8x1xf32>
    %107 = arith.divf %105, %106 : vector<8x1xf32>
    %108 = vector.broadcast %107 : vector<8x1xf32> to vector<8x32xf32>
    %109 = arith.subf %101, %108 : vector<8x32xf32>
    %110 = arith.mulf %109, %109 : vector<8x32xf32>
    %cst_48 = arith.constant dense<0.000000e+00> : vector<8xf32>
    %111 = vector.multi_reduction <add>, %110, %cst_48 [1] : vector<8x32xf32> to vector<8xf32>
    %112 = vector.shape_cast %111 : vector<8xf32> to vector<8x1xf32>
    %cst_49 = arith.constant 3.200000e+01 : f32
    %113 = vector.broadcast %cst_49 : f32 to vector<8x1xf32>
    %114 = arith.divf %112, %113 : vector<8x1xf32>
    %115 = vector.broadcast %107 : vector<8x1xf32> to vector<8x32xf32>
    %116 = arith.subf %101, %115 : vector<8x32xf32>
    %cst_50 = arith.constant 9.99999974E-6 : f32
    %117 = vector.broadcast %cst_50 : f32 to vector<8x1xf32>
    %118 = arith.addf %114, %117 : vector<8x1xf32>
    %119 = math.rsqrt %118 : vector<8x1xf32>
    %120 = vector.broadcast %119 : vector<8x1xf32> to vector<8x32xf32>
    %121 = arith.mulf %116, %120 : vector<8x32xf32>
    %122 = vector.broadcast %102 : vector<1x32xf32> to vector<8x32xf32>
    %123 = arith.mulf %121, %122 : vector<8x32xf32>
    %124 = vector.broadcast %103 : vector<1x32xf32> to vector<8x32xf32>
    %125 = arith.addf %123, %124 : vector<8x32xf32>
    %c0_51 = arith.constant 0 : index
    %c0_52 = arith.constant 0 : index
    %126 = vector.load %arg12[%c0_51, %c0_52] : memref<32x128xf32, #tpu.memory_space<vmem>>, vector<32x128xf32>
    %cst_53 = arith.constant dense<0.000000e+00> : vector<8x128xf32>
    %127 = tpu.matmul %125, %126, %cst_53 {dimension_numbers = #tpu.dot_dimension_numbers<[1], [0], [0], [1], [0, 0, 1, 1], [], []>} : vector<8x32xf32>, vector<32x128xf32>, vector<8x128xf32> -> vector<8x128xf32>
    %c0_54 = arith.constant 0 : index
    %c0_55 = arith.constant 0 : index
    %128 = vector.load %arg13[%c0_54, %c0_55] : memref<1x128xf32, #tpu.memory_space<vmem>>, vector<1x128xf32>
    %129 = vector.broadcast %128 : vector<1x128xf32> to vector<8x128xf32>
    %130 = arith.addf %127, %129 : vector<8x128xf32>
    %cst_56 = arith.constant 0.000000e+00 : f32
    %131 = vector.broadcast %cst_56 : f32 to vector<8x128xf32>
    %132 = arith.maximumf %130, %131 : vector<8x128xf32>
    %c0_57 = arith.constant 0 : index
    %c0_58 = arith.constant 0 : index
    %133 = vector.load %arg14[%c0_57, %c0_58] : memref<128x32xf32, #tpu.memory_space<vmem>>, vector<128x32xf32>
    %cst_59 = arith.constant dense<0.000000e+00> : vector<8x32xf32>
    %134 = tpu.matmul %132, %133, %cst_59 {dimension_numbers = #tpu.dot_dimension_numbers<[1], [0], [0], [1], [0, 0, 1, 1], [], []>} : vector<8x128xf32>, vector<128x32xf32>, vector<8x32xf32> -> vector<8x32xf32>
    %c0_60 = arith.constant 0 : index
    %c0_61 = arith.constant 0 : index
    %135 = vector.load %arg15[%c0_60, %c0_61] : memref<1x32xf32, #tpu.memory_space<vmem>>, vector<1x32xf32>
    %136 = vector.broadcast %135 : vector<1x32xf32> to vector<8x32xf32>
    %137 = arith.addf %134, %136 : vector<8x32xf32>
    %138 = arith.addf %125, %137 : vector<8x32xf32>
    %c0_62 = arith.constant 0 : index
    %c0_63 = arith.constant 0 : index
    %139 = vector.load %arg16[%c0_62, %c0_63] : memref<1x32xf32, #tpu.memory_space<vmem>>, vector<1x32xf32>
    %c0_64 = arith.constant 0 : index
    %c0_65 = arith.constant 0 : index
    %140 = vector.load %arg17[%c0_64, %c0_65] : memref<1x32xf32, #tpu.memory_space<vmem>>, vector<1x32xf32>
    %cst_66 = arith.constant dense<0.000000e+00> : vector<8xf32>
    %141 = vector.multi_reduction <add>, %138, %cst_66 [1] : vector<8x32xf32> to vector<8xf32>
    %142 = vector.shape_cast %141 : vector<8xf32> to vector<8x1xf32>
    %cst_67 = arith.constant 3.200000e+01 : f32
    %143 = vector.broadcast %cst_67 : f32 to vector<8x1xf32>
    %144 = arith.divf %142, %143 : vector<8x1xf32>
    %145 = vector.broadcast %144 : vector<8x1xf32> to vector<8x32xf32>
    %146 = arith.subf %138, %145 : vector<8x32xf32>
    %147 = arith.mulf %146, %146 : vector<8x32xf32>
    %cst_68 = arith.constant dense<0.000000e+00> : vector<8xf32>
    %148 = vector.multi_reduction <add>, %147, %cst_68 [1] : vector<8x32xf32> to vector<8xf32>
    %149 = vector.shape_cast %148 : vector<8xf32> to vector<8x1xf32>
    %cst_69 = arith.constant 3.200000e+01 : f32
    %150 = vector.broadcast %cst_69 : f32 to vector<8x1xf32>
    %151 = arith.divf %149, %150 : vector<8x1xf32>
    %152 = vector.broadcast %144 : vector<8x1xf32> to vector<8x32xf32>
    %153 = arith.subf %138, %152 : vector<8x32xf32>
    %cst_70 = arith.constant 9.99999974E-6 : f32
    %154 = vector.broadcast %cst_70 : f32 to vector<8x1xf32>
    %155 = arith.addf %151, %154 : vector<8x1xf32>
    %156 = math.rsqrt %155 : vector<8x1xf32>
    %157 = vector.broadcast %156 : vector<8x1xf32> to vector<8x32xf32>
    %158 = arith.mulf %153, %157 : vector<8x32xf32>
    %159 = vector.broadcast %139 : vector<1x32xf32> to vector<8x32xf32>
    %160 = arith.mulf %158, %159 : vector<8x32xf32>
    %161 = vector.broadcast %140 : vector<1x32xf32> to vector<8x32xf32>
    %162 = arith.addf %160, %161 : vector<8x32xf32>
    %c0_71 = arith.constant 0 : index
    %c0_72 = arith.constant 0 : index
    %163 = vector.load %arg18[%c0_71, %c0_72] : memref<8x32xf32, #tpu.memory_space<vmem>>, vector<8x32xf32>
    tpu.vector_store %arg18[%c0_71, %c0_72], %162 {strides = array<i32>} : memref<8x32xf32, #tpu.memory_space<vmem>>, vector<8x32xf32>,
    return
  }
  func.func @transform_0(%arg0: i32) -> (i32, i32) {
    %c0_i32 = arith.constant 0 : i32
    %c0_i32_0 = arith.constant 0 : i32
    return %arg0, %c0_i32 : i32, i32
  }
  func.func @transform_1(%arg0: i32) -> (i32, i32) {
    %c0_i32 = arith.constant 0 : i32
    %c0_i32_0 = arith.constant 0 : i32
    %c0_i32_1 = arith.constant 0 : i32
    return %c0_i32, %c0_i32_0 : i32, i32
  }
  func.func @transform_2(%arg0: i32) -> (i32, i32) {
    %c0_i32 = arith.constant 0 : i32
    %c0_i32_0 = arith.constant 0 : i32
    %c0_i32_1 = arith.constant 0 : i32
    return %c0_i32, %c0_i32_0 : i32, i32
  }
  func.func @transform_3(%arg0: i32) -> (i32, i32) {
    %c0_i32 = arith.constant 0 : i32
    %c0_i32_0 = arith.constant 0 : i32
    %c0_i32_1 = arith.constant 0 : i32
    return %c0_i32, %c0_i32_0 : i32, i32
  }
  func.func @transform_4(%arg0: i32) -> (i32, i32) {
    %c0_i32 = arith.constant 0 : i32
    %c0_i32_0 = arith.constant 0 : i32
    %c0_i32_1 = arith.constant 0 : i32
    return %c0_i32, %c0_i32_0 : i32, i32
  }
  func.func @transform_5(%arg0: i32) -> (i32, i32) {
    %c0_i32 = arith.constant 0 : i32
    %c0_i32_0 = arith.constant 0 : i32
    %c0_i32_1 = arith.constant 0 : i32
    return %c0_i32, %c0_i32_0 : i32, i32
  }
  func.func @transform_6(%arg0: i32) -> (i32, i32) {
    %c0_i32 = arith.constant 0 : i32
    %c0_i32_0 = arith.constant 0 : i32
    %c0_i32_1 = arith.constant 0 : i32
    return %c0_i32, %c0_i32_0 : i32, i32
  }
  func.func @transform_7(%arg0: i32) -> (i32, i32) {
    %c0_i32 = arith.constant 0 : i32
    %c0_i32_0 = arith.constant 0 : i32
    %c0_i32_1 = arith.constant 0 : i32
    return %c0_i32, %c0_i32_0 : i32, i32
  }
  func.func @transform_8(%arg0: i32) -> (i32, i32) {
    %c0_i32 = arith.constant 0 : i32
    %c0_i32_0 = arith.constant 0 : i32
    %c0_i32_1 = arith.constant 0 : i32
    return %c0_i32, %c0_i32_0 : i32, i32
  }
  func.func @transform_9(%arg0: i32) -> (i32, i32) {
    %c0_i32 = arith.constant 0 : i32
    %c0_i32_0 = arith.constant 0 : i32
    %c0_i32_1 = arith.constant 0 : i32
    return %c0_i32, %c0_i32_0 : i32, i32
  }
  func.func @transform_10(%arg0: i32) -> (i32, i32) {
    %c0_i32 = arith.constant 0 : i32
    %c0_i32_0 = arith.constant 0 : i32
    %c0_i32_1 = arith.constant 0 : i32
    return %c0_i32, %c0_i32_0 : i32, i32
  }
  func.func @transform_11(%arg0: i32) -> (i32, i32) {
    %c0_i32 = arith.constant 0 : i32
    %c0_i32_0 = arith.constant 0 : i32
    %c0_i32_1 = arith.constant 0 : i32
    return %c0_i32, %c0_i32_0 : i32, i32
  }
  func.func @transform_12(%arg0: i32) -> (i32, i32) {
    %c0_i32 = arith.constant 0 : i32
    %c0_i32_0 = arith.constant 0 : i32
    %c0_i32_1 = arith.constant 0 : i32
    return %c0_i32, %c0_i32_0 : i32, i32
  }
  func.func @transform_13(%arg0: i32) -> (i32, i32) {
    %c0_i32 = arith.constant 0 : i32
    %c0_i32_0 = arith.constant 0 : i32
    %c0_i32_1 = arith.constant 0 : i32
    return %c0_i32, %c0_i32_0 : i32, i32
  }
  func.func @transform_14(%arg0: i32) -> (i32, i32) {
    %c0_i32 = arith.constant 0 : i32
    %c0_i32_0 = arith.constant 0 : i32
    %c0_i32_1 = arith.constant 0 : i32
    return %c0_i32, %c0_i32_0 : i32, i32
  }
  func.func @transform_15(%arg0: i32) -> (i32, i32) {
    %c0_i32 = arith.constant 0 : i32
    %c0_i32_0 = arith.constant 0 : i32
    %c0_i32_1 = arith.constant 0 : i32
    return %c0_i32, %c0_i32_0 : i32, i32
  }
  func.func @transform_16(%arg0: i32) -> (i32, i32) {
    %c0_i32 = arith.constant 0 : i32
    %c0_i32_0 = arith.constant 0 : i32
    %c0_i32_1 = arith.constant 0 : i32
    return %c0_i32, %c0_i32_0 : i32, i32
  }
  func.func @transform_17(%arg0: i32) -> (i32, i32) {
    %c0_i32 = arith.constant 0 : i32
    %c0_i32_0 = arith.constant 0 : i32
    return %arg0, %c0_i32 : i32, i32
  }
}

</mosaic_0001>

<llo_original>
// kernel: tpu_custom_call.1
$region0: #{tpu_custom_call.1}
  #allocation0 [shape = 'u32[]', space=smem, size = 0x4, offset = 0x4, fixed_abs, tag = 'smem constant byte address 0x4 - core index']
  #allocation1 [shape = 'u32[144,128]{1,0:T(1,128)}', space=vmem, size = 0x12000, scoped, tag = 'internal scratch']
  %s0 = inlined_call_operand.hbm [shape: f32[16,32], index: 0, kind: input, shape index: {}]
  %s1 = inlined_call_operand.vmem [shape: f32[32,32], index: 1, kind: input, shape index: {}]
  %s2 = inlined_call_operand.vmem [shape: f32[32,32], index: 2, kind: input, shape index: {}]
  %s3 = inlined_call_operand.vmem [shape: f32[32,32], index: 3, kind: input, shape index: {}]
  %s4 = inlined_call_operand.vmem [shape: f32[1,32], index: 4, kind: input, shape index: {}]
  %s5 = inlined_call_operand.vmem [shape: f32[1,32], index: 5, kind: input, shape index: {}]
  %s6 = inlined_call_operand.vmem [shape: f32[1,32], index: 6, kind: input, shape index: {}]
  %s7 = inlined_call_operand.vmem [shape: f32[32,32], index: 7, kind: input, shape index: {}]
  %s8 = inlined_call_operand.vmem [shape: f32[1,32], index: 8, kind: input, shape index: {}]
  %s9 = inlined_call_operand.vmem [shape: f32[1,32], index: 9, kind: input, shape index: {}]
  %s10 = inlined_call_operand.vmem [shape: f32[1,32], index: 10, kind: input, shape index: {}]
  %s11 = inlined_call_operand.vmem [shape: f32[32,128], index: 11, kind: input, shape index: {}]
  %s12 = inlined_call_operand.vmem [shape: f32[1,128], index: 12, kind: input, shape index: {}]
  %s13 = inlined_call_operand.vmem [shape: f32[128,32], index: 13, kind: input, shape index: {}]
  %s14 = inlined_call_operand.vmem [shape: f32[1,32], index: 14, kind: input, shape index: {}]
  %s15 = inlined_call_operand.vmem [shape: f32[1,32], index: 15, kind: input, shape index: {}]
  %s16 = inlined_call_operand.vmem [shape: f32[1,32], index: 16, kind: input, shape index: {}]
  %s17 = inlined_call_operand.hbm [shape: f32[16,32], index: 17, kind: output, shape index: {}]
  %s18 = sld [smem:[#allocation0]]
  $region105: #{tpu_custom_call.1} parent=0
    _
  %s20 = ssub.s32 1, %s18
  %s21 = scalar_select 0, %s20, %s18
  $region1: #{tpu_custom_call.1} parent=0
    #allocation2 [shape = 'u8[8192]{0}', space=vmem, size = 0x2000, scoped, tag = 'input window, operand 0']
    #allocation3 [shape = 's32[2]{0}', space=sflag, size = 0x8, scoped, tag = 'scoped memory for tpu_custom_call.1']
    #allocation4 [shape = 's32[2]{0}', space=sflag, size = 0x8, scoped, tag = 'scoped memory for tpu_custom_call.1']
    #allocation5 [shape = 'u8[8192]{0}', space=vmem, size = 0x2000, scoped, tag = 'output window, operand 0']
    %22 = vsyncpa [#allocation3], 0
    %s23 = scalar_lea.sflag [#allocation3], 1
    %24 = vsyncpa %s23, 0
    %25 = vsyncpa [#allocation4], 0
    %s26 = scalar_lea.sflag [#allocation4], 1
    %27 = vsyncpa %s26, 0
    loop: start=0, step=1, limit=4
    $region2: #{tpu_custom_call.1} parent=1 // loop_pre_header
      _
    $region3: #{tpu_custom_call.1} parent=1 // loop_header
      %s29 = sphi 0, %s33
      %p30 = scmp.ge.s32.totalorder %s29, 4
      %s39 = sphi 0, %s41
      %s42 = sphi 0, %s39
      %s43 = sphi 0, %s42
      %s59 = sphi 0, %s43
      %s63 = sphi 0, %s63
      %s65 = sphi 0, %s63
      %s66 = sphi 0, %s65
      %s80 = sphi 0, %s66
      %s84 = sphi 0, %s84
      %s86 = sphi 0, %s84
      %s87 = sphi 0, %s86
      %s101 = sphi 0, %s87
      %s105 = sphi 0, %s105
      %s107 = sphi 0, %s105
      %s108 = sphi 0, %s107
      %s122 = sphi 0, %s108
      %s126 = sphi 0, %s126
      %s128 = sphi 0, %s126
      %s129 = sphi 0, %s128
      %s143 = sphi 0, %s129
      %s147 = sphi 0, %s147
      %s149 = sphi 0, %s147
      %s150 = sphi 0, %s149
      %s164 = sphi 0, %s150
      %s168 = sphi 0, %s168
      %s170 = sphi 0, %s168
      %s171 = sphi 0, %s170
      %s185 = sphi 0, %s171
      %s189 = sphi 0, %s189
      %s191 = sphi 0, %s189
      %s192 = sphi 0, %s191
      %s206 = sphi 0, %s192
      %s210 = sphi 0, %s210
      %s212 = sphi 0, %s210
      %s213 = sphi 0, %s212
      %s227 = sphi 0, %s213
      %s231 = sphi 0, %s231
      %s233 = sphi 0, %s231
      %s234 = sphi 0, %s233
      %s248 = sphi 0, %s234
      %s252 = sphi 0, %s252
      %s254 = sphi 0, %s252
      %s255 = sphi 0, %s254
      %s269 = sphi 0, %s255
      %s273 = sphi 0, %s273
      %s275 = sphi 0, %s273
      %s276 = sphi 0, %s275
      %s290 = sphi 0, %s276
      %s294 = sphi 0, %s294
      %s296 = sphi 0, %s294
      %s297 = sphi 0, %s296
      %s311 = sphi 0, %s297
      %s315 = sphi 0, %s315
      %s317 = sphi 0, %s315
      %s318 = sphi 0, %s317
      %s332 = sphi 0, %s318
      %s336 = sphi 0, %s336
      %s338 = sphi 0, %s336
      %s339 = sphi 0, %s338
      %s353 = sphi 0, %s339
      %s357 = sphi 0, %s357
      %s359 = sphi 0, %s357
      %s360 = sphi 0, %s359
      %s374 = sphi 0, %s360
      %s378 = sphi 0, %s378
      %s380 = sphi 0, %s378
      %s381 = sphi 0, %s380
      %s395 = sphi 0, %s381
      %s401 = sphi 0, %s403
      %s404 = sphi 0, %s401
      %s405 = sphi 0, %s404
      %s421 = sphi 0, %s405
    $region4: #{tpu_custom_call.1} parent=1 // loop_header_branch
      %32 = sbr.rel (%p30) target = $region8
    $region5: #{tpu_custom_call.1} parent=1 // loop_body
      %s34 = ssub.s32 %s29, 1
      %s35 = ssub.s32 %s29, 2
      %s36 = sadd.s32 %s29, 1
      %s37 = ssub.s32 %s29, %s36
      %p38 = scmp.eq.s32.totalorder %s37, 0
      %s40 = sadd.s32 %s39, 1
      %s41 = scalar_select %p38, %s39, %s40
      %p44 = pneg %p38
      %p45 = scmp.eq.s32.totalorder %s29, 1
      %p46 = por %p44, %p45
      %p47 = scmp.ne.s32.totalorder %s39, %s42
      %p48 = scmp.eq.s32.totalorder %s29, 0
      %p49 = por %p47, %p48
      %p50 = scmp.ne.s32.totalorder %s39, %s42
      %p51 = scmp.eq.s32.totalorder %s34, 1
      %p52 = por %p50, %p51
      %p53 = scmp.ne.s32.totalorder %s42, %s43
      %p54 = scmp.eq.s32.totalorder %s34, 0
      %p55 = por %p53, %p54
      %p56 = scmp.ne.s32.totalorder %s42, %s43
      %p57 = scmp.eq.s32.totalorder %s35, 1
      %p58 = por %p56, %p57
      %p60 = scmp.ne.s32.totalorder %s43, %s59
      %p61 = scmp.eq.s32.totalorder %s35, 0
      %p62 = por %p60, %p61
      %s64 = sadd.s32 %s63, 1
      %p67 = scmp.eq.s32.totalorder %s29, 1
      %p68 = scmp.ne.s32.totalorder %s63, %s65
      %p69 = scmp.eq.s32.totalorder %s29, 0
      %p70 = por %p68, %p69
      %p71 = scmp.ne.s32.totalorder %s63, %s65
      %p72 = scmp.eq.s32.totalorder %s34, 1
      %p73 = por %p71, %p72
      %p74 = scmp.ne.s32.totalorder %s65, %s66
      %p75 = scmp.eq.s32.totalorder %s34, 0
      %p76 = por %p74, %p75
      %p77 = scmp.ne.s32.totalorder %s65, %s66
      %p78 = scmp.eq.s32.totalorder %s35, 1
      %p79 = por %p77, %p78
      %p81 = scmp.ne.s32.totalorder %s66, %s80
      %p82 = scmp.eq.s32.totalorder %s35, 0
      %p83 = por %p81, %p82
      %s85 = sadd.s32 %s84, 1
      %p88 = scmp.eq.s32.totalorder %s29, 1
      %p89 = scmp.ne.s32.totalorder %s84, %s86
      %p90 = scmp.eq.s32.totalorder %s29, 0
      %p91 = por %p89, %p90
      %p92 = scmp.ne.s32.totalorder %s84, %s86
      %p93 = scmp.eq.s32.totalorder %s34, 1
      %p94 = por %p92, %p93
      %p95 = scmp.ne.s32.totalorder %s86, %s87
      %p96 = scmp.eq.s32.totalorder %s34, 0
      %p97 = por %p95, %p96
      %p98 = scmp.ne.s32.totalorder %s86, %s87
      %p99 = scmp.eq.s32.totalorder %s35, 1
      %p100 = por %p98, %p99
      %p102 = scmp.ne.s32.totalorder %s87, %s101
      %p103 = scmp.eq.s32.totalorder %s35, 0
      %p104 = por %p102, %p103
      %s106 = sadd.s32 %s105, 1
      %p109 = scmp.eq.s32.totalorder %s29, 1
      %p110 = scmp.ne.s32.totalorder %s105, %s107
      %p111 = scmp.eq.s32.totalorder %s29, 0
      %p112 = por %p110, %p111
      %p113 = scmp.ne.s32.totalorder %s105, %s107
      %p114 = scmp.eq.s32.totalorder %s34, 1
      %p115 = por %p113, %p114
      %p116 = scmp.ne.s32.totalorder %s107, %s108
      %p117 = scmp.eq.s32.totalorder %s34, 0
      %p118 = por %p116, %p117
      %p119 = scmp.ne.s32.totalorder %s107, %s108
      %p120 = scmp.eq.s32.totalorder %s35, 1
      %p121 = por %p119, %p120
      %p123 = scmp.ne.s32.totalorder %s108, %s122
      %p124 = scmp.eq.s32.totalorder %s35, 0
      %p125 = por %p123, %p124
      %s127 = sadd.s32 %s126, 1
      %p130 = scmp.eq.s32.totalorder %s29, 1
      %p131 = scmp.ne.s32.totalorder %s126, %s128
      %p132 = scmp.eq.s32.totalorder %s29, 0
      %p133 = por %p131, %p132
      %p134 = scmp.ne.s32.totalorder %s126, %s128
      %p135 = scmp.eq.s32.totalorder %s34, 1
      %p136 = por %p134, %p135
      %p137 = scmp.ne.s32.totalorder %s128, %s129
      %p138 = scmp.eq.s32.totalorder %s34, 0
      %p139 = por %p137, %p138
      %p140 = scmp.ne.s32.totalorder %s128, %s129
      %p141 = scmp.eq.s32.totalorder %s35, 1
      %p142 = por %p140, %p141
      %p144 = scmp.ne.s32.totalorder %s129, %s143
      %p145 = scmp.eq.s32.totalorder %s35, 0
      %p146 = por %p144, %p145
      %s148 = sadd.s32 %s147, 1
      %p151 = scmp.eq.s32.totalorder %s29, 1
      %p152 = scmp.ne.s32.totalorder %s147, %s149
      %p153 = scmp.eq.s32.totalorder %s29, 0
      %p154 = por %p152, %p153
      %p155 = scmp.ne.s32.totalorder %s147, %s149
      %p156 = scmp.eq.s32.totalorder %s34, 1
      %p157 = por %p155, %p156
      %p158 = scmp.ne.s32.totalorder %s149, %s150
      %p159 = scmp.eq.s32.totalorder %s34, 0
      %p160 = por %p158, %p159
      %p161 = scmp.ne.s32.totalorder %s149, %s150
      %p162 = scmp.eq.s32.totalorder %s35, 1
      %p163 = por %p161, %p162
      %p165 = scmp.ne.s32.totalorder %s150, %s164
      %p166 = scmp.eq.s32.totalorder %s35, 0
      %p167 = por %p165, %p166
      %s169 = sadd.s32 %s168, 1
      %p172 = scmp.eq.s32.totalorder %s29, 1
      %p173 = scmp.ne.s32.totalorder %s168, %s170
      %p174 = scmp.eq.s32.totalorder %s29, 0
      %p175 = por %p173, %p174
      %p176 = scmp.ne.s32.totalorder %s168, %s170
      %p177 = scmp.eq.s32.totalorder %s34, 1
      %p178 = por %p176, %p177
      %p179 = scmp.ne.s32.totalorder %s170, %s171
      %p180 = scmp.eq.s32.totalorder %s34, 0
      %p181 = por %p179, %p180
      %p182 = scmp.ne.s32.totalorder %s170, %s171
      %p183 = scmp.eq.s32.totalorder %s35, 1
      %p184 = por %p182, %p183
      %p186 = scmp.ne.s32.totalorder %s171, %s185
      %p187 = scmp.eq.s32.totalorder %s35, 0
      %p188 = por %p186, %p187
      %s190 = sadd.s32 %s189, 1
      %p193 = scmp.eq.s32.totalorder %s29, 1
      %p194 = scmp.ne.s32.totalorder %s189, %s191
      %p195 = scmp.eq.s32.totalorder %s29, 0
      %p196 = por %p194, %p195
      %p197 = scmp.ne.s32.totalorder %s189, %s191
      %p198 = scmp.eq.s32.totalorder %s34, 1
      %p199 = por %p197, %p198
      %p200 = scmp.ne.s32.totalorder %s191, %s192
      %p201 = scmp.eq.s32.totalorder %s34, 0
      %p202 = por %p200, %p201
      %p203 = scmp.ne.s32.totalorder %s191, %s192
      %p204 = scmp.eq.s32.totalorder %s35, 1
      %p205 = por %p203, %p204
      %p207 = scmp.ne.s32.totalorder %s192, %s206
      %p208 = scmp.eq.s32.totalorder %s35, 0
      %p209 = por %p207, %p208
      %s211 = sadd.s32 %s210, 1
      %p214 = scmp.eq.s32.totalorder %s29, 1
      %p215 = scmp.ne.s32.totalorder %s210, %s212
      %p216 = scmp.eq.s32.totalorder %s29, 0
      %p217 = por %p215, %p216
      %p218 = scmp.ne.s32.totalorder %s210, %s212
      %p219 = scmp.eq.s32.totalorder %s34, 1
      %p220 = por %p218, %p219
      %p221 = scmp.ne.s32.totalorder %s212, %s213
      %p222 = scmp.eq.s32.totalorder %s34, 0
      %p223 = por %p221, %p222
      %p224 = scmp.ne.s32.totalorder %s212, %s213
      %p225 = scmp.eq.s32.totalorder %s35, 1
      %p226 = por %p224, %p225
      %p228 = scmp.ne.s32.totalorder %s213, %s227
      %p229 = scmp.eq.s32.totalorder %s35, 0
      %p230 = por %p228, %p229
      %s232 = sadd.s32 %s231, 1
      %p235 = scmp.eq.s32.totalorder %s29, 1
      %p236 = scmp.ne.s32.totalorder %s231, %s233
      %p237 = scmp.eq.s32.totalorder %s29, 0
      %p238 = por %p236, %p237
      %p239 = scmp.ne.s32.totalorder %s231, %s233
      %p240 = scmp.eq.s32.totalorder %s34, 1
      %p241 = por %p239, %p240
      %p242 = scmp.ne.s32.totalorder %s233, %s234
      %p243 = scmp.eq.s32.totalorder %s34, 0
      %p244 = por %p242, %p243
      %p245 = scmp.ne.s32.totalorder %s233, %s234
      %p246 = scmp.eq.s32.totalorder %s35, 1
      %p247 = por %p245, %p246
      %p249 = scmp.ne.s32.totalorder %s234, %s248
      %p250 = scmp.eq.s32.totalorder %s35, 0
      %p251 = por %p249, %p250
      %s253 = sadd.s32 %s252, 1
      %p256 = scmp.eq.s32.totalorder %s29, 1
      %p257 = scmp.ne.s32.totalorder %s252, %s254
      %p258 = scmp.eq.s32.totalorder %s29, 0
      %p259 = por %p257, %p258
      %p260 = scmp.ne.s32.totalorder %s252, %s254
      %p261 = scmp.eq.s32.totalorder %s34, 1
      %p262 = por %p260, %p261
      %p263 = scmp.ne.s32.totalorder %s254, %s255
      %p264 = scmp.eq.s32.totalorder %s34, 0
      %p265 = por %p263, %p264
      %p266 = scmp.ne.s32.totalorder %s254, %s255
      %p267 = scmp.eq.s32.totalorder %s35, 1
      %p268 = por %p266, %p267
      %p270 = scmp.ne.s32.totalorder %s255, %s269
      %p271 = scmp.eq.s32.totalorder %s35, 0
      %p272 = por %p270, %p271
      %s274 = sadd.s32 %s273, 1
      %p277 = scmp.eq.s32.totalorder %s29, 1
      %p278 = scmp.ne.s32.totalorder %s273, %s275
      %p279 = scmp.eq.s32.totalorder %s29, 0
      %p280 = por %p278, %p279
      %p281 = scmp.ne.s32.totalorder %s273, %s275
      %p282 = scmp.eq.s32.totalorder %s34, 1
      %p283 = por %p281, %p282
      %p284 = scmp.ne.s32.totalorder %s275, %s276
      %p285 = scmp.eq.s32.totalorder %s34, 0
      %p286 = por %p284, %p285
      %p287 = scmp.ne.s32.totalorder %s275, %s276
      %p288 = scmp.eq.s32.totalorder %s35, 1
      %p289 = por %p287, %p288
      %p291 = scmp.ne.s32.totalorder %s276, %s290
      %p292 = scmp.eq.s32.totalorder %s35, 0
      %p293 = por %p291, %p292
      %s295 = sadd.s32 %s294, 1
      %p298 = scmp.eq.s32.totalorder %s29, 1
      %p299 = scmp.ne.s32.totalorder %s294, %s296
      %p300 = scmp.eq.s32.totalorder %s29, 0
      %p301 = por %p299, %p300
      %p302 = scmp.ne.s32.totalorder %s294, %s296
      %p303 = scmp.eq.s32.totalorder %s34, 1
      %p304 = por %p302, %p303
      %p305 = scmp.ne.s32.totalorder %s296, %s297
      %p306 = scmp.eq.s32.totalorder %s34, 0
      %p307 = por %p305, %p306
      %p308 = scmp.ne.s32.totalorder %s296, %s297
      %p309 = scmp.eq.s32.totalorder %s35, 1
      %p310 = por %p308, %p309
      %p312 = scmp.ne.s32.totalorder %s297, %s311
      %p313 = scmp.eq.s32.totalorder %s35, 0
      %p314 = por %p312, %p313
      %s316 = sadd.s32 %s315, 1
      %p319 = scmp.eq.s32.totalorder %s29, 1
      %p320 = scmp.ne.s32.totalorder %s315, %s317
      %p321 = scmp.eq.s32.totalorder %s29, 0
      %p322 = por %p320, %p321
      %p323 = scmp.ne.s32.totalorder %s315, %s317
      %p324 = scmp.eq.s32.totalorder %s34, 1
      %p325 = por %p323, %p324
      %p326 = scmp.ne.s32.totalorder %s317, %s318
      %p327 = scmp.eq.s32.totalorder %s34, 0
      %p328 = por %p326, %p327
      %p329 = scmp.ne.s32.totalorder %s317, %s318
      %p330 = scmp.eq.s32.totalorder %s35, 1
      %p331 = por %p329, %p330
      %p333 = scmp.ne.s32.totalorder %s318, %s332
      %p334 = scmp.eq.s32.totalorder %s35, 0
      %p335 = por %p333, %p334
      %s337 = sadd.s32 %s336, 1
      %p340 = scmp.eq.s32.totalorder %s29, 1
      %p341 = scmp.ne.s32.totalorder %s336, %s338
      %p342 = scmp.eq.s32.totalorder %s29, 0
      %p343 = por %p341, %p342
      %p344 = scmp.ne.s32.totalorder %s336, %s338
      %p345 = scmp.eq.s32.totalorder %s34, 1
      %p346 = por %p344, %p345
      %p347 = scmp.ne.s32.totalorder %s338, %s339
      %p348 = scmp.eq.s32.totalorder %s34, 0
      %p349 = por %p347, %p348
      %p350 = scmp.ne.s32.totalorder %s338, %s339
      %p351 = scmp.eq.s32.totalorder %s35, 1
      %p352 = por %p350, %p351
      %p354 = scmp.ne.s32.totalorder %s339, %s353
      %p355 = scmp.eq.s32.totalorder %s35, 0
      %p356 = por %p354, %p355
      %s358 = sadd.s32 %s357, 1
      %p361 = scmp.eq.s32.totalorder %s29, 1
      %p362 = scmp.ne.s32.totalorder %s357, %s359
      %p363 = scmp.eq.s32.totalorder %s29, 0
      %p364 = por %p362, %p363
      %p365 = scmp.ne.s32.totalorder %s357, %s359
      %p366 = scmp.eq.s32.totalorder %s34, 1
      %p367 = por %p365, %p366
      %p368 = scmp.ne.s32.totalorder %s359, %s360
      %p369 = scmp.eq.s32.totalorder %s34, 0
      %p370 = por %p368, %p369
      %p371 = scmp.ne.s32.totalorder %s359, %s360
      %p372 = scmp.eq.s32.totalorder %s35, 1
      %p373 = por %p371, %p372
      %p375 = scmp.ne.s32.totalorder %s360, %s374
      %p376 = scmp.eq.s32.totalorder %s35, 0
      %p377 = por %p375, %p376
      %s379 = sadd.s32 %s378, 1
      %p382 = scmp.eq.s32.totalorder %s29, 1
      %p383 = scmp.ne.s32.totalorder %s378, %s380
      %p384 = scmp.eq.s32.totalorder %s29, 0
      %p385 = por %p383, %p384
      %p386 = scmp.ne.s32.totalorder %s378, %s380
      %p387 = scmp.eq.s32.totalorder %s34, 1
      %p388 = por %p386, %p387
      %p389 = scmp.ne.s32.totalorder %s380, %s381
      %p390 = scmp.eq.s32.totalorder %s34, 0
      %p391 = por %p389, %p390
      %p392 = scmp.ne.s32.totalorder %s380, %s381
      %p393 = scmp.eq.s32.totalorder %s35, 1
      %p394 = por %p392, %p393
      %p396 = scmp.ne.s32.totalorder %s381, %s395
      %p397 = scmp.eq.s32.totalorder %s35, 0
      %p398 = por %p396, %p397
      %s399 = ssub.s32 %s29, %s36
      %p400 = scmp.eq.s32.totalorder %s399, 0
      %s402 = sadd.s32 %s401, 1
      %s403 = scalar_select %p400, %s401, %s402
      %p406 = pneg %p400
      %p407 = scmp.eq.s32.totalorder %s29, 1
      %p408 = por %p406, %p407
      %p409 = scmp.ne.s32.totalorder %s401, %s404
      %p410 = scmp.eq.s32.totalorder %s29, 0
      %p411 = por %p409, %p410
      %p412 = scmp.ne.s32.totalorder %s401, %s404
      %p413 = scmp.eq.s32.totalorder %s34, 1
      %p414 = por %p412, %p413
      %p415 = scmp.ne.s32.totalorder %s404, %s405
      %p416 = scmp.eq.s32.totalorder %s34, 0
      %p417 = por %p415, %p416
      %p418 = scmp.ne.s32.totalorder %s404, %s405
      %p419 = scmp.eq.s32.totalorder %s35, 1
      %p420 = por %p418, %p419
      %p422 = scmp.ne.s32.totalorder %s405, %s421
      %p423 = scmp.eq.s32.totalorder %s35, 0
      %p424 = por %p422, %p423
      %p425 = scmp.le.s32.totalorder 1, %s29
      %p426 = scmp.lt.s32.totalorder %s29, 3
      %p427 = pnand %p425, %p426
      %p428 = pneg %p427
      // Predicated region
      $region9: #{tpu_custom_call.1} parent=5 // pred_check
        _
      $region10: #{tpu_custom_call.1} parent=5 // pred_check_branch
        %430 = sbr.rel (%p427) target = $region12
      $region11: #{tpu_custom_call.1} parent=5 // pred_region
        %s431 = ssub.s32 %s29, 1
        // Predicated region
        $region13: #{tpu_custom_call.1} parent=11 // pred_check
          %p432 = pneg %p76
        $region14: #{tpu_custom_call.1} parent=11 // pred_check_branch
          %434 = sbr.rel (%p432) target = $region16
        $region15: #{tpu_custom_call.1} parent=11 // pred_region
          _
        $region16: #{tpu_custom_call.1} parent=11 // pred_fallthru
          _
        // Predicated region
        $region17: #{tpu_custom_call.1} parent=11 // pred_check
          %p435 = pneg %p97
        $region18: #{tpu_custom_call.1} parent=11 // pred_check_branch
          %437 = sbr.rel (%p435) target = $region20
        $region19: #{tpu_custom_call.1} parent=11 // pred_region
          _
        $region20: #{tpu_custom_call.1} parent=11 // pred_fallthru
          _
        // Predicated region
        $region21: #{tpu_custom_call.1} parent=11 // pred_check
          %p438 = pneg %p118
        $region22: #{tpu_custom_call.1} parent=11 // pred_check_branch
          %440 = sbr.rel (%p438) target = $region24
        $region23: #{tpu_custom_call.1} parent=11 // pred_region
          _
        $region24: #{tpu_custom_call.1} parent=11 // pred_fallthru
          _
        // Predicated region
        $region25: #{tpu_custom_call.1} parent=11 // pred_check
          %p441 = pneg %p139
        $region26: #{tpu_custom_call.1} parent=11 // pred_check_branch
          %443 = sbr.rel (%p441) target = $region28
        $region27: #{tpu_custom_call.1} parent=11 // pred_region
          _
        $region28: #{tpu_custom_call.1} parent=11 // pred_fallthru
          _
        // Predicated region
        $region29: #{tpu_custom_call.1} parent=11 // pred_check
          %p444 = pneg %p160
        $region30: #{tpu_custom_call.1} parent=11 // pred_check_branch
          %446 = sbr.rel (%p444) target = $region32
        $region31: #{tpu_custom_call.1} parent=11 // pred_region
          _
        $region32: #{tpu_custom_call.1} parent=11 // pred_fallthru
          _
        // Predicated region
        $region33: #{tpu_custom_call.1} parent=11 // pred_check
          %p447 = pneg %p181
        $region34: #{tpu_custom_call.1} parent=11 // pred_check_branch
          %449 = sbr.rel (%p447) target = $region36
        $region35: #{tpu_custom_call.1} parent=11 // pred_region
          _
        $region36: #{tpu_custom_call.1} parent=11 // pred_fallthru
          _
        // Predicated region
        $region37: #{tpu_custom_call.1} parent=11 // pred_check
          %p450 = pneg %p202
        $region38: #{tpu_custom_call.1} parent=11 // pred_check_branch
          %452 = sbr.rel (%p450) target = $region40
        $region39: #{tpu_custom_call.1} parent=11 // pred_region
          _
        $region40: #{tpu_custom_call.1} parent=11 // pred_fallthru
          _
        // Predicated region
        $region41: #{tpu_custom_call.1} parent=11 // pred_check
          %p453 = pneg %p223
        $region42: #{tpu_custom_call.1} parent=11 // pred_check_branch
          %455 = sbr.rel (%p453) target = $region44
        $region43: #{tpu_custom_call.1} parent=11 // pred_region
          _
        $region44: #{tpu_custom_call.1} parent=11 // pred_fallthru
          _
        // Predicated region
        $region45: #{tpu_custom_call.1} parent=11 // pred_check
          %p456 = pneg %p244
        $region46: #{tpu_custom_call.1} parent=11 // pred_check_branch
          %458 = sbr.rel (%p456) target = $region48
        $region47: #{tpu_custom_call.1} parent=11 // pred_region
          _
        $region48: #{tpu_custom_call.1} parent=11 // pred_fallthru
          _
        // Predicated region
        $region49: #{tpu_custom_call.1} parent=11 // pred_check
          %p459 = pneg %p265
        $region50: #{tpu_custom_call.1} parent=11 // pred_check_branch
          %461 = sbr.rel (%p459) target = $region52
        $region51: #{tpu_custom_call.1} parent=11 // pred_region
          _
        $region52: #{tpu_custom_call.1} parent=11 // pred_fallthru
          _
        // Predicated region
        $region53: #{tpu_custom_call.1} parent=11 // pred_check
          %p462 = pneg %p286
        $region54: #{tpu_custom_call.1} parent=11 // pred_check_branch
          %464 = sbr.rel (%p462) target = $region56
        $region55: #{tpu_custom_call.1} parent=11 // pred_region
          _
        $region56: #{tpu_custom_call.1} parent=11 // pred_fallthru
          _
        // Predicated region
        $region57: #{tpu_custom_call.1} parent=11 // pred_check
          %p465 = pneg %p307
        $region58: #{tpu_custom_call.1} parent=11 // pred_check_branch
          %467 = sbr.rel (%p465) target = $region60
        $region59: #{tpu_custom_call.1} parent=11 // pred_region
          _
        $region60: #{tpu_custom_call.1} parent=11 // pred_fallthru
          _
        // Predicated region
        $region61: #{tpu_custom_call.1} parent=11 // pred_check
          %p468 = pneg %p328
        $region62: #{tpu_custom_call.1} parent=11 // pred_check_branch
          %470 = sbr.rel (%p468) target = $region64
        $region63: #{tpu_custom_call.1} parent=11 // pred_region
          _
        $region64: #{tpu_custom_call.1} parent=11 // pred_fallthru
          _
        // Predicated region
        $region65: #{tpu_custom_call.1} parent=11 // pred_check
          %p471 = pneg %p349
        $region66: #{tpu_custom_call.1} parent=11 // pred_check_branch
          %473 = sbr.rel (%p471) target = $region68
        $region67: #{tpu_custom_call.1} parent=11 // pred_region
          _
        $region68: #{tpu_custom_call.1} parent=11 // pred_fallthru
          _
        // Predicated region
        $region69: #{tpu_custom_call.1} parent=11 // pred_check
          %p474 = pneg %p370
        $region70: #{tpu_custom_call.1} parent=11 // pred_check_branch
          %476 = sbr.rel (%p474) target = $region72
        $region71: #{tpu_custom_call.1} parent=11 // pred_region
          _
        $region72: #{tpu_custom_call.1} parent=11 // pred_fallthru
          _
        // Predicated region
        $region73: #{tpu_custom_call.1} parent=11 // pred_check
          %p477 = pneg %p391
        $region74: #{tpu_custom_call.1} parent=11 // pred_check_branch
          %479 = sbr.rel (%p477) target = $region76
        $region75: #{tpu_custom_call.1} parent=11 // pred_region
          _
        $region76: #{tpu_custom_call.1} parent=11 // pred_fallthru
          _
      $region12: #{tpu_custom_call.1} parent=5 // pred_fallthru
        _
      %p480 = scmp.lt.s32.totalorder %s29, 2
      // Predicated region
      $region77: #{tpu_custom_call.1} parent=5 // pred_check
        %p481 = pneg %p480
      $region78: #{tpu_custom_call.1} parent=5 // pred_check_branch
        %483 = sbr.rel (%p481) target = $region80
      $region79: #{tpu_custom_call.1} parent=5 // pred_region
        // Predicated region
        $region81: #{tpu_custom_call.1} parent=79 // pred_check
          %p484 = pneg %p49
        $region82: #{tpu_custom_call.1} parent=79 // pred_check_branch
          %486 = sbr.rel (%p484) target = $region84
        $region83: #{tpu_custom_call.1} parent=79 // pred_region
          %s487 = sand.u32 %s39, 1
          %s488 = scalar_lea.sflag [#allocation3], %s487
          %s489 = sand.u32 %s39, 1
          %s490 = smul.addr %s489, 8
          %s491 = scalar_lea.vmem [#allocation2], %s490
          %s493 = ssub.s32 128, 128
          %494 = vsyncadd %s488, %s493
          %s495 = smul.addr %s29, 128
          %s496 = scalar_lea.hbm %s0, %s495
          %s498 = sshll.u32 %s491, 4
          %s499 = int_to_ptr.vmem [resolvable:$true] %s498
          %501 = dma.hbm_to_vmem [thread:$0]  %s496, 128, %s499, %s488
        $region84: #{tpu_custom_call.1} parent=79 // pred_fallthru
          _
      $region80: #{tpu_custom_call.1} parent=5 // pred_fallthru
        _
      %p502 = scmp.le.s32.totalorder 1, %s29
      %p503 = scmp.lt.s32.totalorder %s29, 3
      %p504 = pnand %p502, %p503
      %p505 = pneg %p504
      // Predicated region
      $region85: #{tpu_custom_call.1} parent=5 // pred_check
        _
      $region86: #{tpu_custom_call.1} parent=5 // pred_check_branch
        %507 = sbr.rel (%p504) target = $region88
      $region87: #{tpu_custom_call.1} parent=5 // pred_region
        %s508 = ssub.s32 %s29, 1
        %s509 = sand.u32 %s42, 1
        %s510 = scalar_lea.sflag [#allocation3], %s509
        %s511 = sand.u32 %s42, 1
        %s512 = smul.addr %s511, 8
        %s513 = scalar_lea.vmem [#allocation2], %s512
        // Predicated region
        $region89: #{tpu_custom_call.1} parent=87 // pred_check
          %p514 = pneg %p55
        $region90: #{tpu_custom_call.1} parent=87 // pred_check_branch
          %516 = sbr.rel (%p514) target = $region92
        $region91: #{tpu_custom_call.1} parent=87 // pred_region
          %517 = dma.done %s510, 128
        $region92: #{tpu_custom_call.1} parent=87 // pred_fallthru
          _
        %s518 = sand.u32 %s42, 1
        %s519 = scalar_lea.sflag [#allocation3], %s518
        %s520 = sand.u32 %s42, 1
        %s521 = smul.addr %s520, 8
        %s522 = scalar_lea.vmem [#allocation2], %s521
        %p523 = pneg %p55
        %p524 = pneg %p52
        %p525 = pneg %p76
        %p526 = pneg %p73
        %p527 = pneg %p97
        %p528 = pneg %p94
        %p529 = pneg %p118
        %p530 = pneg %p115
        %p531 = pneg %p139
        %p532 = pneg %p136
        %p533 = pneg %p160
        %p534 = pneg %p157
        %p535 = pneg %p181
        %p536 = pneg %p178
        %p537 = pneg %p202
        %p538 = pneg %p199
        %p539 = pneg %p223
        %p540 = pneg %p220
        %p541 = pneg %p244
        %p542 = pneg %p241
        %p543 = pneg %p265
        %p544 = pneg %p262
        %p545 = pneg %p286
        %p546 = pneg %p283
        %p547 = pneg %p307
        %p548 = pneg %p304
        %p549 = pneg %p328
        %p550 = pneg %p325
        %p551 = pneg %p349
        %p552 = pneg %p346
        %p553 = pneg %p370
        %p554 = pneg %p367
        %p555 = pneg %p391
        %p556 = pneg %p388
        %p557 = pneg %p417
        %p558 = pneg %p414
        %s559 = sand.u32 %s404, 1
        %s560 = scalar_lea.sflag [#allocation4], %s559
        %s561 = sand.u32 %s404, 1
        %s562 = smul.addr %s561, 8
        %s563 = scalar_lea.vmem [#allocation5], %s562
        %v564 = vld [vmem:[%s513] sm:$0xff]
        %v565 = vld [vmem:[%s1] sm:$0xff]
        %v566 = vld [vmem:[%s1 + $0x8] sm:$0xff]
        %v567 = vld [vmem:[%s1 + $0x10] sm:$0xff]
        %v568 = vld [vmem:[%s1 + $0x18] sm:$0xff]
        %v569 = vld [vmem:[%s4] sm:$0x1]
        %v571 = vlaneseq
        %v572 = vshrl.u32 %v571, 7
        %v573 = vsub.s32 0, %v572
        %v574 = vrot.slane %v569, %v573
        %vm576 = vcmask 261120
        %v578 = vsel %vm576, %v564, 0
        %580 = vmatprep.subr.mxu0 0.0
        %581 = vmatpush1.msra.mxu0 0.0
        %582 = vmatprep.subr.mxu0 0.0
        %583 = vmatpush1.msra.mxu0 0.0
        %584 = vmatprep.subr.mxu0 0.0
        %585 = vmatpush1.msra.mxu0 0.0
        %586 = vmatprep.subr.mxu0 0.0
        %587 = vmatpush1.msra.mxu0 0.0
        %588 = vmatprep.subr.mxu0 0.0
        %589 = vmatpush1.msra.mxu0 0.0
        %590 = vmatprep.subr.mxu0 0.0
        %591 = vmatpush1.msra.mxu0 0.0
        %592 = vmatprep.subr.mxu0 0.0
        %593 = vmatpush1.msra.mxu0 0.0
        %594 = vmatprep.subr.mxu0 0.0
        %595 = vmatpush1.msra.mxu0 0.0
        %596 = vmatprep.subr.mxu0 0.0
        %597 = vmatpush1.msra.mxu0 0.0
        %598 = vmatprep.subr.mxu0 0.0
        %599 = vmatpush1.msra.mxu0 0.0
        %600 = vmatprep.subr.mxu0 0.0
        %601 = vmatpush1.msra.mxu0 0.0
        %602 = vmatprep.subr.mxu0 0.0
        %603 = vmatpush1.msra.mxu0 0.0
        %604 = vmatprep.subr.mxu0 0.0
        %605 = vmatpush1.msra.mxu0 %v568
        %606 = vmatprep.subr.mxu0 0.0
        %607 = vmatpush1.msra.mxu0 %v567
        %608 = vmatprep.subr.mxu0 0.0
        %609 = vmatpush1.msra.mxu0 %v566
        %610 = vmatprep.subr.mxu0 0.0
        %611 = vmatpush1.msra.mxu0 %v565
        %612 = vmatprep.subr.mxu0 0.0
        %613 = vmatpush2.msra.mxu0 0.0
        %614 = vmatprep.subr.mxu0 0.0
        %615 = vmatpush2.msra.mxu0 0.0
        %616 = vmatprep.subr.mxu0 0.0
        %617 = vmatpush2.msra.mxu0 0.0
        %618 = vmatprep.subr.mxu0 0.0
        %619 = vmatpush2.msra.mxu0 0.0
        %620 = vmatprep.subr.mxu0 0.0
        %621 = vmatpush2.msra.mxu0 0.0
        %622 = vmatprep.subr.mxu0 0.0
        %623 = vmatpush2.msra.mxu0 0.0
        %624 = vmatprep.subr.mxu0 0.0
        %625 = vmatpush2.msra.mxu0 0.0
        %626 = vmatprep.subr.mxu0 0.0
        %627 = vmatpush2.msra.mxu0 0.0
        %628 = vmatprep.subr.mxu0 0.0
        %629 = vmatpush2.msra.mxu0 0.0
        %630 = vmatprep.subr.mxu0 0.0
        %631 = vmatpush2.msra.mxu0 0.0
        %632 = vmatprep.subr.mxu0 0.0
        %633 = vmatpush2.msra.mxu0 0.0
        %634 = vmatprep.subr.mxu0 0.0
        %635 = vmatpush2.msra.mxu0 0.0
        %636 = vmatprep.subr.mxu0 0.0
        %637 = vmatpush2.msra.mxu0 0.0
        %638 = vmatprep.subr.mxu0 0.0
        %639 = vmatpush2.msra.mxu0 0.0
        %640 = vmatprep.subr.mxu0 0.0
        %641 = vmatpush2.msra.mxu0 0.0
        %642 = vmatprep.subr.mxu0 0.0
        %643 = vmatpush2.msra.mxu0 0.0
        %644 = vmatprep.mubr.f32.mxu0 0.0
        %645 = vmatmul.mubr.f32.gmra.mxu0 %v578
        %v646 = vpop.f32.mrf.mxu0
        %v647 = vadd.f32 %v574, %v646
        %v648 = vpop.f32.mrf.mxu0
        %649 = vdwg.mxu0
        %v650 = vmul.f32 %v647, 0.35355338
        %v651 = vld [vmem:[%s2] sm:$0xff]
        %v652 = vld [vmem:[%s2 + $0x8] sm:$0xff]
        %v653 = vld [vmem:[%s2 + $0x10] sm:$0xff]
        %v654 = vld [vmem:[%s2 + $0x18] sm:$0xff]
        %v655 = vld [vmem:[%s5] sm:$0x1]
        %v657 = vlaneseq
        %v658 = vshrl.u32 %v657, 7
        %v659 = vsub.s32 0, %v658
        %v660 = vrot.slane %v655, %v659
        %662 = vmatprep.subr.mxu0 0.0
        %663 = vmatpush1.msra.mxu0 0.0
        %664 = vmatprep.subr.mxu0 0.0
        %665 = vmatpush1.msra.mxu0 0.0
        %666 = vmatprep.subr.mxu0 0.0
        %667 = vmatpush1.msra.mxu0 0.0
        %668 = vmatprep.subr.mxu0 0.0
        %669 = vmatpush1.msra.mxu0 0.0
        %670 = vmatprep.subr.mxu0 0.0
        %671 = vmatpush1.msra.mxu0 0.0
        %672 = vmatprep.subr.mxu0 0.0
        %673 = vmatpush1.msra.mxu0 0.0
        %674 = vmatprep.subr.mxu0 0.0
        %675 = vmatpush1.msra.mxu0 0.0
        %676 = vmatprep.subr.mxu0 0.0
        %677 = vmatpush1.msra.mxu0 0.0
        %678 = vmatprep.subr.mxu0 0.0
        %679 = vmatpush1.msra.mxu0 0.0
        %680 = vmatprep.subr.mxu0 0.0
        %681 = vmatpush1.msra.mxu0 0.0
        %682 = vmatprep.subr.mxu0 0.0
        %683 = vmatpush1.msra.mxu0 0.0
        %684 = vmatprep.subr.mxu0 0.0
        %685 = vmatpush1.msra.mxu0 0.0
        %686 = vmatprep.subr.mxu0 0.0
        %687 = vmatpush1.msra.mxu0 %v654
        %688 = vmatprep.subr.mxu0 0.0
        %689 = vmatpush1.msra.mxu0 %v653
        %690 = vmatprep.subr.mxu0 0.0
        %691 = vmatpush1.msra.mxu0 %v652
        %692 = vmatprep.subr.mxu0 0.0
        %693 = vmatpush1.msra.mxu0 %v651
        %694 = vmatprep.subr.mxu0 0.0
        %695 = vmatpush2.msra.mxu0 0.0
        %696 = vmatprep.subr.mxu0 0.0
        %697 = vmatpush2.msra.mxu0 0.0
        %698 = vmatprep.subr.mxu0 0.0
        %699 = vmatpush2.msra.mxu0 0.0
        %700 = vmatprep.subr.mxu0 0.0
        %701 = vmatpush2.msra.mxu0 0.0
        %702 = vmatprep.subr.mxu0 0.0
        %703 = vmatpush2.msra.mxu0 0.0
        %704 = vmatprep.subr.mxu0 0.0
        %705 = vmatpush2.msra.mxu0 0.0
        %706 = vmatprep.subr.mxu0 0.0
        %707 = vmatpush2.msra.mxu0 0.0
        %708 = vmatprep.subr.mxu0 0.0
        %709 = vmatpush2.msra.mxu0 0.0
        %710 = vmatprep.subr.mxu0 0.0
        %711 = vmatpush2.msra.mxu0 0.0
        %712 = vmatprep.subr.mxu0 0.0
        %713 = vmatpush2.msra.mxu0 0.0
        %714 = vmatprep.subr.mxu0 0.0
        %715 = vmatpush2.msra.mxu0 0.0
        %716 = vmatprep.subr.mxu0 0.0
        %717 = vmatpush2.msra.mxu0 0.0
        %718 = vmatprep.subr.mxu0 0.0
        %719 = vmatpush2.msra.mxu0 0.0
        %720 = vmatprep.subr.mxu0 0.0
        %721 = vmatpush2.msra.mxu0 0.0
        %722 = vmatprep.subr.mxu0 0.0
        %723 = vmatpush2.msra.mxu0 0.0
        %724 = vmatprep.subr.mxu0 0.0
        %725 = vmatpush2.msra.mxu0 0.0
        %726 = vmatprep.mubr.f32.mxu0 0.0
        %727 = vmatmul.mubr.f32.gmra.mxu0 %v578
        %v728 = vpop.f32.mrf.mxu0
        %v729 = vadd.f32 %v660, %v728
        %v730 = vpop.f32.mrf.mxu0
        %731 = vdwg.mxu0
        %v732 = vld [vmem:[%s3] sm:$0xff]
        %v733 = vld [vmem:[%s3 + $0x8] sm:$0xff]
        %v734 = vld [vmem:[%s3 + $0x10] sm:$0xff]
        %v735 = vld [vmem:[%s3 + $0x18] sm:$0xff]
        %v736 = vld [vmem:[%s6] sm:$0x1]
        %v738 = vlaneseq
        %v739 = vshrl.u32 %v738, 7
        %v740 = vsub.s32 0, %v739
        %v741 = vrot.slane %v736, %v740
        %743 = vmatprep.subr.mxu0 0.0
        %744 = vmatpush1.msra.mxu0 0.0
        %745 = vmatprep.subr.mxu0 0.0
        %746 = vmatpush1.msra.mxu0 0.0
        %747 = vmatprep.subr.mxu0 0.0
        %748 = vmatpush1.msra.mxu0 0.0
        %749 = vmatprep.subr.mxu0 0.0
        %750 = vmatpush1.msra.mxu0 0.0
        %751 = vmatprep.subr.mxu0 0.0
        %752 = vmatpush1.msra.mxu0 0.0
        %753 = vmatprep.subr.mxu0 0.0
        %754 = vmatpush1.msra.mxu0 0.0
        %755 = vmatprep.subr.mxu0 0.0
        %756 = vmatpush1.msra.mxu0 0.0
        %757 = vmatprep.subr.mxu0 0.0
        %758 = vmatpush1.msra.mxu0 0.0
        %759 = vmatprep.subr.mxu0 0.0
        %760 = vmatpush1.msra.mxu0 0.0
        %761 = vmatprep.subr.mxu0 0.0
        %762 = vmatpush1.msra.mxu0 0.0
        %763 = vmatprep.subr.mxu0 0.0
        %764 = vmatpush1.msra.mxu0 0.0
        %765 = vmatprep.subr.mxu0 0.0
        %766 = vmatpush1.msra.mxu0 0.0
        %767 = vmatprep.subr.mxu0 0.0
        %768 = vmatpush1.msra.mxu0 %v735
        %769 = vmatprep.subr.mxu0 0.0
        %770 = vmatpush1.msra.mxu0 %v734
        %771 = vmatprep.subr.mxu0 0.0
        %772 = vmatpush1.msra.mxu0 %v733
        %773 = vmatprep.subr.mxu0 0.0
        %774 = vmatpush1.msra.mxu0 %v732
        %775 = vmatprep.subr.mxu0 0.0
        %776 = vmatpush2.msra.mxu0 0.0
        %777 = vmatprep.subr.mxu0 0.0
        %778 = vmatpush2.msra.mxu0 0.0
        %779 = vmatprep.subr.mxu0 0.0
        %780 = vmatpush2.msra.mxu0 0.0
        %781 = vmatprep.subr.mxu0 0.0
        %782 = vmatpush2.msra.mxu0 0.0
        %783 = vmatprep.subr.mxu0 0.0
        %784 = vmatpush2.msra.mxu0 0.0
        %785 = vmatprep.subr.mxu0 0.0
        %786 = vmatpush2.msra.mxu0 0.0
        %787 = vmatprep.subr.mxu0 0.0
        %788 = vmatpush2.msra.mxu0 0.0
        %789 = vmatprep.subr.mxu0 0.0
        %790 = vmatpush2.msra.mxu0 0.0
        %791 = vmatprep.subr.mxu0 0.0
        %792 = vmatpush2.msra.mxu0 0.0
        %793 = vmatprep.subr.mxu0 0.0
        %794 = vmatpush2.msra.mxu0 0.0
        %795 = vmatprep.subr.mxu0 0.0
        %796 = vmatpush2.msra.mxu0 0.0
        %797 = vmatprep.subr.mxu0 0.0
        %798 = vmatpush2.msra.mxu0 0.0
        %799 = vmatprep.subr.mxu0 0.0
        %800 = vmatpush2.msra.mxu0 0.0
        %801 = vmatprep.subr.mxu0 0.0
        %802 = vmatpush2.msra.mxu0 0.0
        %803 = vmatprep.subr.mxu0 0.0
        %804 = vmatpush2.msra.mxu0 0.0
        %805 = vmatprep.subr.mxu0 0.0
        %806 = vmatpush2.msra.mxu0 0.0
        %807 = vmatprep.mubr.f32.mxu0 0.0
        %808 = vmatmul.mubr.f32.gmra.mxu0 %v578
        %v809 = vpop.f32.mrf.mxu0
        %v810 = vadd.f32 %v741, %v809
        %v811 = vpop.f32.mrf.mxu0
        %812 = vdwg.mxu0
        %v813 = vld [vmem:[%s7] sm:$0xff]
        %v814 = vld [vmem:[%s7 + $0x8] sm:$0xff]
        %v815 = vld [vmem:[%s7 + $0x10] sm:$0xff]
        %v816 = vld [vmem:[%s7 + $0x18] sm:$0xff]
        %vm817 = vcmask 64512
        %v819 = vsel %vm817, %v650, 0
        %v822 = vsel %vm817, %v729, 0
        %824 = vmatprep.subr.mxu0 0.0
        %825 = vmatpush1.xpose.msra.mxu0 0.0
        %826 = vmatprep.subr.mxu0 0.0
        %827 = vmatpush1.xpose.msra.mxu0 0.0
        %828 = vmatprep.subr.mxu0 0.0
        %829 = vmatpush1.xpose.msra.mxu0 0.0
        %830 = vmatprep.subr.mxu0 0.0
        %831 = vmatpush1.xpose.msra.mxu0 0.0
        %832 = vmatprep.subr.mxu0 0.0
        %833 = vmatpush1.xpose.msra.mxu0 0.0
        %834 = vmatprep.subr.mxu0 0.0
        %835 = vmatpush1.xpose.msra.mxu0 0.0
        %836 = vmatprep.subr.mxu0 0.0
        %837 = vmatpush1.xpose.msra.mxu0 0.0
        %838 = vmatprep.subr.mxu0 0.0
        %839 = vmatpush1.xpose.msra.mxu0 0.0
        %840 = vmatprep.subr.mxu0 0.0
        %841 = vmatpush1.xpose.msra.mxu0 0.0
        %842 = vmatprep.subr.mxu0 0.0
        %843 = vmatpush1.xpose.msra.mxu0 0.0
        %844 = vmatprep.subr.mxu0 0.0
        %845 = vmatpush1.xpose.msra.mxu0 0.0
        %846 = vmatprep.subr.mxu0 0.0
        %847 = vmatpush1.xpose.msra.mxu0 0.0
        %848 = vmatprep.subr.mxu0 0.0
        %849 = vmatpush1.xpose.msra.mxu0 0.0
        %850 = vmatprep.subr.mxu0 0.0
        %851 = vmatpush1.xpose.msra.mxu0 0.0
        %852 = vmatprep.subr.mxu0 0.0
        %853 = vmatpush1.xpose.msra.mxu0 0.0
        %854 = vmatprep.subr.mxu0 0.0
        %855 = vmatpush1.xpose.msra.mxu0 %v822
        %856 = vmatprep.subr.mxu0 0.0
        %857 = vmatpush2.xpose.msra.mxu0 0.0
        %858 = vmatprep.subr.mxu0 0.0
        %859 = vmatpush2.xpose.msra.mxu0 0.0
        %860 = vmatprep.subr.mxu0 0.0
        %861 = vmatpush2.xpose.msra.mxu0 0.0
        %862 = vmatprep.subr.mxu0 0.0
        %863 = vmatpush2.xpose.msra.mxu0 0.0
        %864 = vmatprep.subr.mxu0 0.0
        %865 = vmatpush2.xpose.msra.mxu0 0.0
        %866 = vmatprep.subr.mxu0 0.0
        %867 = vmatpush2.xpose.msra.mxu0 0.0
        %868 = vmatprep.subr.mxu0 0.0
        %869 = vmatpush2.xpose.msra.mxu0 0.0
        %870 = vmatprep.subr.mxu0 0.0
        %871 = vmatpush2.xpose.msra.mxu0 0.0
        %872 = vmatprep.subr.mxu0 0.0
        %873 = vmatpush2.xpose.msra.mxu0 0.0
        %874 = vmatprep.subr.mxu0 0.0
        %875 = vmatpush2.xpose.msra.mxu0 0.0
        %876 = vmatprep.subr.mxu0 0.0
        %877 = vmatpush2.xpose.msra.mxu0 0.0
        %878 = vmatprep.subr.mxu0 0.0
        %879 = vmatpush2.xpose.msra.mxu0 0.0
        %880 = vmatprep.subr.mxu0 0.0
        %881 = vmatpush2.xpose.msra.mxu0 0.0
        %882 = vmatprep.subr.mxu0 0.0
        %883 = vmatpush2.xpose.msra.mxu0 0.0
        %884 = vmatprep.subr.mxu0 0.0
        %885 = vmatpush2.xpose.msra.mxu0 0.0
        %886 = vmatprep.subr.mxu0 0.0
        %887 = vmatpush2.xpose.msra.mxu0 0.0
        %888 = vmatprep.mubr.f32.mxu0 0.0
        %889 = vmatmul.mubr.f32.gmra.mxu0 %v819
        %v890 = vpop.f32.mrf.mxu0
        %v891 = vadd.f32 0.0, %v890
        %v892 = vpop.f32.mrf.mxu0
        %893 = vdwg.mxu0
        %v894 = vsel %vm817, %v891, -inf
        %895 = vmax.xlane.f32.xlu0 %v894
        %v896 = vpop.xlane.xlu0 %895
        %v897 = vsub.f32 %v891, %v896
        %v898 = vmul.f32 %v897, 1.442695
        %v899 = vpow.pop %v898
        %v900 = vsel %vm817, %v899, 0.0
        %901 = vadd.xlane.f32.xlu0 %v900
        %v902 = vpop.xlane.xlu0 %901
        %v903 = vrcp.pop %v902
        %v904 = vmul.f32 %v899, %v903
        %v906 = vsel %vm817, %v904, 0
        %908 = vmatprep.subr.mxu0 0.0
        %909 = vmatpush1.msra.mxu0 0.0
        %910 = vmatprep.subr.mxu0 0.0
        %911 = vmatpush1.msra.mxu0 0.0
        %912 = vmatprep.subr.mxu0 0.0
        %913 = vmatpush1.msra.mxu0 0.0
        %914 = vmatprep.subr.mxu0 0.0
        %915 = vmatpush1.msra.mxu0 0.0
        %916 = vmatprep.subr.mxu0 0.0
        %917 = vmatpush1.msra.mxu0 0.0
        %918 = vmatprep.subr.mxu0 0.0
        %919 = vmatpush1.msra.mxu0 0.0
        %920 = vmatprep.subr.mxu0 0.0
        %921 = vmatpush1.msra.mxu0 0.0
        %922 = vmatprep.subr.mxu0 0.0
        %923 = vmatpush1.msra.mxu0 0.0
        %924 = vmatprep.subr.mxu0 0.0
        %925 = vmatpush1.msra.mxu0 0.0
        %926 = vmatprep.subr.mxu0 0.0
        %927 = vmatpush1.msra.mxu0 0.0
        %928 = vmatprep.subr.mxu0 0.0
        %929 = vmatpush1.msra.mxu0 0.0
        %930 = vmatprep.subr.mxu0 0.0
        %931 = vmatpush1.msra.mxu0 0.0
        %932 = vmatprep.subr.mxu0 0.0
        %933 = vmatpush1.msra.mxu0 0.0
        %934 = vmatprep.subr.mxu0 0.0
        %935 = vmatpush1.msra.mxu0 0.0
        %936 = vmatprep.subr.mxu0 0.0
        %937 = vmatpush1.msra.mxu0 0.0
        %938 = vmatprep.subr.mxu0 0.0
        %939 = vmatpush1.msra.mxu0 %v810
        %940 = vmatprep.subr.mxu0 0.0
        %941 = vmatpush2.msra.mxu0 0.0
        %942 = vmatprep.subr.mxu0 0.0
        %943 = vmatpush2.msra.mxu0 0.0
        %944 = vmatprep.subr.mxu0 0.0
        %945 = vmatpush2.msra.mxu0 0.0
        %946 = vmatprep.subr.mxu0 0.0
        %947 = vmatpush2.msra.mxu0 0.0
        %948 = vmatprep.subr.mxu0 0.0
        %949 = vmatpush2.msra.mxu0 0.0
        %950 = vmatprep.subr.mxu0 0.0
        %951 = vmatpush2.msra.mxu0 0.0
        %952 = vmatprep.subr.mxu0 0.0
        %953 = vmatpush2.msra.mxu0 0.0
        %954 = vmatprep.subr.mxu0 0.0
        %955 = vmatpush2.msra.mxu0 0.0
        %956 = vmatprep.subr.mxu0 0.0
        %957 = vmatpush2.msra.mxu0 0.0
        %958 = vmatprep.subr.mxu0 0.0
        %959 = vmatpush2.msra.mxu0 0.0
        %960 = vmatprep.subr.mxu0 0.0
        %961 = vmatpush2.msra.mxu0 0.0
        %962 = vmatprep.subr.mxu0 0.0
        %963 = vmatpush2.msra.mxu0 0.0
        %964 = vmatprep.subr.mxu0 0.0
        %965 = vmatpush2.msra.mxu0 0.0
        %966 = vmatprep.subr.mxu0 0.0
        %967 = vmatpush2.msra.mxu0 0.0
        %968 = vmatprep.subr.mxu0 0.0
        %969 = vmatpush2.msra.mxu0 0.0
        %970 = vmatprep.subr.mxu0 0.0
        %971 = vmatpush2.msra.mxu0 0.0
        %972 = vmatprep.mubr.f32.mxu0 0.0
        %973 = vmatmul.mubr.f32.gmra.mxu0 %v906
        %v974 = vpop.f32.mrf.mxu0
        %v975 = vadd.f32 0.0, %v974
        %v976 = vpop.f32.mrf.mxu0
        %977 = vdwg.mxu0
        %978 = vrot.lane.b32.xlu0 %v650, 120
        %v979 = vpop.permute.xlu0 %978
        %980 = vrot.lane.b32.xlu0 %v729, 120
        %v981 = vpop.permute.xlu0 %980
        %v982 = vsel %vm817, %v979, 0
        %v984 = vsel %vm817, %v981, 0
        %986 = vmatprep.subr.mxu0 0.0
        %987 = vmatpush1.xpose.msra.mxu0 0.0
        %988 = vmatprep.subr.mxu0 0.0
        %989 = vmatpush1.xpose.msra.mxu0 0.0
        %990 = vmatprep.subr.mxu0 0.0
        %991 = vmatpush1.xpose.msra.mxu0 0.0
        %992 = vmatprep.subr.mxu0 0.0
        %993 = vmatpush1.xpose.msra.mxu0 0.0
        %994 = vmatprep.subr.mxu0 0.0
        %995 = vmatpush1.xpose.msra.mxu0 0.0
        %996 = vmatprep.subr.mxu0 0.0
        %997 = vmatpush1.xpose.msra.mxu0 0.0
        %998 = vmatprep.subr.mxu0 0.0
        %999 = vmatpush1.xpose.msra.mxu0 0.0
        %1000 = vmatprep.subr.mxu0 0.0
        %1001 = vmatpush1.xpose.msra.mxu0 0.0
        %1002 = vmatprep.subr.mxu0 0.0
        %1003 = vmatpush1.xpose.msra.mxu0 0.0
        %1004 = vmatprep.subr.mxu0 0.0
        %1005 = vmatpush1.xpose.msra.mxu0 0.0
        %1006 = vmatprep.subr.mxu0 0.0
        %1007 = vmatpush1.xpose.msra.mxu0 0.0
        %1008 = vmatprep.subr.mxu0 0.0
        %1009 = vmatpush1.xpose.msra.mxu0 0.0
        %1010 = vmatprep.subr.mxu0 0.0
        %1011 = vmatpush1.xpose.msra.mxu0 0.0
        %1012 = vmatprep.subr.mxu0 0.0
        %1013 = vmatpush1.xpose.msra.mxu0 0.0
        %1014 = vmatprep.subr.mxu0 0.0
        %1015 = vmatpush1.xpose.msra.mxu0 0.0
        %1016 = vmatprep.subr.mxu0 0.0
        %1017 = vmatpush1.xpose.msra.mxu0 %v984
        %1018 = vmatprep.subr.mxu0 0.0
        %1019 = vmatpush2.xpose.msra.mxu0 0.0
        %1020 = vmatprep.subr.mxu0 0.0
        %1021 = vmatpush2.xpose.msra.mxu0 0.0
        %1022 = vmatprep.subr.mxu0 0.0
        %1023 = vmatpush2.xpose.msra.mxu0 0.0
        %1024 = vmatprep.subr.mxu0 0.0
        %1025 = vmatpush2.xpose.msra.mxu0 0.0
        %1026 = vmatprep.subr.mxu0 0.0
        %1027 = vmatpush2.xpose.msra.mxu0 0.0
        %1028 = vmatprep.subr.mxu0 0.0
        %1029 = vmatpush2.xpose.msra.mxu0 0.0
        %1030 = vmatprep.subr.mxu0 0.0
        %1031 = vmatpush2.xpose.msra.mxu0 0.0
        %1032 = vmatprep.subr.mxu0 0.0
        %1033 = vmatpush2.xpose.msra.mxu0 0.0
        %1034 = vmatprep.subr.mxu0 0.0
        %1035 = vmatpush2.xpose.msra.mxu0 0.0
        %1036 = vmatprep.subr.mxu0 0.0
        %1037 = vmatpush2.xpose.msra.mxu0 0.0
        %1038 = vmatprep.subr.mxu0 0.0
        %1039 = vmatpush2.xpose.msra.mxu0 0.0
        %1040 = vmatprep.subr.mxu0 0.0
        %1041 = vmatpush2.xpose.msra.mxu0 0.0
        %1042 = vmatprep.subr.mxu0 0.0
        %1043 = vmatpush2.xpose.msra.mxu0 0.0
        %1044 = vmatprep.subr.mxu0 0.0
        %1045 = vmatpush2.xpose.msra.mxu0 0.0
        %1046 = vmatprep.subr.mxu0 0.0
        %1047 = vmatpush2.xpose.msra.mxu0 0.0
        %1048 = vmatprep.subr.mxu0 0.0
        %1049 = vmatpush2.xpose.msra.mxu0 0.0
        %1050 = vmatprep.mubr.f32.mxu0 0.0
        %1051 = vmatmul.mubr.f32.gmra.mxu0 %v982
        %v1052 = vpop.f32.mrf.mxu0
        %v1053 = vadd.f32 0.0, %v1052
        %v1054 = vpop.f32.mrf.mxu0
        %1055 = vdwg.mxu0
        %v1056 = vsel %vm817, %v1053, -inf
        %1057 = vmax.xlane.f32.xlu0 %v1056
        %v1058 = vpop.xlane.xlu0 %1057
        %v1059 = vsub.f32 %v1053, %v1058
        %v1060 = vmul.f32 %v1059, 1.442695
        %v1061 = vpow.pop %v1060
        %v1062 = vsel %vm817, %v1061, 0.0
        %1063 = vadd.xlane.f32.xlu0 %v1062
        %v1064 = vpop.xlane.xlu0 %1063
        %v1065 = vrcp.pop %v1064
        %v1066 = vmul.f32 %v1061, %v1065
        %1068 = vrot.lane.b32.xlu0 %v810, 120
        %v1069 = vpop.permute.xlu0 %1068
        %v1072 = vsel %vm817, %v1066, 0
        %1074 = vmatprep.subr.mxu0 0.0
        %1075 = vmatpush1.msra.mxu0 0.0
        %1076 = vmatprep.subr.mxu0 0.0
        %1077 = vmatpush1.msra.mxu0 0.0
        %1078 = vmatprep.subr.mxu0 0.0
        %1079 = vmatpush1.msra.mxu0 0.0
        %1080 = vmatprep.subr.mxu0 0.0
        %1081 = vmatpush1.msra.mxu0 0.0
        %1082 = vmatprep.subr.mxu0 0.0
        %1083 = vmatpush1.msra.mxu0 0.0
        %1084 = vmatprep.subr.mxu0 0.0
        %1085 = vmatpush1.msra.mxu0 0.0
        %1086 = vmatprep.subr.mxu0 0.0
        %1087 = vmatpush1.msra.mxu0 0.0
        %1088 = vmatprep.subr.mxu0 0.0
        %1089 = vmatpush1.msra.mxu0 0.0
        %1090 = vmatprep.subr.mxu0 0.0
        %1091 = vmatpush1.msra.mxu0 0.0
        %1092 = vmatprep.subr.mxu0 0.0
        %1093 = vmatpush1.msra.mxu0 0.0
        %1094 = vmatprep.subr.mxu0 0.0
        %1095 = vmatpush1.msra.mxu0 0.0
        %1096 = vmatprep.subr.mxu0 0.0
        %1097 = vmatpush1.msra.mxu0 0.0
        %1098 = vmatprep.subr.mxu0 0.0
        %1099 = vmatpush1.msra.mxu0 0.0
        %1100 = vmatprep.subr.mxu0 0.0
        %1101 = vmatpush1.msra.mxu0 0.0
        %1102 = vmatprep.subr.mxu0 0.0
        %1103 = vmatpush1.msra.mxu0 0.0
        %1104 = vmatprep.subr.mxu0 0.0
        %1105 = vmatpush1.msra.mxu0 %v1069
        %1106 = vmatprep.subr.mxu0 0.0
        %1107 = vmatpush2.msra.mxu0 0.0
        %1108 = vmatprep.subr.mxu0 0.0
        %1109 = vmatpush2.msra.mxu0 0.0
        %1110 = vmatprep.subr.mxu0 0.0
        %1111 = vmatpush2.msra.mxu0 0.0
        %1112 = vmatprep.subr.mxu0 0.0
        %1113 = vmatpush2.msra.mxu0 0.0
        %1114 = vmatprep.subr.mxu0 0.0
        %1115 = vmatpush2.msra.mxu0 0.0
        %1116 = vmatprep.subr.mxu0 0.0
        %1117 = vmatpush2.msra.mxu0 0.0
        %1118 = vmatprep.subr.mxu0 0.0
        %1119 = vmatpush2.msra.mxu0 0.0
        %1120 = vmatprep.subr.mxu0 0.0
        %1121 = vmatpush2.msra.mxu0 0.0
        %1122 = vmatprep.subr.mxu0 0.0
        %1123 = vmatpush2.msra.mxu0 0.0
        %1124 = vmatprep.subr.mxu0 0.0
        %1125 = vmatpush2.msra.mxu0 0.0
        %1126 = vmatprep.subr.mxu0 0.0
        %1127 = vmatpush2.msra.mxu0 0.0
        %1128 = vmatprep.subr.mxu0 0.0
        %1129 = vmatpush2.msra.mxu0 0.0
        %1130 = vmatprep.subr.mxu0 0.0
        %1131 = vmatpush2.msra.mxu0 0.0
        %1132 = vmatprep.subr.mxu0 0.0
        %1133 = vmatpush2.msra.mxu0 0.0
        %1134 = vmatprep.subr.mxu0 0.0
        %1135 = vmatpush2.msra.mxu0 0.0
        %1136 = vmatprep.subr.mxu0 0.0
        %1137 = vmatpush2.msra.mxu0 0.0
        %1138 = vmatprep.mubr.f32.mxu0 0.0
        %1139 = vmatmul.mubr.f32.gmra.mxu0 %v1072
        %v1140 = vpop.f32.mrf.mxu0
        %v1141 = vadd.f32 0.0, %v1140
        %v1142 = vpop.f32.mrf.mxu0
        %1143 = vdwg.mxu0
        %v1145 = vsel %vm817, %v1141, 0
        %1147 = vmatprep.subr.mxu0 0.0
        %1148 = vmatpush1.msra.mxu0 0.0
        %1149 = vmatprep.subr.mxu0 0.0
        %1150 = vmatpush1.msra.mxu0 0.0
        %1151 = vmatprep.subr.mxu0 0.0
        %1152 = vmatpush1.msra.mxu0 0.0
        %1153 = vmatprep.subr.mxu0 0.0
        %1154 = vmatpush1.msra.mxu0 0.0
        %1155 = vmatprep.subr.mxu0 0.0
        %1156 = vmatpush1.msra.mxu0 0.0
        %1157 = vmatprep.subr.mxu0 0.0
        %1158 = vmatpush1.msra.mxu0 0.0
        %1159 = vmatprep.subr.mxu0 0.0
        %1160 = vmatpush1.msra.mxu0 0.0
        %1161 = vmatprep.subr.mxu0 0.0
        %1162 = vmatpush1.msra.mxu0 0.0
        %1163 = vmatprep.subr.mxu0 0.0
        %1164 = vmatpush1.msra.mxu0 0.0
        %1165 = vmatprep.subr.mxu0 0.0
        %1166 = vmatpush1.msra.mxu0 0.0
        %1167 = vmatprep.subr.mxu0 0.0
        %1168 = vmatpush1.msra.mxu0 0.0
        %1169 = vmatprep.subr.mxu0 0.0
        %1170 = vmatpush1.msra.mxu0 0.0
        %1171 = vmatprep.subr.mxu0 0.0
        %1172 = vmatpush1.msra.mxu0 0.0
        %1173 = vmatprep.subr.mxu0 0.0
        %1174 = vmatpush1.msra.mxu0 0.0
        %1175 = vmatprep.subr.mxu0 0.0
        %1176 = vmatpush1.msra.mxu0 0.0
        %1177 = vmatprep.subr.mxu0 0.0
        %1178 = vmatpush1.msra.mxu0 %v814
        %1179 = vmatprep.subr.mxu0 0.0
        %1180 = vmatpush2.msra.mxu0 0.0
        %1181 = vmatprep.subr.mxu0 0.0
        %1182 = vmatpush2.msra.mxu0 0.0
        %1183 = vmatprep.subr.mxu0 0.0
        %1184 = vmatpush2.msra.mxu0 0.0
        %1185 = vmatprep.subr.mxu0 0.0
        %1186 = vmatpush2.msra.mxu0 0.0
        %1187 = vmatprep.subr.mxu0 0.0
        %1188 = vmatpush2.msra.mxu0 0.0
        %1189 = vmatprep.subr.mxu0 0.0
        %1190 = vmatpush2.msra.mxu0 0.0
        %1191 = vmatprep.subr.mxu0 0.0
        %1192 = vmatpush2.msra.mxu0 0.0
        %1193 = vmatprep.subr.mxu0 0.0
        %1194 = vmatpush2.msra.mxu0 0.0
        %1195 = vmatprep.subr.mxu0 0.0
        %1196 = vmatpush2.msra.mxu0 0.0
        %1197 = vmatprep.subr.mxu0 0.0
        %1198 = vmatpush2.msra.mxu0 0.0
        %1199 = vmatprep.subr.mxu0 0.0
        %1200 = vmatpush2.msra.mxu0 0.0
        %1201 = vmatprep.subr.mxu0 0.0
        %1202 = vmatpush2.msra.mxu0 0.0
        %1203 = vmatprep.subr.mxu0 0.0
        %1204 = vmatpush2.msra.mxu0 0.0
        %1205 = vmatprep.subr.mxu0 0.0
        %1206 = vmatpush2.msra.mxu0 0.0
        %1207 = vmatprep.subr.mxu0 0.0
        %1208 = vmatpush2.msra.mxu0 0.0
        %1209 = vmatprep.subr.mxu0 0.0
        %1210 = vmatpush2.msra.mxu0 0.0
        %1211 = vmatprep.mubr.f32.mxu0 0.0
        %1212 = vmatmul.mubr.f32.gmra.mxu0 %v1145
        %v1213 = vpop.f32.mrf.mxu0
        %v1214 = vadd.f32 0.0, %v1213
        %v1215 = vpop.f32.mrf.mxu0
        %1216 = vdwg.mxu0
        %v1218 = vsel %vm817, %v975, 0
        %1220 = vmatprep.subr.mxu0 0.0
        %1221 = vmatpush1.msra.mxu0 0.0
        %1222 = vmatprep.subr.mxu0 0.0
        %1223 = vmatpush1.msra.mxu0 0.0
        %1224 = vmatprep.subr.mxu0 0.0
        %1225 = vmatpush1.msra.mxu0 0.0
        %1226 = vmatprep.subr.mxu0 0.0
        %1227 = vmatpush1.msra.mxu0 0.0
        %1228 = vmatprep.subr.mxu0 0.0
        %1229 = vmatpush1.msra.mxu0 0.0
        %1230 = vmatprep.subr.mxu0 0.0
        %1231 = vmatpush1.msra.mxu0 0.0
        %1232 = vmatprep.subr.mxu0 0.0
        %1233 = vmatpush1.msra.mxu0 0.0
        %1234 = vmatprep.subr.mxu0 0.0
        %1235 = vmatpush1.msra.mxu0 0.0
        %1236 = vmatprep.subr.mxu0 0.0
        %1237 = vmatpush1.msra.mxu0 0.0
        %1238 = vmatprep.subr.mxu0 0.0
        %1239 = vmatpush1.msra.mxu0 0.0
        %1240 = vmatprep.subr.mxu0 0.0
        %1241 = vmatpush1.msra.mxu0 0.0
        %1242 = vmatprep.subr.mxu0 0.0
        %1243 = vmatpush1.msra.mxu0 0.0
        %1244 = vmatprep.subr.mxu0 0.0
        %1245 = vmatpush1.msra.mxu0 0.0
        %1246 = vmatprep.subr.mxu0 0.0
        %1247 = vmatpush1.msra.mxu0 0.0
        %1248 = vmatprep.subr.mxu0 0.0
        %1249 = vmatpush1.msra.mxu0 0.0
        %1250 = vmatprep.subr.mxu0 0.0
        %1251 = vmatpush1.msra.mxu0 %v813
        %1252 = vmatprep.subr.mxu0 0.0
        %1253 = vmatpush2.msra.mxu0 0.0
        %1254 = vmatprep.subr.mxu0 0.0
        %1255 = vmatpush2.msra.mxu0 0.0
        %1256 = vmatprep.subr.mxu0 0.0
        %1257 = vmatpush2.msra.mxu0 0.0
        %1258 = vmatprep.subr.mxu0 0.0
        %1259 = vmatpush2.msra.mxu0 0.0
        %1260 = vmatprep.subr.mxu0 0.0
        %1261 = vmatpush2.msra.mxu0 0.0
        %1262 = vmatprep.subr.mxu0 0.0
        %1263 = vmatpush2.msra.mxu0 0.0
        %1264 = vmatprep.subr.mxu0 0.0
        %1265 = vmatpush2.msra.mxu0 0.0
        %1266 = vmatprep.subr.mxu0 0.0
        %1267 = vmatpush2.msra.mxu0 0.0
        %1268 = vmatprep.subr.mxu0 0.0
        %1269 = vmatpush2.msra.mxu0 0.0
        %1270 = vmatprep.subr.mxu0 0.0
        %1271 = vmatpush2.msra.mxu0 0.0
        %1272 = vmatprep.subr.mxu0 0.0
        %1273 = vmatpush2.msra.mxu0 0.0
        %1274 = vmatprep.subr.mxu0 0.0
        %1275 = vmatpush2.msra.mxu0 0.0
        %1276 = vmatprep.subr.mxu0 0.0
        %1277 = vmatpush2.msra.mxu0 0.0
        %1278 = vmatprep.subr.mxu0 0.0
        %1279 = vmatpush2.msra.mxu0 0.0
        %1280 = vmatprep.subr.mxu0 0.0
        %1281 = vmatpush2.msra.mxu0 0.0
        %1282 = vmatprep.subr.mxu0 0.0
        %1283 = vmatpush2.msra.mxu0 0.0
        %1284 = vmatprep.mubr.f32.mxu0 0.0
        %1285 = vmatmul.mubr.f32.gmra.mxu0 %v1218
        %v1286 = vpop.f32.mrf.mxu0
        %v1287 = vadd.f32 %v1214, %v1286
        %v1288 = vpop.f32.mrf.mxu0
        %1289 = vdwg.mxu0
        %1290 = vrot.lane.b32.xlu0 %v650, 112
        %v1291 = vpop.permute.xlu0 %1290
        %1292 = vrot.lane.b32.xlu0 %v729, 112
        %v1293 = vpop.permute.xlu0 %1292
        %v1294 = vsel %vm817, %v1291, 0
        %v1296 = vsel %vm817, %v1293, 0
        %1298 = vmatprep.subr.mxu0 0.0
        %1299 = vmatpush1.xpose.msra.mxu0 0.0
        %1300 = vmatprep.subr.mxu0 0.0
        %1301 = vmatpush1.xpose.msra.mxu0 0.0
        %1302 = vmatprep.subr.mxu0 0.0
        %1303 = vmatpush1.xpose.msra.mxu0 0.0
        %1304 = vmatprep.subr.mxu0 0.0
        %1305 = vmatpush1.xpose.msra.mxu0 0.0
        %1306 = vmatprep.subr.mxu0 0.0
        %1307 = vmatpush1.xpose.msra.mxu0 0.0
        %1308 = vmatprep.subr.mxu0 0.0
        %1309 = vmatpush1.xpose.msra.mxu0 0.0
        %1310 = vmatprep.subr.mxu0 0.0
        %1311 = vmatpush1.xpose.msra.mxu0 0.0
        %1312 = vmatprep.subr.mxu0 0.0
        %1313 = vmatpush1.xpose.msra.mxu0 0.0
        %1314 = vmatprep.subr.mxu0 0.0
        %1315 = vmatpush1.xpose.msra.mxu0 0.0
        %1316 = vmatprep.subr.mxu0 0.0
        %1317 = vmatpush1.xpose.msra.mxu0 0.0
        %1318 = vmatprep.subr.mxu0 0.0
        %1319 = vmatpush1.xpose.msra.mxu0 0.0
        %1320 = vmatprep.subr.mxu0 0.0
        %1321 = vmatpush1.xpose.msra.mxu0 0.0
        %1322 = vmatprep.subr.mxu0 0.0
        %1323 = vmatpush1.xpose.msra.mxu0 0.0
        %1324 = vmatprep.subr.mxu0 0.0
        %1325 = vmatpush1.xpose.msra.mxu0 0.0
        %1326 = vmatprep.subr.mxu0 0.0
        %1327 = vmatpush1.xpose.msra.mxu0 0.0
        %1328 = vmatprep.subr.mxu0 0.0
        %1329 = vmatpush1.xpose.msra.mxu0 %v1296
        %1330 = vmatprep.subr.mxu0 0.0
        %1331 = vmatpush2.xpose.msra.mxu0 0.0
        %1332 = vmatprep.subr.mxu0 0.0
        %1333 = vmatpush2.xpose.msra.mxu0 0.0
        %1334 = vmatprep.subr.mxu0 0.0
        %1335 = vmatpush2.xpose.msra.mxu0 0.0
        %1336 = vmatprep.subr.mxu0 0.0
        %1337 = vmatpush2.xpose.msra.mxu0 0.0
        %1338 = vmatprep.subr.mxu0 0.0
        %1339 = vmatpush2.xpose.msra.mxu0 0.0
        %1340 = vmatprep.subr.mxu0 0.0
        %1341 = vmatpush2.xpose.msra.mxu0 0.0
        %1342 = vmatprep.subr.mxu0 0.0
        %1343 = vmatpush2.xpose.msra.mxu0 0.0
        %1344 = vmatprep.subr.mxu0 0.0
        %1345 = vmatpush2.xpose.msra.mxu0 0.0
        %1346 = vmatprep.subr.mxu0 0.0
        %1347 = vmatpush2.xpose.msra.mxu0 0.0
        %1348 = vmatprep.subr.mxu0 0.0
        %1349 = vmatpush2.xpose.msra.mxu0 0.0
        %1350 = vmatprep.subr.mxu0 0.0
        %1351 = vmatpush2.xpose.msra.mxu0 0.0
        %1352 = vmatprep.subr.mxu0 0.0
        %1353 = vmatpush2.xpose.msra.mxu0 0.0
        %1354 = vmatprep.subr.mxu0 0.0
        %1355 = vmatpush2.xpose.msra.mxu0 0.0
        %1356 = vmatprep.subr.mxu0 0.0
        %1357 = vmatpush2.xpose.msra.mxu0 0.0
        %1358 = vmatprep.subr.mxu0 0.0
        %1359 = vmatpush2.xpose.msra.mxu0 0.0
        %1360 = vmatprep.subr.mxu0 0.0
        %1361 = vmatpush2.xpose.msra.mxu0 0.0
        %1362 = vmatprep.mubr.f32.mxu0 0.0
        %1363 = vmatmul.mubr.f32.gmra.mxu0 %v1294
        %v1364 = vpop.f32.mrf.mxu0
        %v1365 = vadd.f32 0.0, %v1364
        %v1366 = vpop.f32.mrf.mxu0
        %1367 = vdwg.mxu0
        %v1368 = vsel %vm817, %v1365, -inf
        %1369 = vmax.xlane.f32.xlu0 %v1368
        %v1370 = vpop.xlane.xlu0 %1369
        %v1371 = vsub.f32 %v1365, %v1370
        %v1372 = vmul.f32 %v1371, 1.442695
        %v1373 = vpow.pop %v1372
        %v1374 = vsel %vm817, %v1373, 0.0
        %1375 = vadd.xlane.f32.xlu0 %v1374
        %v1376 = vpop.xlane.xlu0 %1375
        %v1377 = vrcp.pop %v1376
        %v1378 = vmul.f32 %v1373, %v1377
        %1379 = vrot.lane.b32.xlu0 %v810, 112
        %v1380 = vpop.permute.xlu0 %1379
        %v1383 = vsel %vm817, %v1378, 0
        %1385 = vmatprep.subr.mxu0 0.0
        %1386 = vmatpush1.msra.mxu0 0.0
        %1387 = vmatprep.subr.mxu0 0.0
        %1388 = vmatpush1.msra.mxu0 0.0
        %1389 = vmatprep.subr.mxu0 0.0
        %1390 = vmatpush1.msra.mxu0 0.0
        %1391 = vmatprep.subr.mxu0 0.0
        %1392 = vmatpush1.msra.mxu0 0.0
        %1393 = vmatprep.subr.mxu0 0.0
        %1394 = vmatpush1.msra.mxu0 0.0
        %1395 = vmatprep.subr.mxu0 0.0
        %1396 = vmatpush1.msra.mxu0 0.0
        %1397 = vmatprep.subr.mxu0 0.0
        %1398 = vmatpush1.msra.mxu0 0.0
        %1399 = vmatprep.subr.mxu0 0.0
        %1400 = vmatpush1.msra.mxu0 0.0
        %1401 = vmatprep.subr.mxu0 0.0
        %1402 = vmatpush1.msra.mxu0 0.0
        %1403 = vmatprep.subr.mxu0 0.0
        %1404 = vmatpush1.msra.mxu0 0.0
        %1405 = vmatprep.subr.mxu0 0.0
        %1406 = vmatpush1.msra.mxu0 0.0
        %1407 = vmatprep.subr.mxu0 0.0
        %1408 = vmatpush1.msra.mxu0 0.0
        %1409 = vmatprep.subr.mxu0 0.0
        %1410 = vmatpush1.msra.mxu0 0.0
        %1411 = vmatprep.subr.mxu0 0.0
        %1412 = vmatpush1.msra.mxu0 0.0
        %1413 = vmatprep.subr.mxu0 0.0
        %1414 = vmatpush1.msra.mxu0 0.0
        %1415 = vmatprep.subr.mxu0 0.0
        %1416 = vmatpush1.msra.mxu0 %v1380
        %1417 = vmatprep.subr.mxu0 0.0
        %1418 = vmatpush2.msra.mxu0 0.0
        %1419 = vmatprep.subr.mxu0 0.0
        %1420 = vmatpush2.msra.mxu0 0.0
        %1421 = vmatprep.subr.mxu0 0.0
        %1422 = vmatpush2.msra.mxu0 0.0
        %1423 = vmatprep.subr.mxu0 0.0
        %1424 = vmatpush2.msra.mxu0 0.0
        %1425 = vmatprep.subr.mxu0 0.0
        %1426 = vmatpush2.msra.mxu0 0.0
        %1427 = vmatprep.subr.mxu0 0.0
        %1428 = vmatpush2.msra.mxu0 0.0
        %1429 = vmatprep.subr.mxu0 0.0
        %1430 = vmatpush2.msra.mxu0 0.0
        %1431 = vmatprep.subr.mxu0 0.0
        %1432 = vmatpush2.msra.mxu0 0.0
        %1433 = vmatprep.subr.mxu0 0.0
        %1434 = vmatpush2.msra.mxu0 0.0
        %1435 = vmatprep.subr.mxu0 0.0
        %1436 = vmatpush2.msra.mxu0 0.0
        %1437 = vmatprep.subr.mxu0 0.0
        %1438 = vmatpush2.msra.mxu0 0.0
        %1439 = vmatprep.subr.mxu0 0.0
        %1440 = vmatpush2.msra.mxu0 0.0
        %1441 = vmatprep.subr.mxu0 0.0
        %1442 = vmatpush2.msra.mxu0 0.0
        %1443 = vmatprep.subr.mxu0 0.0
        %1444 = vmatpush2.msra.mxu0 0.0
        %1445 = vmatprep.subr.mxu0 0.0
        %1446 = vmatpush2.msra.mxu0 0.0
        %1447 = vmatprep.subr.mxu0 0.0
        %1448 = vmatpush2.msra.mxu0 0.0
        %1449 = vmatprep.mubr.f32.mxu0 0.0
        %1450 = vmatmul.mubr.f32.gmra.mxu0 %v1383
        %v1451 = vpop.f32.mrf.mxu0
        %v1452 = vadd.f32 0.0, %v1451
        %v1453 = vpop.f32.mrf.mxu0
        %1454 = vdwg.mxu0
        %v1456 = vsel %vm817, %v1452, 0
        %1458 = vmatprep.subr.mxu0 0.0
        %1459 = vmatpush1.msra.mxu0 0.0
        %1460 = vmatprep.subr.mxu0 0.0
        %1461 = vmatpush1.msra.mxu0 0.0
        %1462 = vmatprep.subr.mxu0 0.0
        %1463 = vmatpush1.msra.mxu0 0.0
        %1464 = vmatprep.subr.mxu0 0.0
        %1465 = vmatpush1.msra.mxu0 0.0
        %1466 = vmatprep.subr.mxu0 0.0
        %1467 = vmatpush1.msra.mxu0 0.0
        %1468 = vmatprep.subr.mxu0 0.0
        %1469 = vmatpush1.msra.mxu0 0.0
        %1470 = vmatprep.subr.mxu0 0.0
        %1471 = vmatpush1.msra.mxu0 0.0
        %1472 = vmatprep.subr.mxu0 0.0
        %1473 = vmatpush1.msra.mxu0 0.0
        %1474 = vmatprep.subr.mxu0 0.0
        %1475 = vmatpush1.msra.mxu0 0.0
        %1476 = vmatprep.subr.mxu0 0.0
        %1477 = vmatpush1.msra.mxu0 0.0
        %1478 = vmatprep.subr.mxu0 0.0
        %1479 = vmatpush1.msra.mxu0 0.0
        %1480 = vmatprep.subr.mxu0 0.0
        %1481 = vmatpush1.msra.mxu0 0.0
        %1482 = vmatprep.subr.mxu0 0.0
        %1483 = vmatpush1.msra.mxu0 0.0
        %1484 = vmatprep.subr.mxu0 0.0
        %1485 = vmatpush1.msra.mxu0 0.0
        %1486 = vmatprep.subr.mxu0 0.0
        %1487 = vmatpush1.msra.mxu0 0.0
        %1488 = vmatprep.subr.mxu0 0.0
        %1489 = vmatpush1.msra.mxu0 %v815
        %1490 = vmatprep.subr.mxu0 0.0
        %1491 = vmatpush2.msra.mxu0 0.0
        %1492 = vmatprep.subr.mxu0 0.0
        %1493 = vmatpush2.msra.mxu0 0.0
        %1494 = vmatprep.subr.mxu0 0.0
        %1495 = vmatpush2.msra.mxu0 0.0
        %1496 = vmatprep.subr.mxu0 0.0
        %1497 = vmatpush2.msra.mxu0 0.0
        %1498 = vmatprep.subr.mxu0 0.0
        %1499 = vmatpush2.msra.mxu0 0.0
        %1500 = vmatprep.subr.mxu0 0.0
        %1501 = vmatpush2.msra.mxu0 0.0
        %1502 = vmatprep.subr.mxu0 0.0
        %1503 = vmatpush2.msra.mxu0 0.0
        %1504 = vmatprep.subr.mxu0 0.0
        %1505 = vmatpush2.msra.mxu0 0.0
        %1506 = vmatprep.subr.mxu0 0.0
        %1507 = vmatpush2.msra.mxu0 0.0
        %1508 = vmatprep.subr.mxu0 0.0
        %1509 = vmatpush2.msra.mxu0 0.0
        %1510 = vmatprep.subr.mxu0 0.0
        %1511 = vmatpush2.msra.mxu0 0.0
        %1512 = vmatprep.subr.mxu0 0.0
        %1513 = vmatpush2.msra.mxu0 0.0
        %1514 = vmatprep.subr.mxu0 0.0
        %1515 = vmatpush2.msra.mxu0 0.0
        %1516 = vmatprep.subr.mxu0 0.0
        %1517 = vmatpush2.msra.mxu0 0.0
        %1518 = vmatprep.subr.mxu0 0.0
        %1519 = vmatpush2.msra.mxu0 0.0
        %1520 = vmatprep.subr.mxu0 0.0
        %1521 = vmatpush2.msra.mxu0 0.0
        %1522 = vmatprep.mubr.f32.mxu0 0.0
        %1523 = vmatmul.mubr.f32.gmra.mxu0 %v1456
        %v1524 = vpop.f32.mrf.mxu0
        %v1525 = vadd.f32 0.0, %v1524
        %v1526 = vpop.f32.mrf.mxu0
        %1527 = vdwg.mxu0
        %v1528 = vadd.f32 %v1287, %v1525
        %1529 = vrot.lane.b32.xlu0 %v650, 104
        %v1530 = vpop.permute.xlu0 %1529
        %1531 = vrot.lane.b32.xlu0 %v729, 104
        %v1532 = vpop.permute.xlu0 %1531
        %v1533 = vsel %vm817, %v1530, 0
        %v1535 = vsel %vm817, %v1532, 0
        %1537 = vmatprep.subr.mxu0 0.0
        %1538 = vmatpush1.xpose.msra.mxu0 0.0
        %1539 = vmatprep.subr.mxu0 0.0
        %1540 = vmatpush1.xpose.msra.mxu0 0.0
        %1541 = vmatprep.subr.mxu0 0.0
        %1542 = vmatpush1.xpose.msra.mxu0 0.0
        %1543 = vmatprep.subr.mxu0 0.0
        %1544 = vmatpush1.xpose.msra.mxu0 0.0
        %1545 = vmatprep.subr.mxu0 0.0
        %1546 = vmatpush1.xpose.msra.mxu0 0.0
        %1547 = vmatprep.subr.mxu0 0.0
        %1548 = vmatpush1.xpose.msra.mxu0 0.0
        %1549 = vmatprep.subr.mxu0 0.0
        %1550 = vmatpush1.xpose.msra.mxu0 0.0
        %1551 = vmatprep.subr.mxu0 0.0
        %1552 = vmatpush1.xpose.msra.mxu0 0.0
        %1553 = vmatprep.subr.mxu0 0.0
        %1554 = vmatpush1.xpose.msra.mxu0 0.0
        %1555 = vmatprep.subr.mxu0 0.0
        %1556 = vmatpush1.xpose.msra.mxu0 0.0
        %1557 = vmatprep.subr.mxu0 0.0
        %1558 = vmatpush1.xpose.msra.mxu0 0.0
        %1559 = vmatprep.subr.mxu0 0.0
        %1560 = vmatpush1.xpose.msra.mxu0 0.0
        %1561 = vmatprep.subr.mxu0 0.0
        %1562 = vmatpush1.xpose.msra.mxu0 0.0
        %1563 = vmatprep.subr.mxu0 0.0
        %1564 = vmatpush1.xpose.msra.mxu0 0.0
        %1565 = vmatprep.subr.mxu0 0.0
        %1566 = vmatpush1.xpose.msra.mxu0 0.0
        %1567 = vmatprep.subr.mxu0 0.0
        %1568 = vmatpush1.xpose.msra.mxu0 %v1535
        %1569 = vmatprep.subr.mxu0 0.0
        %1570 = vmatpush2.xpose.msra.mxu0 0.0
        %1571 = vmatprep.subr.mxu0 0.0
        %1572 = vmatpush2.xpose.msra.mxu0 0.0
        %1573 = vmatprep.subr.mxu0 0.0
        %1574 = vmatpush2.xpose.msra.mxu0 0.0
        %1575 = vmatprep.subr.mxu0 0.0
        %1576 = vmatpush2.xpose.msra.mxu0 0.0
        %1577 = vmatprep.subr.mxu0 0.0
        %1578 = vmatpush2.xpose.msra.mxu0 0.0
        %1579 = vmatprep.subr.mxu0 0.0
        %1580 = vmatpush2.xpose.msra.mxu0 0.0
        %1581 = vmatprep.subr.mxu0 0.0
        %1582 = vmatpush2.xpose.msra.mxu0 0.0
        %1583 = vmatprep.subr.mxu0 0.0
        %1584 = vmatpush2.xpose.msra.mxu0 0.0
        %1585 = vmatprep.subr.mxu0 0.0
        %1586 = vmatpush2.xpose.msra.mxu0 0.0
        %1587 = vmatprep.subr.mxu0 0.0
        %1588 = vmatpush2.xpose.msra.mxu0 0.0
        %1589 = vmatprep.subr.mxu0 0.0
        %1590 = vmatpush2.xpose.msra.mxu0 0.0
        %1591 = vmatprep.subr.mxu0 0.0
        %1592 = vmatpush2.xpose.msra.mxu0 0.0
        %1593 = vmatprep.subr.mxu0 0.0
        %1594 = vmatpush2.xpose.msra.mxu0 0.0
        %1595 = vmatprep.subr.mxu0 0.0
        %1596 = vmatpush2.xpose.msra.mxu0 0.0
        %1597 = vmatprep.subr.mxu0 0.0
        %1598 = vmatpush2.xpose.msra.mxu0 0.0
        %1599 = vmatprep.subr.mxu0 0.0
        %1600 = vmatpush2.xpose.msra.mxu0 0.0
        %1601 = vmatprep.mubr.f32.mxu0 0.0
        %1602 = vmatmul.mubr.f32.gmra.mxu0 %v1533
        %v1603 = vpop.f32.mrf.mxu0
        %v1604 = vadd.f32 0.0, %v1603
        %v1605 = vpop.f32.mrf.mxu0
        %1606 = vdwg.mxu0
        %v1607 = vsel %vm817, %v1604, -inf
        %1608 = vmax.xlane.f32.xlu0 %v1607
        %v1609 = vpop.xlane.xlu0 %1608
        %v1610 = vsub.f32 %v1604, %v1609
        %v1611 = vmul.f32 %v1610, 1.442695
        %v1612 = vpow.pop %v1611
        %v1613 = vsel %vm817, %v1612, 0.0
        %1614 = vadd.xlane.f32.xlu0 %v1613
        %v1615 = vpop.xlane.xlu0 %1614
        %v1616 = vrcp.pop %v1615
        %v1617 = vmul.f32 %v1612, %v1616
        %1618 = vrot.lane.b32.xlu0 %v810, 104
        %v1619 = vpop.permute.xlu0 %1618
        %v1622 = vsel %vm817, %v1617, 0
        %1624 = vmatprep.subr.mxu0 0.0
        %1625 = vmatpush1.msra.mxu0 0.0
        %1626 = vmatprep.subr.mxu0 0.0
        %1627 = vmatpush1.msra.mxu0 0.0
        %1628 = vmatprep.subr.mxu0 0.0
        %1629 = vmatpush1.msra.mxu0 0.0
        %1630 = vmatprep.subr.mxu0 0.0
        %1631 = vmatpush1.msra.mxu0 0.0
        %1632 = vmatprep.subr.mxu0 0.0
        %1633 = vmatpush1.msra.mxu0 0.0
        %1634 = vmatprep.subr.mxu0 0.0
        %1635 = vmatpush1.msra.mxu0 0.0
        %1636 = vmatprep.subr.mxu0 0.0
        %1637 = vmatpush1.msra.mxu0 0.0
        %1638 = vmatprep.subr.mxu0 0.0
        %1639 = vmatpush1.msra.mxu0 0.0
        %1640 = vmatprep.subr.mxu0 0.0
        %1641 = vmatpush1.msra.mxu0 0.0
        %1642 = vmatprep.subr.mxu0 0.0
        %1643 = vmatpush1.msra.mxu0 0.0
        %1644 = vmatprep.subr.mxu0 0.0
        %1645 = vmatpush1.msra.mxu0 0.0
        %1646 = vmatprep.subr.mxu0 0.0
        %1647 = vmatpush1.msra.mxu0 0.0
        %1648 = vmatprep.subr.mxu0 0.0
        %1649 = vmatpush1.msra.mxu0 0.0
        %1650 = vmatprep.subr.mxu0 0.0
        %1651 = vmatpush1.msra.mxu0 0.0
        %1652 = vmatprep.subr.mxu0 0.0
        %1653 = vmatpush1.msra.mxu0 0.0
        %1654 = vmatprep.subr.mxu0 0.0
        %1655 = vmatpush1.msra.mxu0 %v1619
        %1656 = vmatprep.subr.mxu0 0.0
        %1657 = vmatpush2.msra.mxu0 0.0
        %1658 = vmatprep.subr.mxu0 0.0
        %1659 = vmatpush2.msra.mxu0 0.0
        %1660 = vmatprep.subr.mxu0 0.0
        %1661 = vmatpush2.msra.mxu0 0.0
        %1662 = vmatprep.subr.mxu0 0.0
        %1663 = vmatpush2.msra.mxu0 0.0
        %1664 = vmatprep.subr.mxu0 0.0
        %1665 = vmatpush2.msra.mxu0 0.0
        %1666 = vmatprep.subr.mxu0 0.0
        %1667 = vmatpush2.msra.mxu0 0.0
        %1668 = vmatprep.subr.mxu0 0.0
        %1669 = vmatpush2.msra.mxu0 0.0
        %1670 = vmatprep.subr.mxu0 0.0
        %1671 = vmatpush2.msra.mxu0 0.0
        %1672 = vmatprep.subr.mxu0 0.0
        %1673 = vmatpush2.msra.mxu0 0.0
        %1674 = vmatprep.subr.mxu0 0.0
        %1675 = vmatpush2.msra.mxu0 0.0
        %1676 = vmatprep.subr.mxu0 0.0
        %1677 = vmatpush2.msra.mxu0 0.0
        %1678 = vmatprep.subr.mxu0 0.0
        %1679 = vmatpush2.msra.mxu0 0.0
        %1680 = vmatprep.subr.mxu0 0.0
        %1681 = vmatpush2.msra.mxu0 0.0
        %1682 = vmatprep.subr.mxu0 0.0
        %1683 = vmatpush2.msra.mxu0 0.0
        %1684 = vmatprep.subr.mxu0 0.0
        %1685 = vmatpush2.msra.mxu0 0.0
        %1686 = vmatprep.subr.mxu0 0.0
        %1687 = vmatpush2.msra.mxu0 0.0
        %1688 = vmatprep.mubr.f32.mxu0 0.0
        %1689 = vmatmul.mubr.f32.gmra.mxu0 %v1622
        %v1690 = vpop.f32.mrf.mxu0
        %v1691 = vadd.f32 0.0, %v1690
        %v1692 = vpop.f32.mrf.mxu0
        %1693 = vdwg.mxu0
        %v1695 = vsel %vm817, %v1691, 0
        %1697 = vmatprep.subr.mxu0 0.0
        %1698 = vmatpush1.msra.mxu0 0.0
        %1699 = vmatprep.subr.mxu0 0.0
        %1700 = vmatpush1.msra.mxu0 0.0
        %1701 = vmatprep.subr.mxu0 0.0
        %1702 = vmatpush1.msra.mxu0 0.0
        %1703 = vmatprep.subr.mxu0 0.0
        %1704 = vmatpush1.msra.mxu0 0.0
        %1705 = vmatprep.subr.mxu0 0.0
        %1706 = vmatpush1.msra.mxu0 0.0
        %1707 = vmatprep.subr.mxu0 0.0
        %1708 = vmatpush1.msra.mxu0 0.0
        %1709 = vmatprep.subr.mxu0 0.0
        %1710 = vmatpush1.msra.mxu0 0.0
        %1711 = vmatprep.subr.mxu0 0.0
        %1712 = vmatpush1.msra.mxu0 0.0
        %1713 = vmatprep.subr.mxu0 0.0
        %1714 = vmatpush1.msra.mxu0 0.0
        %1715 = vmatprep.subr.mxu0 0.0
        %1716 = vmatpush1.msra.mxu0 0.0
        %1717 = vmatprep.subr.mxu0 0.0
        %1718 = vmatpush1.msra.mxu0 0.0
        %1719 = vmatprep.subr.mxu0 0.0
        %1720 = vmatpush1.msra.mxu0 0.0
        %1721 = vmatprep.subr.mxu0 0.0
        %1722 = vmatpush1.msra.mxu0 0.0
        %1723 = vmatprep.subr.mxu0 0.0
        %1724 = vmatpush1.msra.mxu0 0.0
        %1725 = vmatprep.subr.mxu0 0.0
        %1726 = vmatpush1.msra.mxu0 0.0
        %1727 = vmatprep.subr.mxu0 0.0
        %1728 = vmatpush1.msra.mxu0 %v816
        %1729 = vmatprep.subr.mxu0 0.0
        %1730 = vmatpush2.msra.mxu0 0.0
        %1731 = vmatprep.subr.mxu0 0.0
        %1732 = vmatpush2.msra.mxu0 0.0
        %1733 = vmatprep.subr.mxu0 0.0
        %1734 = vmatpush2.msra.mxu0 0.0
        %1735 = vmatprep.subr.mxu0 0.0
        %1736 = vmatpush2.msra.mxu0 0.0
        %1737 = vmatprep.subr.mxu0 0.0
        %1738 = vmatpush2.msra.mxu0 0.0
        %1739 = vmatprep.subr.mxu0 0.0
        %1740 = vmatpush2.msra.mxu0 0.0
        %1741 = vmatprep.subr.mxu0 0.0
        %1742 = vmatpush2.msra.mxu0 0.0
        %1743 = vmatprep.subr.mxu0 0.0
        %1744 = vmatpush2.msra.mxu0 0.0
        %1745 = vmatprep.subr.mxu0 0.0
        %1746 = vmatpush2.msra.mxu0 0.0
        %1747 = vmatprep.subr.mxu0 0.0
        %1748 = vmatpush2.msra.mxu0 0.0
        %1749 = vmatprep.subr.mxu0 0.0
        %1750 = vmatpush2.msra.mxu0 0.0
        %1751 = vmatprep.subr.mxu0 0.0
        %1752 = vmatpush2.msra.mxu0 0.0
        %1753 = vmatprep.subr.mxu0 0.0
        %1754 = vmatpush2.msra.mxu0 0.0
        %1755 = vmatprep.subr.mxu0 0.0
        %1756 = vmatpush2.msra.mxu0 0.0
        %1757 = vmatprep.subr.mxu0 0.0
        %1758 = vmatpush2.msra.mxu0 0.0
        %1759 = vmatprep.subr.mxu0 0.0
        %1760 = vmatpush2.msra.mxu0 0.0
        %1761 = vmatprep.mubr.f32.mxu0 0.0
        %1762 = vmatmul.mubr.f32.gmra.mxu0 %v1695
        %v1763 = vpop.f32.mrf.mxu0
        %v1764 = vadd.f32 0.0, %v1763
        %v1765 = vpop.f32.mrf.mxu0
        %1766 = vdwg.mxu0
        %v1767 = vadd.f32 %v1528, %v1764
        %v1768 = vld [vmem:[%s8] sm:$0x1]
        %v1770 = vlaneseq
        %v1771 = vshrl.u32 %v1770, 7
        %v1772 = vsub.s32 0, %v1771
        %v1773 = vrot.slane %v1768, %v1772
        %v1775 = vadd.f32 %v1767, %v1773
        %v1776 = vld [vmem:[%s513] sm:$0xff]
        %v1777 = vadd.f32 %v1776, %v1775
        %v1778 = vld [vmem:[%s9] sm:$0x1]
        %v1779 = vld [vmem:[%s10] sm:$0x1]
        %v1780 = vsel %vm576, %v1777, 0.0
        %1781 = vadd.xlane.f32.xlu0 %v1780
        %v1782 = vpop.xlane.xlu0 %1781
        %v1783 = vrcp.pop 32.0
        %v1784 = vmul.f32 %v1782, %v1783
        %v1785 = vsub.f32 %v1777, %v1784
        %v1786 = vmul.f32 %v1785, %v1785
        %v1787 = vsel %vm576, %v1786, 0.0
        %1788 = vadd.xlane.f32.xlu0 %v1787
        %v1789 = vpop.xlane.xlu0 %1788
        %v1790 = vmul.f32 %v1789, %v1783
        %v1791 = vadd.f32 %v1790, 1e-05
        %v1792 = vrsqrt.pop %v1791
        %v1793 = vmul.f32 %v1785, %v1792
        %v1795 = vlaneseq
        %v1796 = vshrl.u32 %v1795, 7
        %v1797 = vsub.s32 0, %v1796
        %v1798 = vrot.slane %v1778, %v1797
        %v1800 = vmul.f32 %v1793, %v1798
        %v1802 = vlaneseq
        %v1803 = vshrl.u32 %v1802, 7
        %v1804 = vsub.s32 0, %v1803
        %v1805 = vrot.slane %v1779, %v1804
        %v1807 = vadd.f32 %v1800, %v1805
        %v1808 = vld [vmem:[%s11] sm:$0xff]
        %v1809 = vld [vmem:[%s11 + $0x8] sm:$0xff]
        %v1810 = vld [vmem:[%s11 + $0x10] sm:$0xff]
        %v1811 = vld [vmem:[%s11 + $0x18] sm:$0xff]
        %v1812 = vld [vmem:[%s12] sm:$0x1]
        %v1814 = vlaneseq
        %v1815 = vshrl.u32 %v1814, 7
        %v1816 = vsub.s32 0, %v1815
        %v1817 = vrot.slane %v1812, %v1816
        %v1820 = vsel %vm576, %v1807, 0
        %1822 = vmatprep.subr.mxu0 0.0
        %1823 = vmatpush1.msra.mxu0 0.0
        %1824 = vmatprep.subr.mxu0 0.0
        %1825 = vmatpush1.msra.mxu0 0.0
        %1826 = vmatprep.subr.mxu0 0.0
        %1827 = vmatpush1.msra.mxu0 0.0
        %1828 = vmatprep.subr.mxu0 0.0
        %1829 = vmatpush1.msra.mxu0 0.0
        %1830 = vmatprep.subr.mxu0 0.0
        %1831 = vmatpush1.msra.mxu0 0.0
        %1832 = vmatprep.subr.mxu0 0.0
        %1833 = vmatpush1.msra.mxu0 0.0
        %1834 = vmatprep.subr.mxu0 0.0
        %1835 = vmatpush1.msra.mxu0 0.0
        %1836 = vmatprep.subr.mxu0 0.0
        %1837 = vmatpush1.msra.mxu0 0.0
        %1838 = vmatprep.subr.mxu0 0.0
        %1839 = vmatpush1.msra.mxu0 0.0
        %1840 = vmatprep.subr.mxu0 0.0
        %1841 = vmatpush1.msra.mxu0 0.0
        %1842 = vmatprep.subr.mxu0 0.0
        %1843 = vmatpush1.msra.mxu0 0.0
        %1844 = vmatprep.subr.mxu0 0.0
        %1845 = vmatpush1.msra.mxu0 0.0
        %1846 = vmatprep.subr.mxu0 0.0
        %1847 = vmatpush1.msra.mxu0 %v1811
        %1848 = vmatprep.subr.mxu0 0.0
        %1849 = vmatpush1.msra.mxu0 %v1810
        %1850 = vmatprep.subr.mxu0 0.0
        %1851 = vmatpush1.msra.mxu0 %v1809
        %1852 = vmatprep.subr.mxu0 0.0
        %1853 = vmatpush1.msra.mxu0 %v1808
        %1854 = vmatprep.subr.mxu0 0.0
        %1855 = vmatpush2.msra.mxu0 0.0
        %1856 = vmatprep.subr.mxu0 0.0
        %1857 = vmatpush2.msra.mxu0 0.0
        %1858 = vmatprep.subr.mxu0 0.0
        %1859 = vmatpush2.msra.mxu0 0.0
        %1860 = vmatprep.subr.mxu0 0.0
        %1861 = vmatpush2.msra.mxu0 0.0
        %1862 = vmatprep.subr.mxu0 0.0
        %1863 = vmatpush2.msra.mxu0 0.0
        %1864 = vmatprep.subr.mxu0 0.0
        %1865 = vmatpush2.msra.mxu0 0.0
        %1866 = vmatprep.subr.mxu0 0.0
        %1867 = vmatpush2.msra.mxu0 0.0
        %1868 = vmatprep.subr.mxu0 0.0
        %1869 = vmatpush2.msra.mxu0 0.0
        %1870 = vmatprep.subr.mxu0 0.0
        %1871 = vmatpush2.msra.mxu0 0.0
        %1872 = vmatprep.subr.mxu0 0.0
        %1873 = vmatpush2.msra.mxu0 0.0
        %1874 = vmatprep.subr.mxu0 0.0
        %1875 = vmatpush2.msra.mxu0 0.0
        %1876 = vmatprep.subr.mxu0 0.0
        %1877 = vmatpush2.msra.mxu0 0.0
        %1878 = vmatprep.subr.mxu0 0.0
        %1879 = vmatpush2.msra.mxu0 0.0
        %1880 = vmatprep.subr.mxu0 0.0
        %1881 = vmatpush2.msra.mxu0 0.0
        %1882 = vmatprep.subr.mxu0 0.0
        %1883 = vmatpush2.msra.mxu0 0.0
        %1884 = vmatprep.subr.mxu0 0.0
        %1885 = vmatpush2.msra.mxu0 0.0
        %1886 = vmatprep.mubr.f32.mxu0 0.0
        %1887 = vmatmul.mubr.f32.gmra.mxu0 %v1820
        %v1888 = vpop.f32.mrf.mxu0
        %v1889 = vadd.f32 %v1817, %v1888
        %v1890 = vpop.f32.mrf.mxu0
        %1891 = vdwg.mxu0
        %v1892 = vmax.f32 %v1889, 0.0
        %v1893 = vld [vmem:[%s13] sm:$0xff]
        %v1894 = vld [vmem:[%s13 + $0x8] sm:$0xff]
        %v1895 = vld [vmem:[%s13 + $0x10] sm:$0xff]
        %v1896 = vld [vmem:[%s13 + $0x18] sm:$0xff]
        %v1897 = vld [vmem:[%s13 + $0x20] sm:$0xff]
        %v1898 = vld [vmem:[%s13 + $0x28] sm:$0xff]
        %v1899 = vld [vmem:[%s13 + $0x30] sm:$0xff]
        %v1900 = vld [vmem:[%s13 + $0x38] sm:$0xff]
        %v1901 = vld [vmem:[%s13 + $0x40] sm:$0xff]
        %v1902 = vld [vmem:[%s13 + $0x48] sm:$0xff]
        %v1903 = vld [vmem:[%s13 + $0x50] sm:$0xff]
        %v1904 = vld [vmem:[%s13 + $0x58] sm:$0xff]
        %v1905 = vld [vmem:[%s13 + $0x60] sm:$0xff]
        %v1906 = vld [vmem:[%s13 + $0x68] sm:$0xff]
        %v1907 = vld [vmem:[%s13 + $0x70] sm:$0xff]
        %v1908 = vld [vmem:[%s13 + $0x78] sm:$0xff]
        %v1909 = vld [vmem:[%s14] sm:$0x1]
        %v1911 = vlaneseq
        %v1912 = vshrl.u32 %v1911, 7
        %v1913 = vsub.s32 0, %v1912
        %v1914 = vrot.slane %v1909, %v1913
        %1916 = vmatprep.subr.mxu0 0.0
        %1917 = vmatpush1.msra.mxu0 %v1908
        %1918 = vmatprep.subr.mxu0 0.0
        %1919 = vmatpush1.msra.mxu0 %v1907
        %1920 = vmatprep.subr.mxu0 0.0
        %1921 = vmatpush1.msra.mxu0 %v1906
        %1922 = vmatprep.subr.mxu0 0.0
        %1923 = vmatpush1.msra.mxu0 %v1905
        %1924 = vmatprep.subr.mxu0 0.0
        %1925 = vmatpush1.msra.mxu0 %v1904
        %1926 = vmatprep.subr.mxu0 0.0
        %1927 = vmatpush1.msra.mxu0 %v1903
        %1928 = vmatprep.subr.mxu0 0.0
        %1929 = vmatpush1.msra.mxu0 %v1902
        %1930 = vmatprep.subr.mxu0 0.0
        %1931 = vmatpush1.msra.mxu0 %v1901
        %1932 = vmatprep.subr.mxu0 0.0
        %1933 = vmatpush1.msra.mxu0 %v1900
        %1934 = vmatprep.subr.mxu0 0.0
        %1935 = vmatpush1.msra.mxu0 %v1899
        %1936 = vmatprep.subr.mxu0 0.0
        %1937 = vmatpush1.msra.mxu0 %v1898
        %1938 = vmatprep.subr.mxu0 0.0
        %1939 = vmatpush1.msra.mxu0 %v1897
        %1940 = vmatprep.subr.mxu0 0.0
        %1941 = vmatpush1.msra.mxu0 %v1896
        %1942 = vmatprep.subr.mxu0 0.0
        %1943 = vmatpush1.msra.mxu0 %v1895
        %1944 = vmatprep.subr.mxu0 0.0
        %1945 = vmatpush1.msra.mxu0 %v1894
        %1946 = vmatprep.subr.mxu0 0.0
        %1947 = vmatpush1.msra.mxu0 %v1893
        %1948 = vmatprep.subr.mxu0 0.0
        %1949 = vmatpush2.msra.mxu0 0.0
        %1950 = vmatprep.subr.mxu0 0.0
        %1951 = vmatpush2.msra.mxu0 0.0
        %1952 = vmatprep.subr.mxu0 0.0
        %1953 = vmatpush2.msra.mxu0 0.0
        %1954 = vmatprep.subr.mxu0 0.0
        %1955 = vmatpush2.msra.mxu0 0.0
        %1956 = vmatprep.subr.mxu0 0.0
        %1957 = vmatpush2.msra.mxu0 0.0
        %1958 = vmatprep.subr.mxu0 0.0
        %1959 = vmatpush2.msra.mxu0 0.0
        %1960 = vmatprep.subr.mxu0 0.0
        %1961 = vmatpush2.msra.mxu0 0.0
        %1962 = vmatprep.subr.mxu0 0.0
        %1963 = vmatpush2.msra.mxu0 0.0
        %1964 = vmatprep.subr.mxu0 0.0
        %1965 = vmatpush2.msra.mxu0 0.0
        %1966 = vmatprep.subr.mxu0 0.0
        %1967 = vmatpush2.msra.mxu0 0.0
        %1968 = vmatprep.subr.mxu0 0.0
        %1969 = vmatpush2.msra.mxu0 0.0
        %1970 = vmatprep.subr.mxu0 0.0
        %1971 = vmatpush2.msra.mxu0 0.0
        %1972 = vmatprep.subr.mxu0 0.0
        %1973 = vmatpush2.msra.mxu0 0.0
        %1974 = vmatprep.subr.mxu0 0.0
        %1975 = vmatpush2.msra.mxu0 0.0
        %1976 = vmatprep.subr.mxu0 0.0
        %1977 = vmatpush2.msra.mxu0 0.0
        %1978 = vmatprep.subr.mxu0 0.0
        %1979 = vmatpush2.msra.mxu0 0.0
        %1980 = vmatprep.mubr.f32.mxu0 0.0
        %1981 = vmatmul.mubr.f32.gmra.mxu0 %v1892
        %v1982 = vpop.f32.mrf.mxu0
        %v1983 = vadd.f32 %v1914, %v1982
        %v1984 = vpop.f32.mrf.mxu0
        %1985 = vdwg.mxu0
        %v1986 = vadd.f32 %v1807, %v1983
        %v1987 = vld [vmem:[%s15] sm:$0x1]
        %v1988 = vld [vmem:[%s16] sm:$0x1]
        %v1989 = vsel %vm576, %v1986, 0.0
        %1990 = vadd.xlane.f32.xlu0 %v1989
        %v1991 = vpop.xlane.xlu0 %1990
        %v1992 = vmul.f32 %v1991, %v1783
        %v1993 = vsub.f32 %v1986, %v1992
        %v1994 = vmul.f32 %v1993, %v1993
        %v1995 = vsel %vm576, %v1994, 0.0
        %1996 = vadd.xlane.f32.xlu0 %v1995
        %v1997 = vpop.xlane.xlu0 %1996
        %v1998 = vmul.f32 %v1997, %v1783
        %v1999 = vadd.f32 %v1998, 1e-05
        %v2000 = vrsqrt.pop %v1999
        %v2001 = vmul.f32 %v1993, %v2000
        %v2003 = vlaneseq
        %v2004 = vshrl.u32 %v2003, 7
        %v2005 = vsub.s32 0, %v2004
        %v2006 = vrot.slane %v1987, %v2005
        %v2008 = vmul.f32 %v2001, %v2006
        %v2010 = vlaneseq
        %v2011 = vshrl.u32 %v2010, 7
        %v2012 = vsub.s32 0, %v2011
        %v2013 = vrot.slane %v1988, %v2012
        %v2015 = vadd.f32 %v2008, %v2013
        %2016 = vst.msk [vmem:[%s563] sm:$0xff] %vm576, %v2015
        %s2017 = sand.u32 %s404, 1
        %s2018 = scalar_lea.sflag [#allocation4], %s2017
        %s2019 = sand.u32 %s404, 1
        %s2020 = smul.addr %s2019, 8
        %s2021 = scalar_lea.vmem [#allocation5], %s2020
        // Predicated region
        $region93: #{tpu_custom_call.1} parent=87 // pred_check
          %p2022 = pneg %p414
        $region94: #{tpu_custom_call.1} parent=87 // pred_check_branch
          %2024 = sbr.rel (%p2022) target = $region96
        $region95: #{tpu_custom_call.1} parent=87 // pred_region
          %s2026 = ssub.s32 128, 128
          %2027 = vsyncadd %s2018, %s2026
          %s2028 = smul.addr %s34, 128
          %s2029 = scalar_lea.hbm %s17, %s2028
          %s2031 = sshll.u32 %s2021, 4
          %s2032 = int_to_ptr.vmem [resolvable:$true] %s2031
          %2034 = dma.vmem_to_hbm [thread:$0]  %s2032, 128, %s2029, %s2018
        $region96: #{tpu_custom_call.1} parent=87 // pred_fallthru
          _
      $region88: #{tpu_custom_call.1} parent=5 // pred_fallthru
        _
      %p2035 = scmp.le.s32.totalorder 2, %s29
      // Predicated region
      $region97: #{tpu_custom_call.1} parent=5 // pred_check
        %p2036 = pneg %p2035
      $region98: #{tpu_custom_call.1} parent=5 // pred_check_branch
        %2038 = sbr.rel (%p2036) target = $region100
      $region99: #{tpu_custom_call.1} parent=5 // pred_region
        %s2039 = ssub.s32 %s29, 2
        // Predicated region
        $region101: #{tpu_custom_call.1} parent=99 // pred_check
          %p2040 = pneg %p420
        $region102: #{tpu_custom_call.1} parent=99 // pred_check_branch
          %2042 = sbr.rel (%p2040) target = $region104
        $region103: #{tpu_custom_call.1} parent=99 // pred_region
          %s2043 = sand.u32 %s405, 1
          %s2044 = scalar_lea.sflag [#allocation4], %s2043
          %s2045 = sand.u32 %s405, 1
          %s2046 = smul.addr %s2045, 8
          %s2047 = scalar_lea.vmem [#allocation5], %s2046
          %2048 = dma.done %s2044, 128
        $region104: #{tpu_custom_call.1} parent=99 // pred_fallthru
          _
      $region100: #{tpu_custom_call.1} parent=5 // pred_fallthru
        _
    $region6: #{tpu_custom_call.1} parent=1 // loop_footer
      %s33 = sadd.s32 1, %s29
    $region7: #{tpu_custom_call.1} parent=1 // loop_footer_branch
      %28 = sbr.rel target = $region3
    $region8: #{tpu_custom_call.1} parent=1 // loop_exit
      _
    %2049 = vsyncpa [#allocation3], 1
    %s2050 = scalar_lea.sflag [#allocation3], 1
    %2051 = vsyncpa %s2050, 1
    %2052 = vsyncpa [#allocation4], 1
    %s2053 = scalar_lea.sflag [#allocation4], 1
    %2054 = vsyncpa %s2053, 1

// kernel: tpu_custom_call.1
$region0: #{tpu_custom_call.1}
  #allocation0 [shape = 'u32[]', space=smem, size = 0x4, offset = 0x4, fixed_abs, tag = 'smem constant byte address 0x4 - core index']
  #allocation1 [shape = 'u32[144,128]{1,0:T(1,128)}', space=vmem, size = 0x12000, scoped, tag = 'internal scratch']
  %s0 = inlined_call_operand.hbm [shape: f32[16,32], index: 0, kind: input, shape index: {}]
  %s1 = inlined_call_operand.vmem [shape: f32[32,32], index: 1, kind: input, shape index: {}]
  %s2 = inlined_call_operand.vmem [shape: f32[32,32], index: 2, kind: input, shape index: {}]
  %s3 = inlined_call_operand.vmem [shape: f32[32,32], index: 3, kind: input, shape index: {}]
  %s4 = inlined_call_operand.vmem [shape: f32[1,32], index: 4, kind: input, shape index: {}]
  %s5 = inlined_call_operand.vmem [shape: f32[1,32], index: 5, kind: input, shape index: {}]
  %s6 = inlined_call_operand.vmem [shape: f32[1,32], index: 6, kind: input, shape index: {}]
  %s7 = inlined_call_operand.vmem [shape: f32[32,32], index: 7, kind: input, shape index: {}]
  %s8 = inlined_call_operand.vmem [shape: f32[1,32], index: 8, kind: input, shape index: {}]
  %s9 = inlined_call_operand.vmem [shape: f32[1,32], index: 9, kind: input, shape index: {}]
  %s10 = inlined_call_operand.vmem [shape: f32[1,32], index: 10, kind: input, shape index: {}]
  %s11 = inlined_call_operand.vmem [shape: f32[32,128], index: 11, kind: input, shape index: {}]
  %s12 = inlined_call_operand.vmem [shape: f32[1,128], index: 12, kind: input, shape index: {}]
  %s13 = inlined_call_operand.vmem [shape: f32[128,32], index: 13, kind: input, shape index: {}]
  %s14 = inlined_call_operand.vmem [shape: f32[1,32], index: 14, kind: input, shape index: {}]
  %s15 = inlined_call_operand.vmem [shape: f32[1,32], index: 15, kind: input, shape index: {}]
  %s16 = inlined_call_operand.vmem [shape: f32[1,32], index: 16, kind: input, shape index: {}]
  %s17 = inlined_call_operand.hbm [shape: f32[16,32], index: 17, kind: output, shape index: {}]
  %s18 = sld [smem:[#allocation0]]
  $region105: #{tpu_custom_call.1} parent=0
    _
  %s20 = ssub.s32 1, %s18
  %s21 = scalar_select 0, %s20, %s18
  $region1: #{tpu_custom_call.1} parent=0
    #allocation2 [shape = 'u8[8192]{0}', space=vmem, size = 0x2000, scoped, tag = 'input window, operand 0']
    #allocation3 [shape = 's32[2]{0}', space=sflag, size = 0x8, scoped, tag = 'scoped memory for tpu_custom_call.1']
    #allocation4 [shape = 's32[2]{0}', space=sflag, size = 0x8, scoped, tag = 'scoped memory for tpu_custom_call.1']
    #allocation5 [shape = 'u8[8192]{0}', space=vmem, size = 0x2000, scoped, tag = 'output window, operand 0']
    %22 = vsyncpa [#allocation3], 0
    %s23 = scalar_lea.sflag [#allocation3], 1
    %24 = vsyncpa %s23, 0
    %25 = vsyncpa [#allocation4], 0
    %s26 = scalar_lea.sflag [#allocation4], 1
    %27 = vsyncpa %s26, 0
    loop: start=0, step=1, limit=4
    $region2: #{tpu_custom_call.1} parent=1 // loop_pre_header
      _
    $region3: #{tpu_custom_call.1} parent=1 // loop_header
      %s29 = sphi 0, %s33
      %p30 = scmp.ge.s32.totalorder %s29, 4
      %s39 = sphi 0, %s41
      %s42 = sphi 0, %s39
      %s43 = sphi 0, %s42
      %s59 = sphi 0, %s43
      %s63 = sphi 0, %s63
      %s65 = sphi 0, %s63
      %s66 = sphi 0, %s65
      %s80 = sphi 0, %s66
      %s84 = sphi 0, %s84
      %s86 = sphi 0, %s84
      %s87 = sphi 0, %s86
      %s101 = sphi 0, %s87
      %s105 = sphi 0, %s105
      %s107 = sphi 0, %s105
      %s108 = sphi 0, %s107
      %s122 = sphi 0, %s108
      %s126 = sphi 0, %s126
      %s128 = sphi 0, %s126
      %s129 = sphi 0, %s128
      %s143 = sphi 0, %s129
      %s147 = sphi 0, %s147
      %s149 = sphi 0, %s147
      %s150 = sphi 0, %s149
      %s164 = sphi 0, %s150
      %s168 = sphi 0, %s168
      %s170 = sphi 0, %s168
      %s171 = sphi 0, %s170
      %s185 = sphi 0, %s171
      %s189 = sphi 0, %s189
      %s191 = sphi 0, %s189
      %s192 = sphi 0, %s191
      %s206 = sphi 0, %s192
      %s210 = sphi 0, %s210
      %s212 = sphi 0, %s210
      %s213 = sphi 0, %s212
      %s227 = sphi 0, %s213
      %s231 = sphi 0, %s231
      %s233 = sphi 0, %s231
      %s234 = sphi 0, %s233
      %s248 = sphi 0, %s234
      %s252 = sphi 0, %s252
      %s254 = sphi 0, %s252
      %s255 = sphi 0, %s254
      %s269 = sphi 0, %s255
      %s273 = sphi 0, %s273
      %s275 = sphi 0, %s273
      %s276 = sphi 0, %s275
      %s290 = sphi 0, %s276
      %s294 = sphi 0, %s294
      %s296 = sphi 0, %s294
      %s297 = sphi 0, %s296
      %s311 = sphi 0, %s297
      %s315 = sphi 0, %s315
      %s317 = sphi 0, %s315
      %s318 = sphi 0, %s317
      %s332 = sphi 0, %s318
      %s336 = sphi 0, %s336
      %s338 = sphi 0, %s336
      %s339 = sphi 0, %s338
      %s353 = sphi 0, %s339
      %s357 = sphi 0, %s357
      %s359 = sphi 0, %s357
      %s360 = sphi 0, %s359
      %s374 = sphi 0, %s360
      %s378 = sphi 0, %s378
      %s380 = sphi 0, %s378
      %s381 = sphi 0, %s380
      %s395 = sphi 0, %s381
      %s401 = sphi 0, %s403
      %s404 = sphi 0, %s401
      %s405 = sphi 0, %s404
      %s421 = sphi 0, %s405
    $region4: #{tpu_custom_call.1} parent=1 // loop_header_branch
      %32 = sbr.rel (%p30) target = $region8
    $region5: #{tpu_custom_call.1} parent=1 // loop_body
      %s34 = ssub.s32 %s29, 1
      %s35 = ssub.s32 %s29, 2
      %s36 = sadd.s32 %s29, 1
      %s37 = ssub.s32 %s29, %s36
      %p38 = scmp.eq.s32.totalorder %s37, 0
      %s40 = sadd.s32 %s39, 1
      %s41 = scalar_select %p38, %s39, %s40
      %p44 = pneg %p38
      %p45 = scmp.eq.s32.totalorder %s29, 1
      %p46 = por %p44, %p45
      %p47 = scmp.ne.s32.totalorder %s39, %s42
      %p48 = scmp.eq.s32.totalorder %s29, 0
      %p49 = por %p47, %p48
      %p50 = scmp.ne.s32.totalorder %s39, %s42
      %p51 = scmp.eq.s32.totalorder %s34, 1
      %p52 = por %p50, %p51
      %p53 = scmp.ne.s32.totalorder %s42, %s43
      %p54 = scmp.eq.s32.totalorder %s34, 0
      %p55 = por %p53, %p54
      %p56 = scmp.ne.s32.totalorder %s42, %s43
      %p57 = scmp.eq.s32.totalorder %s35, 1
      %p58 = por %p56, %p57
      %p60 = scmp.ne.s32.totalorder %s43, %s59
      %p61 = scmp.eq.s32.totalorder %s35, 0
      %p62 = por %p60, %p61
      %s64 = sadd.s32 %s63, 1
      %p67 = scmp.eq.s32.totalorder %s29, 1
      %p68 = scmp.ne.s32.totalorder %s63, %s65
      %p69 = scmp.eq.s32.totalorder %s29, 0
      %p70 = por %p68, %p69
      %p71 = scmp.ne.s32.totalorder %s63, %s65
      %p72 = scmp.eq.s32.totalorder %s34, 1
      %p73 = por %p71, %p72
      %p74 = scmp.ne.s32.totalorder %s65, %s66
      %p75 = scmp.eq.s32.totalorder %s34, 0
      %p76 = por %p74, %p75
      %p77 = scmp.ne.s32.totalorder %s65, %s66
      %p78 = scmp.eq.s32.totalorder %s35, 1
      %p79 = por %p77, %p78
      %p81 = scmp.ne.s32.totalorder %s66, %s80
      %p82 = scmp.eq.s32.totalorder %s35, 0
      %p83 = por %p81, %p82
      %s85 = sadd.s32 %s84, 1
      %p88 = scmp.eq.s32.totalorder %s29, 1
      %p89 = scmp.ne.s32.totalorder %s84, %s86
      %p90 = scmp.eq.s32.totalorder %s29, 0
      %p91 = por %p89, %p90
      %p92 = scmp.ne.s32.totalorder %s84, %s86
      %p93 = scmp.eq.s32.totalorder %s34, 1
      %p94 = por %p92, %p93
      %p95 = scmp.ne.s32.totalorder %s86, %s87
      %p96 = scmp.eq.s32.totalorder %s34, 0
      %p97 = por %p95, %p96
      %p98 = scmp.ne.s32.totalorder %s86, %s87
      %p99 = scmp.eq.s32.totalorder %s35, 1
      %p100 = por %p98, %p99
      %p102 = scmp.ne.s32.totalorder %s87, %s101
      %p103 = scmp.eq.s32.totalorder %s35, 0
      %p104 = por %p102, %p103
      %s106 = sadd.s32 %s105, 1
      %p109 = scmp.eq.s32.totalorder %s29, 1
      %p110 = scmp.ne.s32.totalorder %s105, %s107
      %p111 = scmp.eq.s32.totalorder %s29, 0
      %p112 = por %p110, %p111
      %p113 = scmp.ne.s32.totalorder %s105, %s107
      %p114 = scmp.eq.s32.totalorder %s34, 1
      %p115 = por %p113, %p114
      %p116 = scmp.ne.s32.totalorder %s107, %s108
      %p117 = scmp.eq.s32.totalorder %s34, 0
      %p118 = por %p116, %p117
      %p119 = scmp.ne.s32.totalorder %s107, %s108
      %p120 = scmp.eq.s32.totalorder %s35, 1
      %p121 = por %p119, %p120
      %p123 = scmp.ne.s32.totalorder %s108, %s122
      %p124 = scmp.eq.s32.totalorder %s35, 0
      %p125 = por %p123, %p124
      %s127 = sadd.s32 %s126, 1
      %p130 = scmp.eq.s32.totalorder %s29, 1
      %p131 = scmp.ne.s32.totalorder %s126, %s128
      %p132 = scmp.eq.s32.totalorder %s29, 0
      %p133 = por %p131, %p132
      %p134 = scmp.ne.s32.totalorder %s126, %s128
      %p135 = scmp.eq.s32.totalorder %s34, 1
      %p136 = por %p134, %p135
      %p137 = scmp.ne.s32.totalorder %s128, %s129
      %p138 = scmp.eq.s32.totalorder %s34, 0
      %p139 = por %p137, %p138
      %p140 = scmp.ne.s32.totalorder %s128, %s129
      %p141 = scmp.eq.s32.totalorder %s35, 1
      %p142 = por %p140, %p141
      %p144 = scmp.ne.s32.totalorder %s129, %s143
      %p145 = scmp.eq.s32.totalorder %s35, 0
      %p146 = por %p144, %p145
      %s148 = sadd.s32 %s147, 1
      %p151 = scmp.eq.s32.totalorder %s29, 1
      %p152 = scmp.ne.s32.totalorder %s147, %s149
      %p153 = scmp.eq.s32.totalorder %s29, 0
      %p154 = por %p152, %p153
      %p155 = scmp.ne.s32.totalorder %s147, %s149
      %p156 = scmp.eq.s32.totalorder %s34, 1
      %p157 = por %p155, %p156
      %p158 = scmp.ne.s32.totalorder %s149, %s150
      %p159 = scmp.eq.s32.totalorder %s34, 0
      %p160 = por %p158, %p159
      %p161 = scmp.ne.s32.totalorder %s149, %s150
      %p162 = scmp.eq.s32.totalorder %s35, 1
      %p163 = por %p161, %p162
      %p165 = scmp.ne.s32.totalorder %s150, %s164
      %p166 = scmp.eq.s32.totalorder %s35, 0
      %p167 = por %p165, %p166
      %s169 = sadd.s32 %s168, 1
      %p172 = scmp.eq.s32.totalorder %s29, 1
      %p173 = scmp.ne.s32.totalorder %s168, %s170
      %p174 = scmp.eq.s32.totalorder %s29, 0
      %p175 = por %p173, %p174
      %p176 = scmp.ne.s32.totalorder %s168, %s170
      %p177 = scmp.eq.s32.totalorder %s34, 1
      %p178 = por %p176, %p177
      %p179 = scmp.ne.s32.totalorder %s170, %s171
      %p180 = scmp.eq.s32.totalorder %s34, 0
      %p181 = por %p179, %p180
      %p182 = scmp.ne.s32.totalorder %s170, %s171
      %p183 = scmp.eq.s32.totalorder %s35, 1
      %p184 = por %p182, %p183
      %p186 = scmp.ne.s32.totalorder %s171, %s185
      %p187 = scmp.eq.s32.totalorder %s35, 0
      %p188 = por %p186, %p187
      %s190 = sadd.s32 %s189, 1
      %p193 = scmp.eq.s32.totalorder %s29, 1
      %p194 = scmp.ne.s32.totalorder %s189, %s191
      %p195 = scmp.eq.s32.totalorder %s29, 0
      %p196 = por %p194, %p195
      %p197 = scmp.ne.s32.totalorder %s189, %s191
      %p198 = scmp.eq.s32.totalorder %s34, 1
      %p199 = por %p197, %p198
      %p200 = scmp.ne.s32.totalorder %s191, %s192
      %p201 = scmp.eq.s32.totalorder %s34, 0
      %p202 = por %p200, %p201
      %p203 = scmp.ne.s32.totalorder %s191, %s192
      %p204 = scmp.eq.s32.totalorder %s35, 1
      %p205 = por %p203, %p204
      %p207 = scmp.ne.s32.totalorder %s192, %s206
      %p208 = scmp.eq.s32.totalorder %s35, 0
      %p209 = por %p207, %p208
      %s211 = sadd.s32 %s210, 1
      %p214 = scmp.eq.s32.totalorder %s29, 1
      %p215 = scmp.ne.s32.totalorder %s210, %s212
      %p216 = scmp.eq.s32.totalorder %s29, 0
      %p217 = por %p215, %p216
      %p218 = scmp.ne.s32.totalorder %s210, %s212
      %p219 = scmp.eq.s32.totalorder %s34, 1
      %p220 = por %p218, %p219
      %p221 = scmp.ne.s32.totalorder %s212, %s213
      %p222 = scmp.eq.s32.totalorder %s34, 0
      %p223 = por %p221, %p222
      %p224 = scmp.ne.s32.totalorder %s212, %s213
      %p225 = scmp.eq.s32.totalorder %s35, 1
      %p226 = por %p224, %p225
      %p228 = scmp.ne.s32.totalorder %s213, %s227
      %p229 = scmp.eq.s32.totalorder %s35, 0
      %p230 = por %p228, %p229
      %s232 = sadd.s32 %s231, 1
      %p235 = scmp.eq.s32.totalorder %s29, 1
      %p236 = scmp.ne.s32.totalorder %s231, %s233
      %p237 = scmp.eq.s32.totalorder %s29, 0
      %p238 = por %p236, %p237
      %p239 = scmp.ne.s32.totalorder %s231, %s233
      %p240 = scmp.eq.s32.totalorder %s34, 1
      %p241 = por %p239, %p240
      %p242 = scmp.ne.s32.totalorder %s233, %s234
      %p243 = scmp.eq.s32.totalorder %s34, 0
      %p244 = por %p242, %p243
      %p245 = scmp.ne.s32.totalorder %s233, %s234
      %p246 = scmp.eq.s32.totalorder %s35, 1
      %p247 = por %p245, %p246
      %p249 = scmp.ne.s32.totalorder %s234, %s248
      %p250 = scmp.eq.s32.totalorder %s35, 0
      %p251 = por %p249, %p250
      %s253 = sadd.s32 %s252, 1
      %p256 = scmp.eq.s32.totalorder %s29, 1
      %p257 = scmp.ne.s32.totalorder %s252, %s254
      %p258 = scmp.eq.s32.totalorder %s29, 0
      %p259 = por %p257, %p258
      %p260 = scmp.ne.s32.totalorder %s252, %s254
      %p261 = scmp.eq.s32.totalorder %s34, 1
      %p262 = por %p260, %p261
      %p263 = scmp.ne.s32.totalorder %s254, %s255
      %p264 = scmp.eq.s32.totalorder %s34, 0
      %p265 = por %p263, %p264
      %p266 = scmp.ne.s32.totalorder %s254, %s255
      %p267 = scmp.eq.s32.totalorder %s35, 1
      %p268 = por %p266, %p267
      %p270 = scmp.ne.s32.totalorder %s255, %s269
      %p271 = scmp.eq.s32.totalorder %s35, 0
      %p272 = por %p270, %p271
      %s274 = sadd.s32 %s273, 1
      %p277 = scmp.eq.s32.totalorder %s29, 1
      %p278 = scmp.ne.s32.totalorder %s273, %s275
      %p279 = scmp.eq.s32.totalorder %s29, 0
      %p280 = por %p278, %p279
      %p281 = scmp.ne.s32.totalorder %s273, %s275
      %p282 = scmp.eq.s32.totalorder %s34, 1
      %p283 = por %p281, %p282
      %p284 = scmp.ne.s32.totalorder %s275, %s276
      %p285 = scmp.eq.s32.totalorder %s34, 0
      %p286 = por %p284, %p285
      %p287 = scmp.ne.s32.totalorder %s275, %s276
      %p288 = scmp.eq.s32.totalorder %s35, 1
      %p289 = por %p287, %p288
      %p291 = scmp.ne.s32.totalorder %s276, %s290
      %p292 = scmp.eq.s32.totalorder %s35, 0
      %p293 = por %p291, %p292
      %s295 = sadd.s32 %s294, 1
      %p298 = scmp.eq.s32.totalorder %s29, 1
      %p299 = scmp.ne.s32.totalorder %s294, %s296
      %p300 = scmp.eq.s32.totalorder %s29, 0
      %p301 = por %p299, %p300
      %p302 = scmp.ne.s32.totalorder %s294, %s296
      %p303 = scmp.eq.s32.totalorder %s34, 1
      %p304 = por %p302, %p303
      %p305 = scmp.ne.s32.totalorder %s296, %s297
      %p306 = scmp.eq.s32.totalorder %s34, 0
      %p307 = por %p305, %p306
      %p308 = scmp.ne.s32.totalorder %s296, %s297
      %p309 = scmp.eq.s32.totalorder %s35, 1
      %p310 = por %p308, %p309
      %p312 = scmp.ne.s32.totalorder %s297, %s311
      %p313 = scmp.eq.s32.totalorder %s35, 0
      %p314 = por %p312, %p313
      %s316 = sadd.s32 %s315, 1
      %p319 = scmp.eq.s32.totalorder %s29, 1
      %p320 = scmp.ne.s32.totalorder %s315, %s317
      %p321 = scmp.eq.s32.totalorder %s29, 0
      %p322 = por %p320, %p321
      %p323 = scmp.ne.s32.totalorder %s315, %s317
      %p324 = scmp.eq.s32.totalorder %s34, 1
      %p325 = por %p323, %p324
      %p326 = scmp.ne.s32.totalorder %s317, %s318
      %p327 = scmp.eq.s32.totalorder %s34, 0
      %p328 = por %p326, %p327
      %p329 = scmp.ne.s32.totalorder %s317, %s318
      %p330 = scmp.eq.s32.totalorder %s35, 1
      %p331 = por %p329, %p330
      %p333 = scmp.ne.s32.totalorder %s318, %s332
      %p334 = scmp.eq.s32.totalorder %s35, 0
      %p335 = por %p333, %p334
      %s337 = sadd.s32 %s336, 1
      %p340 = scmp.eq.s32.totalorder %s29, 1
      %p341 = scmp.ne.s32.totalorder %s336, %s338
      %p342 = scmp.eq.s32.totalorder %s29, 0
      %p343 = por %p341, %p342
      %p344 = scmp.ne.s32.totalorder %s336, %s338
      %p345 = scmp.eq.s32.totalorder %s34, 1
      %p346 = por %p344, %p345
      %p347 = scmp.ne.s32.totalorder %s338, %s339
      %p348 = scmp.eq.s32.totalorder %s34, 0
      %p349 = por %p347, %p348
      %p350 = scmp.ne.s32.totalorder %s338, %s339
      %p351 = scmp.eq.s32.totalorder %s35, 1
      %p352 = por %p350, %p351
      %p354 = scmp.ne.s32.totalorder %s339, %s353
      %p355 = scmp.eq.s32.totalorder %s35, 0
      %p356 = por %p354, %p355
      %s358 = sadd.s32 %s357, 1
      %p361 = scmp.eq.s32.totalorder %s29, 1
      %p362 = scmp.ne.s32.totalorder %s357, %s359
      %p363 = scmp.eq.s32.totalorder %s29, 0
      %p364 = por %p362, %p363
      %p365 = scmp.ne.s32.totalorder %s357, %s359
      %p366 = scmp.eq.s32.totalorder %s34, 1
      %p367 = por %p365, %p366
      %p368 = scmp.ne.s32.totalorder %s359, %s360
      %p369 = scmp.eq.s32.totalorder %s34, 0
      %p370 = por %p368, %p369
      %p371 = scmp.ne.s32.totalorder %s359, %s360
      %p372 = scmp.eq.s32.totalorder %s35, 1
      %p373 = por %p371, %p372
      %p375 = scmp.ne.s32.totalorder %s360, %s374
      %p376 = scmp.eq.s32.totalorder %s35, 0
      %p377 = por %p375, %p376
      %s379 = sadd.s32 %s378, 1
      %p382 = scmp.eq.s32.totalorder %s29, 1
      %p383 = scmp.ne.s32.totalorder %s378, %s380
      %p384 = scmp.eq.s32.totalorder %s29, 0
      %p385 = por %p383, %p384
      %p386 = scmp.ne.s32.totalorder %s378, %s380
      %p387 = scmp.eq.s32.totalorder %s34, 1
      %p388 = por %p386, %p387
      %p389 = scmp.ne.s32.totalorder %s380, %s381
      %p390 = scmp.eq.s32.totalorder %s34, 0
      %p391 = por %p389, %p390
      %p392 = scmp.ne.s32.totalorder %s380, %s381
      %p393 = scmp.eq.s32.totalorder %s35, 1
      %p394 = por %p392, %p393
      %p396 = scmp.ne.s32.totalorder %s381, %s395
      %p397 = scmp.eq.s32.totalorder %s35, 0
      %p398 = por %p396, %p397
      %s399 = ssub.s32 %s29, %s36
      %p400 = scmp.eq.s32.totalorder %s399, 0
      %s402 = sadd.s32 %s401, 1
      %s403 = scalar_select %p400, %s401, %s402
      %p406 = pneg %p400
      %p407 = scmp.eq.s32.totalorder %s29, 1
      %p408 = por %p406, %p407
      %p409 = scmp.ne.s32.totalorder %s401, %s404
      %p410 = scmp.eq.s32.totalorder %s29, 0
      %p411 = por %p409, %p410
      %p412 = scmp.ne.s32.totalorder %s401, %s404
      %p413 = scmp.eq.s32.totalorder %s34, 1
      %p414 = por %p412, %p413
      %p415 = scmp.ne.s32.totalorder %s404, %s405
      %p416 = scmp.eq.s32.totalorder %s34, 0
      %p417 = por %p415, %p416
      %p418 = scmp.ne.s32.totalorder %s404, %s405
      %p419 = scmp.eq.s32.totalorder %s35, 1
      %p420 = por %p418, %p419
      %p422 = scmp.ne.s32.totalorder %s405, %s421
      %p423 = scmp.eq.s32.totalorder %s35, 0
      %p424 = por %p422, %p423
      %p425 = scmp.le.s32.totalorder 1, %s29
      %p426 = scmp.lt.s32.totalorder %s29, 3
      %p427 = pnand %p425, %p426
      %p428 = pneg %p427
      // Predicated region
      $region9: #{tpu_custom_call.1} parent=5 // pred_check
        _
      $region10: #{tpu_custom_call.1} parent=5 // pred_check_branch
        %430 = sbr.rel (%p427) target = $region12
      $region11: #{tpu_custom_call.1} parent=5 // pred_region
        %s431 = ssub.s32 %s29, 1
        // Predicated region
        $region13: #{tpu_custom_call.1} parent=11 // pred_check
          %p432 = pneg %p76
        $region14: #{tpu_custom_call.1} parent=11 // pred_check_branch
          %434 = sbr.rel (%p432) target = $region16
        $region15: #{tpu_custom_call.1} parent=11 // pred_region
          _
        $region16: #{tpu_custom_call.1} parent=11 // pred_fallthru
          _
        // Predicated region
        $region17: #{tpu_custom_call.1} parent=11 // pred_check
          %p435 = pneg %p97
        $region18: #{tpu_custom_call.1} parent=11 // pred_check_branch
          %437 = sbr.rel (%p435) target = $region20
        $region19: #{tpu_custom_call.1} parent=11 // pred_region
          _
        $region20: #{tpu_custom_call.1} parent=11 // pred_fallthru
          _
        // Predicated region
        $region21: #{tpu_custom_call.1} parent=11 // pred_check
          %p438 = pneg %p118
        $region22: #{tpu_custom_call.1} parent=11 // pred_check_branch
          %440 = sbr.rel (%p438) target = $region24
        $region23: #{tpu_custom_call.1} parent=11 // pred_region
          _
        $region24: #{tpu_custom_call.1} parent=11 // pred_fallthru
          _
        // Predicated region
        $region25: #{tpu_custom_call.1} parent=11 // pred_check
          %p441 = pneg %p139
        $region26: #{tpu_custom_call.1} parent=11 // pred_check_branch
          %443 = sbr.rel (%p441) target = $region28
        $region27: #{tpu_custom_call.1} parent=11 // pred_region
          _
        $region28: #{tpu_custom_call.1} parent=11 // pred_fallthru
          _
        // Predicated region
        $region29: #{tpu_custom_call.1} parent=11 // pred_check
          %p444 = pneg %p160
        $region30: #{tpu_custom_call.1} parent=11 // pred_check_branch
          %446 = sbr.rel (%p444) target = $region32
        $region31: #{tpu_custom_call.1} parent=11 // pred_region
          _
        $region32: #{tpu_custom_call.1} parent=11 // pred_fallthru
          _
        // Predicated region
        $region33: #{tpu_custom_call.1} parent=11 // pred_check
          %p447 = pneg %p181
        $region34: #{tpu_custom_call.1} parent=11 // pred_check_branch
          %449 = sbr.rel (%p447) target = $region36
        $region35: #{tpu_custom_call.1} parent=11 // pred_region
          _
        $region36: #{tpu_custom_call.1} parent=11 // pred_fallthru
          _
        // Predicated region
        $region37: #{tpu_custom_call.1} parent=11 // pred_check
          %p450 = pneg %p202
        $region38: #{tpu_custom_call.1} parent=11 // pred_check_branch
          %452 = sbr.rel (%p450) target = $region40
        $region39: #{tpu_custom_call.1} parent=11 // pred_region
          _
        $region40: #{tpu_custom_call.1} parent=11 // pred_fallthru
          _
        // Predicated region
        $region41: #{tpu_custom_call.1} parent=11 // pred_check
          %p453 = pneg %p223
        $region42: #{tpu_custom_call.1} parent=11 // pred_check_branch
          %455 = sbr.rel (%p453) target = $region44
        $region43: #{tpu_custom_call.1} parent=11 // pred_region
          _
        $region44: #{tpu_custom_call.1} parent=11 // pred_fallthru
          _
        // Predicated region
        $region45: #{tpu_custom_call.1} parent=11 // pred_check
          %p456 = pneg %p244
        $region46: #{tpu_custom_call.1} parent=11 // pred_check_branch
          %458 = sbr.rel (%p456) target = $region48
        $region47: #{tpu_custom_call.1} parent=11 // pred_region
          _
        $region48: #{tpu_custom_call.1} parent=11 // pred_fallthru
          _
        // Predicated region
        $region49: #{tpu_custom_call.1} parent=11 // pred_check
          %p459 = pneg %p265
        $region50: #{tpu_custom_call.1} parent=11 // pred_check_branch
          %461 = sbr.rel (%p459) target = $region52
        $region51: #{tpu_custom_call.1} parent=11 // pred_region
          _
        $region52: #{tpu_custom_call.1} parent=11 // pred_fallthru
          _
        // Predicated region
        $region53: #{tpu_custom_call.1} parent=11 // pred_check
          %p462 = pneg %p286
        $region54: #{tpu_custom_call.1} parent=11 // pred_check_branch
          %464 = sbr.rel (%p462) target = $region56
        $region55: #{tpu_custom_call.1} parent=11 // pred_region
          _
        $region56: #{tpu_custom_call.1} parent=11 // pred_fallthru
          _
        // Predicated region
        $region57: #{tpu_custom_call.1} parent=11 // pred_check
          %p465 = pneg %p307
        $region58: #{tpu_custom_call.1} parent=11 // pred_check_branch
          %467 = sbr.rel (%p465) target = $region60
        $region59: #{tpu_custom_call.1} parent=11 // pred_region
          _
        $region60: #{tpu_custom_call.1} parent=11 // pred_fallthru
          _
        // Predicated region
        $region61: #{tpu_custom_call.1} parent=11 // pred_check
          %p468 = pneg %p328
        $region62: #{tpu_custom_call.1} parent=11 // pred_check_branch
          %470 = sbr.rel (%p468) target = $region64
        $region63: #{tpu_custom_call.1} parent=11 // pred_region
          _
        $region64: #{tpu_custom_call.1} parent=11 // pred_fallthru
          _
        // Predicated region
        $region65: #{tpu_custom_call.1} parent=11 // pred_check
          %p471 = pneg %p349
        $region66: #{tpu_custom_call.1} parent=11 // pred_check_branch
          %473 = sbr.rel (%p471) target = $region68
        $region67: #{tpu_custom_call.1} parent=11 // pred_region
          _
        $region68: #{tpu_custom_call.1} parent=11 // pred_fallthru
          _
        // Predicated region
        $region69: #{tpu_custom_call.1} parent=11 // pred_check
          %p474 = pneg %p370
        $region70: #{tpu_custom_call.1} parent=11 // pred_check_branch
          %476 = sbr.rel (%p474) target = $region72
        $region71: #{tpu_custom_call.1} parent=11 // pred_region
          _
        $region72: #{tpu_custom_call.1} parent=11 // pred_fallthru
          _
        // Predicated region
        $region73: #{tpu_custom_call.1} parent=11 // pred_check
          %p477 = pneg %p391
        $region74: #{tpu_custom_call.1} parent=11 // pred_check_branch
          %479 = sbr.rel (%p477) target = $region76
        $region75: #{tpu_custom_call.1} parent=11 // pred_region
          _
        $region76: #{tpu_custom_call.1} parent=11 // pred_fallthru
          _
      $region12: #{tpu_custom_call.1} parent=5 // pred_fallthru
        _
      %p480 = scmp.lt.s32.totalorder %s29, 2
      // Predicated region
      $region77: #{tpu_custom_call.1} parent=5 // pred_check
        %p481 = pneg %p480
      $region78: #{tpu_custom_call.1} parent=5 // pred_check_branch
        %483 = sbr.rel (%p481) target = $region80
      $region79: #{tpu_custom_call.1} parent=5 // pred_region
        // Predicated region
        $region81: #{tpu_custom_call.1} parent=79 // pred_check
          %p484 = pneg %p49
        $region82: #{tpu_custom_call.1} parent=79 // pred_check_branch
          %486 = sbr.rel (%p484) target = $region84
        $region83: #{tpu_custom_call.1} parent=79 // pred_region
          %s487 = sand.u32 %s39, 1
          %s488 = scalar_lea.sflag [#allocation3], %s487
          %s489 = sand.u32 %s39, 1
          %s490 = smul.addr %s489, 8
          %s491 = scalar_lea.vmem [#allocation2], %s490
          %s493 = ssub.s32 128, 128
          %494 = vsyncadd %s488, %s493
          %s495 = smul.addr %s29, 128
          %s496 = scalar_lea.hbm %s0, %s495
          %s498 = sshll.u32 %s491, 4
          %s499 = int_to_ptr.vmem [resolvable:$true] %s498
          %501 = dma.hbm_to_vmem [thread:$0]  %s496, 128, %s499, %s488
        $region84: #{tpu_custom_call.1} parent=79 // pred_fallthru
          _
      $region80: #{tpu_custom_call.1} parent=5 // pred_fallthru
        _
      %p502 = scmp.le.s32.totalorder 1, %s29
      %p503 = scmp.lt.s32.totalorder %s29, 3
      %p504 = pnand %p502, %p503
      %p505 = pneg %p504
      // Predicated region
      $region85: #{tpu_custom_call.1} parent=5 // pred_check
        _
      $region86: #{tpu_custom_call.1} parent=5 // pred_check_branch
        %507 = sbr.rel (%p504) target = $region88
      $region87: #{tpu_custom_call.1} parent=5 // pred_region
        %s508 = ssub.s32 %s29, 1
        %s509 = sand.u32 %s42, 1
        %s510 = scalar_lea.sflag [#allocation3], %s509
        %s511 = sand.u32 %s42, 1
        %s512 = smul.addr %s511, 8
        %s513 = scalar_lea.vmem [#allocation2], %s512
        // Predicated region
        $region89: #{tpu_custom_call.1} parent=87 // pred_check
          %p514 = pneg %p55
        $region90: #{tpu_custom_call.1} parent=87 // pred_check_branch
          %516 = sbr.rel (%p514) target = $region92
        $region91: #{tpu_custom_call.1} parent=87 // pred_region
          %517 = dma.done %s510, 128
        $region92: #{tpu_custom_call.1} parent=87 // pred_fallthru
          _
        %s518 = sand.u32 %s42, 1
        %s519 = scalar_lea.sflag [#allocation3], %s518
        %s520 = sand.u32 %s42, 1
        %s521 = smul.addr %s520, 8
        %s522 = scalar_lea.vmem [#allocation2], %s521
        %p523 = pneg %p55
        %p524 = pneg %p52
        %p525 = pneg %p76
        %p526 = pneg %p73
        %p527 = pneg %p97
        %p528 = pneg %p94
        %p529 = pneg %p118
        %p530 = pneg %p115
        %p531 = pneg %p139
        %p532 = pneg %p136
        %p533 = pneg %p160
        %p534 = pneg %p157
        %p535 = pneg %p181
        %p536 = pneg %p178
        %p537 = pneg %p202
        %p538 = pneg %p199
        %p539 = pneg %p223
        %p540 = pneg %p220
        %p541 = pneg %p244
        %p542 = pneg %p241
        %p543 = pneg %p265
        %p544 = pneg %p262
        %p545 = pneg %p286
        %p546 = pneg %p283
        %p547 = pneg %p307
        %p548 = pneg %p304
        %p549 = pneg %p328
        %p550 = pneg %p325
        %p551 = pneg %p349
        %p552 = pneg %p346
        %p553 = pneg %p370
        %p554 = pneg %p367
        %p555 = pneg %p391
        %p556 = pneg %p388
        %p557 = pneg %p417
        %p558 = pneg %p414
        %s559 = sand.u32 %s404, 1
        %s560 = scalar_lea.sflag [#allocation4], %s559
        %s561 = sand.u32 %s404, 1
        %s562 = smul.addr %s561, 8
        %s563 = scalar_lea.vmem [#allocation5], %s562
        %v564 = vld [vmem:[%s513] sm:$0xff]
        %v565 = vld [vmem:[%s1] sm:$0xff]
        %v566 = vld [vmem:[%s1 + $0x8] sm:$0xff]
        %v567 = vld [vmem:[%s1 + $0x10] sm:$0xff]
        %v568 = vld [vmem:[%s1 + $0x18] sm:$0xff]
        %v569 = vld [vmem:[%s4] sm:$0x1]
        %v571 = vlaneseq
        %v572 = vshrl.u32 %v571, 7
        %v573 = vsub.s32 0, %v572
        %v574 = vrot.slane %v569, %v573
        %vm576 = vcmask 261120
        %v578 = vsel %vm576, %v564, 0
        %580 = vmatprep.subr.mxu0 0.0
        %581 = vmatpush1.msra.mxu0 0.0
        %582 = vmatprep.subr.mxu0 0.0
        %583 = vmatpush1.msra.mxu0 0.0
        %584 = vmatprep.subr.mxu0 0.0
        %585 = vmatpush1.msra.mxu0 0.0
        %586 = vmatprep.subr.mxu0 0.0
        %587 = vmatpush1.msra.mxu0 0.0
        %588 = vmatprep.subr.mxu0 0.0
        %589 = vmatpush1.msra.mxu0 0.0
        %590 = vmatprep.subr.mxu0 0.0
        %591 = vmatpush1.msra.mxu0 0.0
        %592 = vmatprep.subr.mxu0 0.0
        %593 = vmatpush1.msra.mxu0 0.0
        %594 = vmatprep.subr.mxu0 0.0
        %595 = vmatpush1.msra.mxu0 0.0
        %596 = vmatprep.subr.mxu0 0.0
        %597 = vmatpush1.msra.mxu0 0.0
        %598 = vmatprep.subr.mxu0 0.0
        %599 = vmatpush1.msra.mxu0 0.0
        %600 = vmatprep.subr.mxu0 0.0
        %601 = vmatpush1.msra.mxu0 0.0
        %602 = vmatprep.subr.mxu0 0.0
        %603 = vmatpush1.msra.mxu0 0.0
        %604 = vmatprep.subr.mxu0 0.0
        %605 = vmatpush1.msra.mxu0 %v568
        %606 = vmatprep.subr.mxu0 0.0
        %607 = vmatpush1.msra.mxu0 %v567
        %608 = vmatprep.subr.mxu0 0.0
        %609 = vmatpush1.msra.mxu0 %v566
        %610 = vmatprep.subr.mxu0 0.0
        %611 = vmatpush1.msra.mxu0 %v565
        %612 = vmatprep.subr.mxu0 0.0
        %613 = vmatpush2.msra.mxu0 0.0
        %614 = vmatprep.subr.mxu0 0.0
        %615 = vmatpush2.msra.mxu0 0.0
        %616 = vmatprep.subr.mxu0 0.0
        %617 = vmatpush2.msra.mxu0 0.0
        %618 = vmatprep.subr.mxu0 0.0
        %619 = vmatpush2.msra.mxu0 0.0
        %620 = vmatprep.subr.mxu0 0.0
        %621 = vmatpush2.msra.mxu0 0.0
        %622 = vmatprep.subr.mxu0 0.0
        %623 = vmatpush2.msra.mxu0 0.0
        %624 = vmatprep.subr.mxu0 0.0
        %625 = vmatpush2.msra.mxu0 0.0
        %626 = vmatprep.subr.mxu0 0.0
        %627 = vmatpush2.msra.mxu0 0.0
        %628 = vmatprep.subr.mxu0 0.0
        %629 = vmatpush2.msra.mxu0 0.0
        %630 = vmatprep.subr.mxu0 0.0
        %631 = vmatpush2.msra.mxu0 0.0
        %632 = vmatprep.subr.mxu0 0.0
        %633 = vmatpush2.msra.mxu0 0.0
        %634 = vmatprep.subr.mxu0 0.0
        %635 = vmatpush2.msra.mxu0 0.0
        %636 = vmatprep.subr.mxu0 0.0
        %637 = vmatpush2.msra.mxu0 0.0
        %638 = vmatprep.subr.mxu0 0.0
        %639 = vmatpush2.msra.mxu0 0.0
        %640 = vmatprep.subr.mxu0 0.0
        %641 = vmatpush2.msra.mxu0 0.0
        %642 = vmatprep.subr.mxu0 0.0
        %643 = vmatpush2.msra.mxu0 0.0
        %644 = vmatprep.mubr.f32.mxu0 0.0
        %645 = vmatmul.mubr.f32.gmra.mxu0 %v578
        %v646 = vpop.f32.mrf.mxu0
        %v647 = vadd.f32 %v574, %v646
        %v648 = vpop.f32.mrf.mxu0
        %649 = vdwg.mxu0
        %v650 = vmul.f32 %v647, 0.35355338
        %v651 = vld [vmem:[%s2] sm:$0xff]
        %v652 = vld [vmem:[%s2 + $0x8] sm:$0xff]
        %v653 = vld [vmem:[%s2 + $0x10] sm:$0xff]
        %v654 = vld [vmem:[%s2 + $0x18] sm:$0xff]
        %v655 = vld [vmem:[%s5] sm:$0x1]
        %v657 = vlaneseq
        %v658 = vshrl.u32 %v657, 7
        %v659 = vsub.s32 0, %v658
        %v660 = vrot.slane %v655, %v659
        %662 = vmatprep.subr.mxu0 0.0
        %663 = vmatpush1.msra.mxu0 0.0
        %664 = vmatprep.subr.mxu0 0.0
        %665 = vmatpush1.msra.mxu0 0.0
        %666 = vmatprep.subr.mxu0 0.0
        %667 = vmatpush1.msra.mxu0 0.0
        %668 = vmatprep.subr.mxu0 0.0
        %669 = vmatpush1.msra.mxu0 0.0
        %670 = vmatprep.subr.mxu0 0.0
        %671 = vmatpush1.msra.mxu0 0.0
        %672 = vmatprep.subr.mxu0 0.0
        %673 = vmatpush1.msra.mxu0 0.0
        %674 = vmatprep.subr.mxu0 0.0
        %675 = vmatpush1.msra.mxu0 0.0
        %676 = vmatprep.subr.mxu0 0.0
        %677 = vmatpush1.msra.mxu0 0.0
        %678 = vmatprep.subr.mxu0 0.0
        %679 = vmatpush1.msra.mxu0 0.0
        %680 = vmatprep.subr.mxu0 0.0
        %681 = vmatpush1.msra.mxu0 0.0
        %682 = vmatprep.subr.mxu0 0.0
        %683 = vmatpush1.msra.mxu0 0.0
        %684 = vmatprep.subr.mxu0 0.0
        %685 = vmatpush1.msra.mxu0 0.0
        %686 = vmatprep.subr.mxu0 0.0
        %687 = vmatpush1.msra.mxu0 %v654
        %688 = vmatprep.subr.mxu0 0.0
        %689 = vmatpush1.msra.mxu0 %v653
        %690 = vmatprep.subr.mxu0 0.0
        %691 = vmatpush1.msra.mxu0 %v652
        %692 = vmatprep.subr.mxu0 0.0
        %693 = vmatpush1.msra.mxu0 %v651
        %694 = vmatprep.subr.mxu0 0.0
        %695 = vmatpush2.msra.mxu0 0.0
        %696 = vmatprep.subr.mxu0 0.0
        %697 = vmatpush2.msra.mxu0 0.0
        %698 = vmatprep.subr.mxu0 0.0
        %699 = vmatpush2.msra.mxu0 0.0
        %700 = vmatprep.subr.mxu0 0.0
        %701 = vmatpush2.msra.mxu0 0.0
        %702 = vmatprep.subr.mxu0 0.0
        %703 = vmatpush2.msra.mxu0 0.0
        %704 = vmatprep.subr.mxu0 0.0
        %705 = vmatpush2.msra.mxu0 0.0
        %706 = vmatprep.subr.mxu0 0.0
        %707 = vmatpush2.msra.mxu0 0.0
        %708 = vmatprep.subr.mxu0 0.0
        %709 = vmatpush2.msra.mxu0 0.0
        %710 = vmatprep.subr.mxu0 0.0
        %711 = vmatpush2.msra.mxu0 0.0
        %712 = vmatprep.subr.mxu0 0.0
        %713 = vmatpush2.msra.mxu0 0.0
        %714 = vmatprep.subr.mxu0 0.0
        %715 = vmatpush2.msra.mxu0 0.0
        %716 = vmatprep.subr.mxu0 0.0
        %717 = vmatpush2.msra.mxu0 0.0
        %718 = vmatprep.subr.mxu0 0.0
        %719 = vmatpush2.msra.mxu0 0.0
        %720 = vmatprep.subr.mxu0 0.0
        %721 = vmatpush2.msra.mxu0 0.0
        %722 = vmatprep.subr.mxu0 0.0
        %723 = vmatpush2.msra.mxu0 0.0
        %724 = vmatprep.subr.mxu0 0.0
        %725 = vmatpush2.msra.mxu0 0.0
        %726 = vmatprep.mubr.f32.mxu0 0.0
        %727 = vmatmul.mubr.f32.gmra.mxu0 %v578
        %v728 = vpop.f32.mrf.mxu0
        %v729 = vadd.f32 %v660, %v728
        %v730 = vpop.f32.mrf.mxu0
        %731 = vdwg.mxu0
        %v732 = vld [vmem:[%s3] sm:$0xff]
        %v733 = vld [vmem:[%s3 + $0x8] sm:$0xff]
        %v734 = vld [vmem:[%s3 + $0x10] sm:$0xff]
        %v735 = vld [vmem:[%s3 + $0x18] sm:$0xff]
        %v736 = vld [vmem:[%s6] sm:$0x1]
        %v738 = vlaneseq
        %v739 = vshrl.u32 %v738, 7
        %v740 = vsub.s32 0, %v739
        %v741 = vrot.slane %v736, %v740
        %743 = vmatprep.subr.mxu0 0.0
        %744 = vmatpush1.msra.mxu0 0.0
        %745 = vmatprep.subr.mxu0 0.0
        %746 = vmatpush1.msra.mxu0 0.0
        %747 = vmatprep.subr.mxu0 0.0
        %748 = vmatpush1.msra.mxu0 0.0
        %749 = vmatprep.subr.mxu0 0.0
        %750 = vmatpush1.msra.mxu0 0.0
        %751 = vmatprep.subr.mxu0 0.0
        %752 = vmatpush1.msra.mxu0 0.0
        %753 = vmatprep.subr.mxu0 0.0
        %754 = vmatpush1.msra.mxu0 0.0
        %755 = vmatprep.subr.mxu0 0.0
        %756 = vmatpush1.msra.mxu0 0.0
        %757 = vmatprep.subr.mxu0 0.0
        %758 = vmatpush1.msra.mxu0 0.0
        %759 = vmatprep.subr.mxu0 0.0
        %760 = vmatpush1.msra.mxu0 0.0
        %761 = vmatprep.subr.mxu0 0.0
        %762 = vmatpush1.msra.mxu0 0.0
        %763 = vmatprep.subr.mxu0 0.0
        %764 = vmatpush1.msra.mxu0 0.0
        %765 = vmatprep.subr.mxu0 0.0
        %766 = vmatpush1.msra.mxu0 0.0
        %767 = vmatprep.subr.mxu0 0.0
        %768 = vmatpush1.msra.mxu0 %v735
        %769 = vmatprep.subr.mxu0 0.0
        %770 = vmatpush1.msra.mxu0 %v734
        %771 = vmatprep.subr.mxu0 0.0
        %772 = vmatpush1.msra.mxu0 %v733
        %773 = vmatprep.subr.mxu0 0.0
        %774 = vmatpush1.msra.mxu0 %v732
        %775 = vmatprep.subr.mxu0 0.0
        %776 = vmatpush2.msra.mxu0 0.0
        %777 = vmatprep.subr.mxu0 0.0
        %778 = vmatpush2.msra.mxu0 0.0
        %779 = vmatprep.subr.mxu0 0.0
        %780 = vmatpush2.msra.mxu0 0.0
        %781 = vmatprep.subr.mxu0 0.0
        %782 = vmatpush2.msra.mxu0 0.0
        %783 = vmatprep.subr.mxu0 0.0
        %784 = vmatpush2.msra.mxu0 0.0
        %785 = vmatprep.subr.mxu0 0.0
        %786 = vmatpush2.msra.mxu0 0.0
        %787 = vmatprep.subr.mxu0 0.0
        %788 = vmatpush2.msra.mxu0 0.0
        %789 = vmatprep.subr.mxu0 0.0
        %790 = vmatpush2.msra.mxu0 0.0
        %791 = vmatprep.subr.mxu0 0.0
        %792 = vmatpush2.msra.mxu0 0.0
        %793 = vmatprep.subr.mxu0 0.0
        %794 = vmatpush2.msra.mxu0 0.0
        %795 = vmatprep.subr.mxu0 0.0
        %796 = vmatpush2.msra.mxu0 0.0
        %797 = vmatprep.subr.mxu0 0.0
        %798 = vmatpush2.msra.mxu0 0.0
        %799 = vmatprep.subr.mxu0 0.0
        %800 = vmatpush2.msra.mxu0 0.0
        %801 = vmatprep.subr.mxu0 0.0
        %802 = vmatpush2.msra.mxu0 0.0
        %803 = vmatprep.subr.mxu0 0.0
        %804 = vmatpush2.msra.mxu0 0.0
        %805 = vmatprep.subr.mxu0 0.0
        %806 = vmatpush2.msra.mxu0 0.0
        %807 = vmatprep.mubr.f32.mxu0 0.0
        %808 = vmatmul.mubr.f32.gmra.mxu0 %v578
        %v809 = vpop.f32.mrf.mxu0
        %v810 = vadd.f32 %v741, %v809
        %v811 = vpop.f32.mrf.mxu0
        %812 = vdwg.mxu0
        %v813 = vld [vmem:[%s7] sm:$0xff]
        %v814 = vld [vmem:[%s7 + $0x8] sm:$0xff]
        %v815 = vld [vmem:[%s7 + $0x10] sm:$0xff]
        %v816 = vld [vmem:[%s7 + $0x18] sm:$0xff]
        %vm817 = vcmask 64512
        %v819 = vsel %vm817, %v650, 0
        %v822 = vsel %vm817, %v729, 0
        %824 = vmatprep.subr.mxu0 0.0
        %825 = vmatpush1.xpose.msra.mxu0 0.0
        %826 = vmatprep.subr.mxu0 0.0
        %827 = vmatpush1.xpose.msra.mxu0 0.0
        %828 = vmatprep.subr.mxu0 0.0
        %829 = vmatpush1.xpose.msra.mxu0 0.0
        %830 = vmatprep.subr.mxu0 0.0
        %831 = vmatpush1.xpose.msra.mxu0 0.0
        %832 = vmatprep.subr.mxu0 0.0
        %833 = vmatpush1.xpose.msra.mxu0 0.0
        %834 = vmatprep.subr.mxu0 0.0
        %835 = vmatpush1.xpose.msra.mxu0 0.0
        %836 = vmatprep.subr.mxu0 0.0
        %837 = vmatpush1.xpose.msra.mxu0 0.0
        %838 = vmatprep.subr.mxu0 0.0
        %839 = vmatpush1.xpose.msra.mxu0 0.0
        %840 = vmatprep.subr.mxu0 0.0
        %841 = vmatpush1.xpose.msra.mxu0 0.0
        %842 = vmatprep.subr.mxu0 0.0
        %843 = vmatpush1.xpose.msra.mxu0 0.0
        %844 = vmatprep.subr.mxu0 0.0
        %845 = vmatpush1.xpose.msra.mxu0 0.0
        %846 = vmatprep.subr.mxu0 0.0
        %847 = vmatpush1.xpose.msra.mxu0 0.0
        %848 = vmatprep.subr.mxu0 0.0
        %849 = vmatpush1.xpose.msra.mxu0 0.0
        %850 = vmatprep.subr.mxu0 0.0
        %851 = vmatpush1.xpose.msra.mxu0 0.0
        %852 = vmatprep.subr.mxu0 0.0
        %853 = vmatpush1.xpose.msra.mxu0 0.0
        %854 = vmatprep.subr.mxu0 0.0
        %855 = vmatpush1.xpose.msra.mxu0 %v822
        %856 = vmatprep.subr.mxu0 0.0
        %857 = vmatpush2.xpose.msra.mxu0 0.0
        %858 = vmatprep.subr.mxu0 0.0
        %859 = vmatpush2.xpose.msra.mxu0 0.0
        %860 = vmatprep.subr.mxu0 0.0
        %861 = vmatpush2.xpose.msra.mxu0 0.0
        %862 = vmatprep.subr.mxu0 0.0
        %863 = vmatpush2.xpose.msra.mxu0 0.0
        %864 = vmatprep.subr.mxu0 0.0
        %865 = vmatpush2.xpose.msra.mxu0 0.0
        %866 = vmatprep.subr.mxu0 0.0
        %867 = vmatpush2.xpose.msra.mxu0 0.0
        %868 = vmatprep.subr.mxu0 0.0
        %869 = vmatpush2.xpose.msra.mxu0 0.0
        %870 = vmatprep.subr.mxu0 0.0
        %871 = vmatpush2.xpose.msra.mxu0 0.0
        %872 = vmatprep.subr.mxu0 0.0
        %873 = vmatpush2.xpose.msra.mxu0 0.0
        %874 = vmatprep.subr.mxu0 0.0
        %875 = vmatpush2.xpose.msra.mxu0 0.0
        %876 = vmatprep.subr.mxu0 0.0
        %877 = vmatpush2.xpose.msra.mxu0 0.0
        %878 = vmatprep.subr.mxu0 0.0
        %879 = vmatpush2.xpose.msra.mxu0 0.0
        %880 = vmatprep.subr.mxu0 0.0
        %881 = vmatpush2.xpose.msra.mxu0 0.0
        %882 = vmatprep.subr.mxu0 0.0
        %883 = vmatpush2.xpose.msra.mxu0 0.0
        %884 = vmatprep.subr.mxu0 0.0
        %885 = vmatpush2.xpose.msra.mxu0 0.0
        %886 = vmatprep.subr.mxu0 0.0
        %887 = vmatpush2.xpose.msra.mxu0 0.0
        %888 = vmatprep.mubr.f32.mxu0 0.0
        %889 = vmatmul.mubr.f32.gmra.mxu0 %v819
        %v890 = vpop.f32.mrf.mxu0
        %v891 = vadd.f32 0.0, %v890
        %v892 = vpop.f32.mrf.mxu0
        %893 = vdwg.mxu0
        %v894 = vsel %vm817, %v891, -inf
        %895 = vmax.xlane.f32.xlu0 %v894
        %v896 = vpop.xlane.xlu0 %895
        %v897 = vsub.f32 %v891, %v896
        %v898 = vmul.f32 %v897, 1.442695
        %v899 = vpow.pop %v898
        %v900 = vsel %vm817, %v899, 0.0
        %901 = vadd.xlane.f32.xlu0 %v900
        %v902 = vpop.xlane.xlu0 %901
        %v903 = vrcp.pop %v902
        %v904 = vmul.f32 %v899, %v903
        %v906 = vsel %vm817, %v904, 0
        %908 = vmatprep.subr.mxu0 0.0
        %909 = vmatpush1.msra.mxu0 0.0
        %910 = vmatprep.subr.mxu0 0.0
        %911 = vmatpush1.msra.mxu0 0.0
        %912 = vmatprep.subr.mxu0 0.0
        %913 = vmatpush1.msra.mxu0 0.0
        %914 = vmatprep.subr.mxu0 0.0
        %915 = vmatpush1.msra.mxu0 0.0
        %916 = vmatprep.subr.mxu0 0.0
        %917 = vmatpush1.msra.mxu0 0.0
        %918 = vmatprep.subr.mxu0 0.0
        %919 = vmatpush1.msra.mxu0 0.0
        %920 = vmatprep.subr.mxu0 0.0
        %921 = vmatpush1.msra.mxu0 0.0
        %922 = vmatprep.subr.mxu0 0.0
        %923 = vmatpush1.msra.mxu0 0.0
        %924 = vmatprep.subr.mxu0 0.0
        %925 = vmatpush1.msra.mxu0 0.0
        %926 = vmatprep.subr.mxu0 0.0
        %927 = vmatpush1.msra.mxu0 0.0
        %928 = vmatprep.subr.mxu0 0.0
        %929 = vmatpush1.msra.mxu0 0.0
        %930 = vmatprep.subr.mxu0 0.0
        %931 = vmatpush1.msra.mxu0 0.0
        %932 = vmatprep.subr.mxu0 0.0
        %933 = vmatpush1.msra.mxu0 0.0
        %934 = vmatprep.subr.mxu0 0.0
        %935 = vmatpush1.msra.mxu0 0.0
        %936 = vmatprep.subr.mxu0 0.0
        %937 = vmatpush1.msra.mxu0 0.0
        %938 = vmatprep.subr.mxu0 0.0
        %939 = vmatpush1.msra.mxu0 %v810
        %940 = vmatprep.subr.mxu0 0.0
        %941 = vmatpush2.msra.mxu0 0.0
        %942 = vmatprep.subr.mxu0 0.0
        %943 = vmatpush2.msra.mxu0 0.0
        %944 = vmatprep.subr.mxu0 0.0
        %945 = vmatpush2.msra.mxu0 0.0
        %946 = vmatprep.subr.mxu0 0.0
        %947 = vmatpush2.msra.mxu0 0.0
        %948 = vmatprep.subr.mxu0 0.0
        %949 = vmatpush2.msra.mxu0 0.0
        %950 = vmatprep.subr.mxu0 0.0
        %951 = vmatpush2.msra.mxu0 0.0
        %952 = vmatprep.subr.mxu0 0.0
        %953 = vmatpush2.msra.mxu0 0.0
        %954 = vmatprep.subr.mxu0 0.0
        %955 = vmatpush2.msra.mxu0 0.0
        %956 = vmatprep.subr.mxu0 0.0
        %957 = vmatpush2.msra.mxu0 0.0
        %958 = vmatprep.subr.mxu0 0.0
        %959 = vmatpush2.msra.mxu0 0.0
        %960 = vmatprep.subr.mxu0 0.0
        %961 = vmatpush2.msra.mxu0 0.0
        %962 = vmatprep.subr.mxu0 0.0
        %963 = vmatpush2.msra.mxu0 0.0
        %964 = vmatprep.subr.mxu0 0.0
        %965 = vmatpush2.msra.mxu0 0.0
        %966 = vmatprep.subr.mxu0 0.0
        %967 = vmatpush2.msra.mxu0 0.0
        %968 = vmatprep.subr.mxu0 0.0
        %969 = vmatpush2.msra.mxu0 0.0
        %970 = vmatprep.subr.mxu0 0.0
        %971 = vmatpush2.msra.mxu0 0.0
        %972 = vmatprep.mubr.f32.mxu0 0.0
        %973 = vmatmul.mubr.f32.gmra.mxu0 %v906
        %v974 = vpop.f32.mrf.mxu0
        %v975 = vadd.f32 0.0, %v974
        %v976 = vpop.f32.mrf.mxu0
        %977 = vdwg.mxu0
        %978 = vrot.lane.b32.xlu0 %v650, 120
        %v979 = vpop.permute.xlu0 %978
        %980 = vrot.lane.b32.xlu0 %v729, 120
        %v981 = vpop.permute.xlu0 %980
        %v982 = vsel %vm817, %v979, 0
        %v984 = vsel %vm817, %v981, 0
        %986 = vmatprep.subr.mxu0 0.0
        %987 = vmatpush1.xpose.msra.mxu0 0.0
        %988 = vmatprep.subr.mxu0 0.0
        %989 = vmatpush1.xpose.msra.mxu0 0.0
        %990 = vmatprep.subr.mxu0 0.0
        %991 = vmatpush1.xpose.msra.mxu0 0.0
        %992 = vmatprep.subr.mxu0 0.0
        %993 = vmatpush1.xpose.msra.mxu0 0.0
        %994 = vmatprep.subr.mxu0 0.0
        %995 = vmatpush1.xpose.msra.mxu0 0.0
        %996 = vmatprep.subr.mxu0 0.0
        %997 = vmatpush1.xpose.msra.mxu0 0.0
        %998 = vmatprep.subr.mxu0 0.0
        %999 = vmatpush1.xpose.msra.mxu0 0.0
        %1000 = vmatprep.subr.mxu0 0.0
        %1001 = vmatpush1.xpose.msra.mxu0 0.0
        %1002 = vmatprep.subr.mxu0 0.0
        %1003 = vmatpush1.xpose.msra.mxu0 0.0
        %1004 = vmatprep.subr.mxu0 0.0
        %1005 = vmatpush1.xpose.msra.mxu0 0.0
        %1006 = vmatprep.subr.mxu0 0.0
        %1007 = vmatpush1.xpose.msra.mxu0 0.0
        %1008 = vmatprep.subr.mxu0 0.0
        %1009 = vmatpush1.xpose.msra.mxu0 0.0
        %1010 = vmatprep.subr.mxu0 0.0
        %1011 = vmatpush1.xpose.msra.mxu0 0.0
        %1012 = vmatprep.subr.mxu0 0.0
        %1013 = vmatpush1.xpose.msra.mxu0 0.0
        %1014 = vmatprep.subr.mxu0 0.0
        %1015 = vmatpush1.xpose.msra.mxu0 0.0
        %1016 = vmatprep.subr.mxu0 0.0
        %1017 = vmatpush1.xpose.msra.mxu0 %v984
        %1018 = vmatprep.subr.mxu0 0.0
        %1019 = vmatpush2.xpose.msra.mxu0 0.0
        %1020 = vmatprep.subr.mxu0 0.0
        %1021 = vmatpush2.xpose.msra.mxu0 0.0
        %1022 = vmatprep.subr.mxu0 0.0
        %1023 = vmatpush2.xpose.msra.mxu0 0.0
        %1024 = vmatprep.subr.mxu0 0.0
        %1025 = vmatpush2.xpose.msra.mxu0 0.0
        %1026 = vmatprep.subr.mxu0 0.0
        %1027 = vmatpush2.xpose.msra.mxu0 0.0
        %1028 = vmatprep.subr.mxu0 0.0
        %1029 = vmatpush2.xpose.msra.mxu0 0.0
        %1030 = vmatprep.subr.mxu0 0.0
        %1031 = vmatpush2.xpose.msra.mxu0 0.0
        %1032 = vmatprep.subr.mxu0 0.0
        %1033 = vmatpush2.xpose.msra.mxu0 0.0
        %1034 = vmatprep.subr.mxu0 0.0
        %1035 = vmatpush2.xpose.msra.mxu0 0.0
        %1036 = vmatprep.subr.mxu0 0.0
        %1037 = vmatpush2.xpose.msra.mxu0 0.0
        %1038 = vmatprep.subr.mxu0 0.0
        %1039 = vmatpush2.xpose.msra.mxu0 0.0
        %1040 = vmatprep.subr.mxu0 0.0
        %1041 = vmatpush2.xpose.msra.mxu0 0.0
        %1042 = vmatprep.subr.mxu0 0.0
        %1043 = vmatpush2.xpose.msra.mxu0 0.0
        %1044 = vmatprep.subr.mxu0 0.0
        %1045 = vmatpush2.xpose.msra.mxu0 0.0
        %1046 = vmatprep.subr.mxu0 0.0
        %1047 = vmatpush2.xpose.msra.mxu0 0.0
        %1048 = vmatprep.subr.mxu0 0.0
        %1049 = vmatpush2.xpose.msra.mxu0 0.0
        %1050 = vmatprep.mubr.f32.mxu0 0.0
        %1051 = vmatmul.mubr.f32.gmra.mxu0 %v982
        %v1052 = vpop.f32.mrf.mxu0
        %v1053 = vadd.f32 0.0, %v1052
        %v1054 = vpop.f32.mrf.mxu0
        %1055 = vdwg.mxu0
        %v1056 = vsel %vm817, %v1053, -inf
        %1057 = vmax.xlane.f32.xlu0 %v1056
        %v1058 = vpop.xlane.xlu0 %1057
        %v1059 = vsub.f32 %v1053, %v1058
        %v1060 = vmul.f32 %v1059, 1.442695
        %v1061 = vpow.pop %v1060
        %v1062 = vsel %vm817, %v1061, 0.0
        %1063 = vadd.xlane.f32.xlu0 %v1062
        %v1064 = vpop.xlane.xlu0 %1063
        %v1065 = vrcp.pop %v1064
        %v1066 = vmul.f32 %v1061, %v1065
        %1068 = vrot.lane.b32.xlu0 %v810, 120
        %v1069 = vpop.permute.xlu0 %1068
        %v1072 = vsel %vm817, %v1066, 0
        %1074 = vmatprep.subr.mxu0 0.0
        %1075 = vmatpush1.msra.mxu0 0.0
        %1076 = vmatprep.subr.mxu0 0.0
        %1077 = vmatpush1.msra.mxu0 0.0
        %1078 = vmatprep.subr.mxu0 0.0
        %1079 = vmatpush1.msra.mxu0 0.0
        %1080 = vmatprep.subr.mxu0 0.0
        %1081 = vmatpush1.msra.mxu0 0.0
        %1082 = vmatprep.subr.mxu0 0.0
        %1083 = vmatpush1.msra.mxu0 0.0
        %1084 = vmatprep.subr.mxu0 0.0
        %1085 = vmatpush1.msra.mxu0 0.0
        %1086 = vmatprep.subr.mxu0 0.0
        %1087 = vmatpush1.msra.mxu0 0.0
        %1088 = vmatprep.subr.mxu0 0.0
        %1089 = vmatpush1.msra.mxu0 0.0
        %1090 = vmatprep.subr.mxu0 0.0
        %1091 = vmatpush1.msra.mxu0 0.0
        %1092 = vmatprep.subr.mxu0 0.0
        %1093 = vmatpush1.msra.mxu0 0.0
        %1094 = vmatprep.subr.mxu0 0.0
        %1095 = vmatpush1.msra.mxu0 0.0
        %1096 = vmatprep.subr.mxu0 0.0
        %1097 = vmatpush1.msra.mxu0 0.0
        %1098 = vmatprep.subr.mxu0 0.0
        %1099 = vmatpush1.msra.mxu0 0.0
        %1100 = vmatprep.subr.mxu0 0.0
        %1101 = vmatpush1.msra.mxu0 0.0
        %1102 = vmatprep.subr.mxu0 0.0
        %1103 = vmatpush1.msra.mxu0 0.0
        %1104 = vmatprep.subr.mxu0 0.0
        %1105 = vmatpush1.msra.mxu0 %v1069
        %1106 = vmatprep.subr.mxu0 0.0
        %1107 = vmatpush2.msra.mxu0 0.0
        %1108 = vmatprep.subr.mxu0 0.0
        %1109 = vmatpush2.msra.mxu0 0.0
        %1110 = vmatprep.subr.mxu0 0.0
        %1111 = vmatpush2.msra.mxu0 0.0
        %1112 = vmatprep.subr.mxu0 0.0
        %1113 = vmatpush2.msra.mxu0 0.0
        %1114 = vmatprep.subr.mxu0 0.0
        %1115 = vmatpush2.msra.mxu0 0.0
        %1116 = vmatprep.subr.mxu0 0.0
        %1117 = vmatpush2.msra.mxu0 0.0
        %1118 = vmatprep.subr.mxu0 0.0
        %1119 = vmatpush2.msra.mxu0 0.0
        %1120 = vmatprep.subr.mxu0 0.0
        %1121 = vmatpush2.msra.mxu0 0.0
        %1122 = vmatprep.subr.mxu0 0.0
        %1123 = vmatpush2.msra.mxu0 0.0
        %1124 = vmatprep.subr.mxu0 0.0
        %1125 = vmatpush2.msra.mxu0 0.0
        %1126 = vmatprep.subr.mxu0 0.0
        %1127 = vmatpush2.msra.mxu0 0.0
        %1128 = vmatprep.subr.mxu0 0.0
        %1129 = vmatpush2.msra.mxu0 0.0
        %1130 = vmatprep.subr.mxu0 0.0
        %1131 = vmatpush2.msra.mxu0 0.0
        %1132 = vmatprep.subr.mxu0 0.0
        %1133 = vmatpush2.msra.mxu0 0.0
        %1134 = vmatprep.subr.mxu0 0.0
        %1135 = vmatpush2.msra.mxu0 0.0
        %1136 = vmatprep.subr.mxu0 0.0
        %1137 = vmatpush2.msra.mxu0 0.0
        %1138 = vmatprep.mubr.f32.mxu0 0.0
        %1139 = vmatmul.mubr.f32.gmra.mxu0 %v1072
        %v1140 = vpop.f32.mrf.mxu0
        %v1141 = vadd.f32 0.0, %v1140
        %v1142 = vpop.f32.mrf.mxu0
        %1143 = vdwg.mxu0
        %v1145 = vsel %vm817, %v1141, 0
        %1147 = vmatprep.subr.mxu0 0.0
        %1148 = vmatpush1.msra.mxu0 0.0
        %1149 = vmatprep.subr.mxu0 0.0
        %1150 = vmatpush1.msra.mxu0 0.0
        %1151 = vmatprep.subr.mxu0 0.0
        %1152 = vmatpush1.msra.mxu0 0.0
        %1153 = vmatprep.subr.mxu0 0.0
        %1154 = vmatpush1.msra.mxu0 0.0
        %1155 = vmatprep.subr.mxu0 0.0
        %1156 = vmatpush1.msra.mxu0 0.0
        %1157 = vmatprep.subr.mxu0 0.0
        %1158 = vmatpush1.msra.mxu0 0.0
        %1159 = vmatprep.subr.mxu0 0.0
        %1160 = vmatpush1.msra.mxu0 0.0
        %1161 = vmatprep.subr.mxu0 0.0
        %1162 = vmatpush1.msra.mxu0 0.0
        %1163 = vmatprep.subr.mxu0 0.0
        %1164 = vmatpush1.msra.mxu0 0.0
        %1165 = vmatprep.subr.mxu0 0.0
        %1166 = vmatpush1.msra.mxu0 0.0
        %1167 = vmatprep.subr.mxu0 0.0
        %1168 = vmatpush1.msra.mxu0 0.0
        %1169 = vmatprep.subr.mxu0 0.0
        %1170 = vmatpush1.msra.mxu0 0.0
        %1171 = vmatprep.subr.mxu0 0.0
        %1172 = vmatpush1.msra.mxu0 0.0
        %1173 = vmatprep.subr.mxu0 0.0
        %1174 = vmatpush1.msra.mxu0 0.0
        %1175 = vmatprep.subr.mxu0 0.0
        %1176 = vmatpush1.msra.mxu0 0.0
        %1177 = vmatprep.subr.mxu0 0.0
        %1178 = vmatpush1.msra.mxu0 %v814
        %1179 = vmatprep.subr.mxu0 0.0
        %1180 = vmatpush2.msra.mxu0 0.0
        %1181 = vmatprep.subr.mxu0 0.0
        %1182 = vmatpush2.msra.mxu0 0.0
        %1183 = vmatprep.subr.mxu0 0.0
        %1184 = vmatpush2.msra.mxu0 0.0
        %1185 = vmatprep.subr.mxu0 0.0
        %1186 = vmatpush2.msra.mxu0 0.0
        %1187 = vmatprep.subr.mxu0 0.0
        %1188 = vmatpush2.msra.mxu0 0.0
        %1189 = vmatprep.subr.mxu0 0.0
        %1190 = vmatpush2.msra.mxu0 0.0
        %1191 = vmatprep.subr.mxu0 0.0
        %1192 = vmatpush2.msra.mxu0 0.0
        %1193 = vmatprep.subr.mxu0 0.0
        %1194 = vmatpush2.msra.mxu0 0.0
        %1195 = vmatprep.subr.mxu0 0.0
        %1196 = vmatpush2.msra.mxu0 0.0
        %1197 = vmatprep.subr.mxu0 0.0
        %1198 = vmatpush2.msra.mxu0 0.0
        %1199 = vmatprep.subr.mxu0 0.0
        %1200 = vmatpush2.msra.mxu0 0.0
        %1201 = vmatprep.subr.mxu0 0.0
        %1202 = vmatpush2.msra.mxu0 0.0
        %1203 = vmatprep.subr.mxu0 0.0
        %1204 = vmatpush2.msra.mxu0 0.0
        %1205 = vmatprep.subr.mxu0 0.0
        %1206 = vmatpush2.msra.mxu0 0.0
        %1207 = vmatprep.subr.mxu0 0.0
        %1208 = vmatpush2.msra.mxu0 0.0
        %1209 = vmatprep.subr.mxu0 0.0
        %1210 = vmatpush2.msra.mxu0 0.0
        %1211 = vmatprep.mubr.f32.mxu0 0.0
        %1212 = vmatmul.mubr.f32.gmra.mxu0 %v1145
        %v1213 = vpop.f32.mrf.mxu0
        %v1214 = vadd.f32 0.0, %v1213
        %v1215 = vpop.f32.mrf.mxu0
        %1216 = vdwg.mxu0
        %v1218 = vsel %vm817, %v975, 0
        %1220 = vmatprep.subr.mxu0 0.0
        %1221 = vmatpush1.msra.mxu0 0.0
        %1222 = vmatprep.subr.mxu0 0.0
        %1223 = vmatpush1.msra.mxu0 0.0
        %1224 = vmatprep.subr.mxu0 0.0
        %1225 = vmatpush1.msra.mxu0 0.0
        %1226 = vmatprep.subr.mxu0 0.0
        %1227 = vmatpush1.msra.mxu0 0.0
        %1228 = vmatprep.subr.mxu0 0.0
        %1229 = vmatpush1.msra.mxu0 0.0
        %1230 = vmatprep.subr.mxu0 0.0
        %1231 = vmatpush1.msra.mxu0 0.0
        %1232 = vmatprep.subr.mxu0 0.0
        %1233 = vmatpush1.msra.mxu0 0.0
        %1234 = vmatprep.subr.mxu0 0.0
        %1235 = vmatpush1.msra.mxu0 0.0
        %1236 = vmatprep.subr.mxu0 0.0
        %1237 = vmatpush1.msra.mxu0 0.0
        %1238 = vmatprep.subr.mxu0 0.0
        %1239 = vmatpush1.msra.mxu0 0.0
        %1240 = vmatprep.subr.mxu0 0.0
        %1241 = vmatpush1.msra.mxu0 0.0
        %1242 = vmatprep.subr.mxu0 0.0
        %1243 = vmatpush1.msra.mxu0 0.0
        %1244 = vmatprep.subr.mxu0 0.0
        %1245 = vmatpush1.msra.mxu0 0.0
        %1246 = vmatprep.subr.mxu0 0.0
        %1247 = vmatpush1.msra.mxu0 0.0
        %1248 = vmatprep.subr.mxu0 0.0
        %1249 = vmatpush1.msra.mxu0 0.0
        %1250 = vmatprep.subr.mxu0 0.0
        %1251 = vmatpush1.msra.mxu0 %v813
        %1252 = vmatprep.subr.mxu0 0.0
        %1253 = vmatpush2.msra.mxu0 0.0
        %1254 = vmatprep.subr.mxu0 0.0
        %1255 = vmatpush2.msra.mxu0 0.0
        %1256 = vmatprep.subr.mxu0 0.0
        %1257 = vmatpush2.msra.mxu0 0.0
        %1258 = vmatprep.subr.mxu0 0.0
        %1259 = vmatpush2.msra.mxu0 0.0
        %1260 = vmatprep.subr.mxu0 0.0
        %1261 = vmatpush2.msra.mxu0 0.0
        %1262 = vmatprep.subr.mxu0 0.0
        %1263 = vmatpush2.msra.mxu0 0.0
        %1264 = vmatprep.subr.mxu0 0.0
        %1265 = vmatpush2.msra.mxu0 0.0
        %1266 = vmatprep.subr.mxu0 0.0
        %1267 = vmatpush2.msra.mxu0 0.0
        %1268 = vmatprep.subr.mxu0 0.0
        %1269 = vmatpush2.msra.mxu0 0.0
        %1270 = vmatprep.subr.mxu0 0.0
        %1271 = vmatpush2.msra.mxu0 0.0
        %1272 = vmatprep.subr.mxu0 0.0
        %1273 = vmatpush2.msra.mxu0 0.0
        %1274 = vmatprep.subr.mxu0 0.0
        %1275 = vmatpush2.msra.mxu0 0.0
        %1276 = vmatprep.subr.mxu0 0.0
        %1277 = vmatpush2.msra.mxu0 0.0
        %1278 = vmatprep.subr.mxu0 0.0
        %1279 = vmatpush2.msra.mxu0 0.0
        %1280 = vmatprep.subr.mxu0 0.0
        %1281 = vmatpush2.msra.mxu0 0.0
        %1282 = vmatprep.subr.mxu0 0.0
        %1283 = vmatpush2.msra.mxu0 0.0
        %1284 = vmatprep.mubr.f32.mxu0 0.0
        %1285 = vmatmul.mubr.f32.gmra.mxu0 %v1218
        %v1286 = vpop.f32.mrf.mxu0
        %v1287 = vadd.f32 %v1214, %v1286
        %v1288 = vpop.f32.mrf.mxu0
        %1289 = vdwg.mxu0
        %1290 = vrot.lane.b32.xlu0 %v650, 112
        %v1291 = vpop.permute.xlu0 %1290
        %1292 = vrot.lane.b32.xlu0 %v729, 112
        %v1293 = vpop.permute.xlu0 %1292
        %v1294 = vsel %vm817, %v1291, 0
        %v1296 = vsel %vm817, %v1293, 0
        %1298 = vmatprep.subr.mxu0 0.0
        %1299 = vmatpush1.xpose.msra.mxu0 0.0
        %1300 = vmatprep.subr.mxu0 0.0
        %1301 = vmatpush1.xpose.msra.mxu0 0.0
        %1302 = vmatprep.subr.mxu0 0.0
        %1303 = vmatpush1.xpose.msra.mxu0 0.0
        %1304 = vmatprep.subr.mxu0 0.0
        %1305 = vmatpush1.xpose.msra.mxu0 0.0
        %1306 = vmatprep.subr.mxu0 0.0
        %1307 = vmatpush1.xpose.msra.mxu0 0.0
        %1308 = vmatprep.subr.mxu0 0.0
        %1309 = vmatpush1.xpose.msra.mxu0 0.0
        %1310 = vmatprep.subr.mxu0 0.0
        %1311 = vmatpush1.xpose.msra.mxu0 0.0
        %1312 = vmatprep.subr.mxu0 0.0
        %1313 = vmatpush1.xpose.msra.mxu0 0.0
        %1314 = vmatprep.subr.mxu0 0.0
        %1315 = vmatpush1.xpose.msra.mxu0 0.0
        %1316 = vmatprep.subr.mxu0 0.0
        %1317 = vmatpush1.xpose.msra.mxu0 0.0
        %1318 = vmatprep.subr.mxu0 0.0
        %1319 = vmatpush1.xpose.msra.mxu0 0.0
        %1320 = vmatprep.subr.mxu0 0.0
        %1321 = vmatpush1.xpose.msra.mxu0 0.0
        %1322 = vmatprep.subr.mxu0 0.0
        %1323 = vmatpush1.xpose.msra.mxu0 0.0
        %1324 = vmatprep.subr.mxu0 0.0
        %1325 = vmatpush1.xpose.msra.mxu0 0.0
        %1326 = vmatprep.subr.mxu0 0.0
        %1327 = vmatpush1.xpose.msra.mxu0 0.0
        %1328 = vmatprep.subr.mxu0 0.0
        %1329 = vmatpush1.xpose.msra.mxu0 %v1296
        %1330 = vmatprep.subr.mxu0 0.0
        %1331 = vmatpush2.xpose.msra.mxu0 0.0
        %1332 = vmatprep.subr.mxu0 0.0
        %1333 = vmatpush2.xpose.msra.mxu0 0.0
        %1334 = vmatprep.subr.mxu0 0.0
        %1335 = vmatpush2.xpose.msra.mxu0 0.0
        %1336 = vmatprep.subr.mxu0 0.0
        %1337 = vmatpush2.xpose.msra.mxu0 0.0
        %1338 = vmatprep.subr.mxu0 0.0
        %1339 = vmatpush2.xpose.msra.mxu0 0.0
        %1340 = vmatprep.subr.mxu0 0.0
        %1341 = vmatpush2.xpose.msra.mxu0 0.0
        %1342 = vmatprep.subr.mxu0 0.0
        %1343 = vmatpush2.xpose.msra.mxu0 0.0
        %1344 = vmatprep.subr.mxu0 0.0
        %1345 = vmatpush2.xpose.msra.mxu0 0.0
        %1346 = vmatprep.subr.mxu0 0.0
        %1347 = vmatpush2.xpose.msra.mxu0 0.0
        %1348 = vmatprep.subr.mxu0 0.0
        %1349 = vmatpush2.xpose.msra.mxu0 0.0
        %1350 = vmatprep.subr.mxu0 0.0
        %1351 = vmatpush2.xpose.msra.mxu0 0.0
        %1352 = vmatprep.subr.mxu0 0.0
        %1353 = vmatpush2.xpose.msra.mxu0 0.0
        %1354 = vmatprep.subr.mxu0 0.0
        %1355 = vmatpush2.xpose.msra.mxu0 0.0
        %1356 = vmatprep.subr.mxu0 0.0
        %1357 = vmatpush2.xpose.msra.mxu0 0.0
        %1358 = vmatprep.subr.mxu0 0.0
        %1359 = vmatpush2.xpose.msra.mxu0 0.0
        %1360 = vmatprep.subr.mxu0 0.0
        %1361 = vmatpush2.xpose.msra.mxu0 0.0
        %1362 = vmatprep.mubr.f32.mxu0 0.0
        %1363 = vmatmul.mubr.f32.gmra.mxu0 %v1294
        %v1364 = vpop.f32.mrf.mxu0
        %v1365 = vadd.f32 0.0, %v1364
        %v1366 = vpop.f32.mrf.mxu0
        %1367 = vdwg.mxu0
        %v1368 = vsel %vm817, %v1365, -inf
        %1369 = vmax.xlane.f32.xlu0 %v1368
        %v1370 = vpop.xlane.xlu0 %1369
        %v1371 = vsub.f32 %v1365, %v1370
        %v1372 = vmul.f32 %v1371, 1.442695
        %v1373 = vpow.pop %v1372
        %v1374 = vsel %vm817, %v1373, 0.0
        %1375 = vadd.xlane.f32.xlu0 %v1374
        %v1376 = vpop.xlane.xlu0 %1375
        %v1377 = vrcp.pop %v1376
        %v1378 = vmul.f32 %v1373, %v1377
        %1379 = vrot.lane.b32.xlu0 %v810, 112
        %v1380 = vpop.permute.xlu0 %1379
        %v1383 = vsel %vm817, %v1378, 0
        %1385 = vmatprep.subr.mxu0 0.0
        %1386 = vmatpush1.msra.mxu0 0.0
        %1387 = vmatprep.subr.mxu0 0.0
        %1388 = vmatpush1.msra.mxu0 0.0
        %1389 = vmatprep.subr.mxu0 0.0
        %1390 = vmatpush1.msra.mxu0 0.0
        %1391 = vmatprep.subr.mxu0 0.0
        %1392 = vmatpush1.msra.mxu0 0.0
        %1393 = vmatprep.subr.mxu0 0.0
        %1394 = vmatpush1.msra.mxu0 0.0
        %1395 = vmatprep.subr.mxu0 0.0
        %1396 = vmatpush1.msra.mxu0 0.0
        %1397 = vmatprep.subr.mxu0 0.0
        %1398 = vmatpush1.msra.mxu0 0.0
        %1399 = vmatprep.subr.mxu0 0.0
        %1400 = vmatpush1.msra.mxu0 0.0
        %1401 = vmatprep.subr.mxu0 0.0
        %1402 = vmatpush1.msra.mxu0 0.0
        %1403 = vmatprep.subr.mxu0 0.0
        %1404 = vmatpush1.msra.mxu0 0.0
        %1405 = vmatprep.subr.mxu0 0.0
        %1406 = vmatpush1.msra.mxu0 0.0
        %1407 = vmatprep.subr.mxu0 0.0
        %1408 = vmatpush1.msra.mxu0 0.0
        %1409 = vmatprep.subr.mxu0 0.0
        %1410 = vmatpush1.msra.mxu0 0.0
        %1411 = vmatprep.subr.mxu0 0.0
        %1412 = vmatpush1.msra.mxu0 0.0
        %1413 = vmatprep.subr.mxu0 0.0
        %1414 = vmatpush1.msra.mxu0 0.0
        %1415 = vmatprep.subr.mxu0 0.0
        %1416 = vmatpush1.msra.mxu0 %v1380
        %1417 = vmatprep.subr.mxu0 0.0
        %1418 = vmatpush2.msra.mxu0 0.0
        %1419 = vmatprep.subr.mxu0 0.0
        %1420 = vmatpush2.msra.mxu0 0.0
        %1421 = vmatprep.subr.mxu0 0.0
        %1422 = vmatpush2.msra.mxu0 0.0
        %1423 = vmatprep.subr.mxu0 0.0
        %1424 = vmatpush2.msra.mxu0 0.0
        %1425 = vmatprep.subr.mxu0 0.0
        %1426 = vmatpush2.msra.mxu0 0.0
        %1427 = vmatprep.subr.mxu0 0.0
        %1428 = vmatpush2.msra.mxu0 0.0
        %1429 = vmatprep.subr.mxu0 0.0
        %1430 = vmatpush2.msra.mxu0 0.0
        %1431 = vmatprep.subr.mxu0 0.0
        %1432 = vmatpush2.msra.mxu0 0.0
        %1433 = vmatprep.subr.mxu0 0.0
        %1434 = vmatpush2.msra.mxu0 0.0
        %1435 = vmatprep.subr.mxu0 0.0
        %1436 = vmatpush2.msra.mxu0 0.0
        %1437 = vmatprep.subr.mxu0 0.0
        %1438 = vmatpush2.msra.mxu0 0.0
        %1439 = vmatprep.subr.mxu0 0.0
        %1440 = vmatpush2.msra.mxu0 0.0
        %1441 = vmatprep.subr.mxu0 0.0
        %1442 = vmatpush2.msra.mxu0 0.0
        %1443 = vmatprep.subr.mxu0 0.0
        %1444 = vmatpush2.msra.mxu0 0.0
        %1445 = vmatprep.subr.mxu0 0.0
        %1446 = vmatpush2.msra.mxu0 0.0
        %1447 = vmatprep.subr.mxu0 0.0
        %1448 = vmatpush2.msra.mxu0 0.0
        %1449 = vmatprep.mubr.f32.mxu0 0.0
        %1450 = vmatmul.mubr.f32.gmra.mxu0 %v1383
        %v1451 = vpop.f32.mrf.mxu0
        %v1452 = vadd.f32 0.0, %v1451
        %v1453 = vpop.f32.mrf.mxu0
        %1454 = vdwg.mxu0
        %v1456 = vsel %vm817, %v1452, 0
        %1458 = vmatprep.subr.mxu0 0.0
        %1459 = vmatpush1.msra.mxu0 0.0
        %1460 = vmatprep.subr.mxu0 0.0
        %1461 = vmatpush1.msra.mxu0 0.0
        %1462 = vmatprep.subr.mxu0 0.0
        %1463 = vmatpush1.msra.mxu0 0.0
        %1464 = vmatprep.subr.mxu0 0.0
        %1465 = vmatpush1.msra.mxu0 0.0
        %1466 = vmatprep.subr.mxu0 0.0
        %1467 = vmatpush1.msra.mxu0 0.0
        %1468 = vmatprep.subr.mxu0 0.0
        %1469 = vmatpush1.msra.mxu0 0.0
        %1470 = vmatprep.subr.mxu0 0.0
        %1471 = vmatpush1.msra.mxu0 0.0
        %1472 = vmatprep.subr.mxu0 0.0
        %1473 = vmatpush1.msra.mxu0 0.0
        %1474 = vmatprep.subr.mxu0 0.0
        %1475 = vmatpush1.msra.mxu0 0.0
        %1476 = vmatprep.subr.mxu0 0.0
        %1477 = vmatpush1.msra.mxu0 0.0
        %1478 = vmatprep.subr.mxu0 0.0
        %1479 = vmatpush1.msra.mxu0 0.0
        %1480 = vmatprep.subr.mxu0 0.0
        %1481 = vmatpush1.msra.mxu0 0.0
        %1482 = vmatprep.subr.mxu0 0.0
        %1483 = vmatpush1.msra.mxu0 0.0
        %1484 = vmatprep.subr.mxu0 0.0
        %1485 = vmatpush1.msra.mxu0 0.0
        %1486 = vmatprep.subr.mxu0 0.0
        %1487 = vmatpush1.msra.mxu0 0.0
        %1488 = vmatprep.subr.mxu0 0.0
        %1489 = vmatpush1.msra.mxu0 %v815
        %1490 = vmatprep.subr.mxu0 0.0
        %1491 = vmatpush2.msra.mxu0 0.0
        %1492 = vmatprep.subr.mxu0 0.0
        %1493 = vmatpush2.msra.mxu0 0.0
        %1494 = vmatprep.subr.mxu0 0.0
        %1495 = vmatpush2.msra.mxu0 0.0
        %1496 = vmatprep.subr.mxu0 0.0
        %1497 = vmatpush2.msra.mxu0 0.0
        %1498 = vmatprep.subr.mxu0 0.0
        %1499 = vmatpush2.msra.mxu0 0.0
        %1500 = vmatprep.subr.mxu0 0.0
        %1501 = vmatpush2.msra.mxu0 0.0
        %1502 = vmatprep.subr.mxu0 0.0
        %1503 = vmatpush2.msra.mxu0 0.0
        %1504 = vmatprep.subr.mxu0 0.0
        %1505 = vmatpush2.msra.mxu0 0.0
        %1506 = vmatprep.subr.mxu0 0.0
        %1507 = vmatpush2.msra.mxu0 0.0
        %1508 = vmatprep.subr.mxu0 0.0
        %1509 = vmatpush2.msra.mxu0 0.0
        %1510 = vmatprep.subr.mxu0 0.0
        %1511 = vmatpush2.msra.mxu0 0.0
        %1512 = vmatprep.subr.mxu0 0.0
        %1513 = vmatpush2.msra.mxu0 0.0
        %1514 = vmatprep.subr.mxu0 0.0
        %1515 = vmatpush2.msra.mxu0 0.0
        %1516 = vmatprep.subr.mxu0 0.0
        %1517 = vmatpush2.msra.mxu0 0.0
        %1518 = vmatprep.subr.mxu0 0.0
        %1519 = vmatpush2.msra.mxu0 0.0
        %1520 = vmatprep.subr.mxu0 0.0
        %1521 = vmatpush2.msra.mxu0 0.0
        %1522 = vmatprep.mubr.f32.mxu0 0.0
        %1523 = vmatmul.mubr.f32.gmra.mxu0 %v1456
        %v1524 = vpop.f32.mrf.mxu0
        %v1525 = vadd.f32 0.0, %v1524
        %v1526 = vpop.f32.mrf.mxu0
        %1527 = vdwg.mxu0
        %v1528 = vadd.f32 %v1287, %v1525
        %1529 = vrot.lane.b32.xlu0 %v650, 104
        %v1530 = vpop.permute.xlu0 %1529
        %1531 = vrot.lane.b32.xlu0 %v729, 104
        %v1532 = vpop.permute.xlu0 %1531
        %v1533 = vsel %vm817, %v1530, 0
        %v1535 = vsel %vm817, %v1532, 0
        %1537 = vmatprep.subr.mxu0 0.0
        %1538 = vmatpush1.xpose.msra.mxu0 0.0
        %1539 = vmatprep.subr.mxu0 0.0
        %1540 = vmatpush1.xpose.msra.mxu0 0.0
        %1541 = vmatprep.subr.mxu0 0.0
        %1542 = vmatpush1.xpose.msra.mxu0 0.0
        %1543 = vmatprep.subr.mxu0 0.0
        %1544 = vmatpush1.xpose.msra.mxu0 0.0
        %1545 = vmatprep.subr.mxu0 0.0
        %1546 = vmatpush1.xpose.msra.mxu0 0.0
        %1547 = vmatprep.subr.mxu0 0.0
        %1548 = vmatpush1.xpose.msra.mxu0 0.0
        %1549 = vmatprep.subr.mxu0 0.0
        %1550 = vmatpush1.xpose.msra.mxu0 0.0
        %1551 = vmatprep.subr.mxu0 0.0
        %1552 = vmatpush1.xpose.msra.mxu0 0.0
        %1553 = vmatprep.subr.mxu0 0.0
        %1554 = vmatpush1.xpose.msra.mxu0 0.0
        %1555 = vmatprep.subr.mxu0 0.0
        %1556 = vmatpush1.xpose.msra.mxu0 0.0
        %1557 = vmatprep.subr.mxu0 0.0
        %1558 = vmatpush1.xpose.msra.mxu0 0.0
        %1559 = vmatprep.subr.mxu0 0.0
        %1560 = vmatpush1.xpose.msra.mxu0 0.0
        %1561 = vmatprep.subr.mxu0 0.0
        %1562 = vmatpush1.xpose.msra.mxu0 0.0
        %1563 = vmatprep.subr.mxu0 0.0
        %1564 = vmatpush1.xpose.msra.mxu0 0.0
        %1565 = vmatprep.subr.mxu0 0.0
        %1566 = vmatpush1.xpose.msra.mxu0 0.0
        %1567 = vmatprep.subr.mxu0 0.0
        %1568 = vmatpush1.xpose.msra.mxu0 %v1535
        %1569 = vmatprep.subr.mxu0 0.0
        %1570 = vmatpush2.xpose.msra.mxu0 0.0
        %1571 = vmatprep.subr.mxu0 0.0
        %1572 = vmatpush2.xpose.msra.mxu0 0.0
        %1573 = vmatprep.subr.mxu0 0.0
        %1574 = vmatpush2.xpose.msra.mxu0 0.0
        %1575 = vmatprep.subr.mxu0 0.0
        %1576 = vmatpush2.xpose.msra.mxu0 0.0
        %1577 = vmatprep.subr.mxu0 0.0
        %1578 = vmatpush2.xpose.msra.mxu0 0.0
        %1579 = vmatprep.subr.mxu0 0.0
        %1580 = vmatpush2.xpose.msra.mxu0 0.0
        %1581 = vmatprep.subr.mxu0 0.0
        %1582 = vmatpush2.xpose.msra.mxu0 0.0
        %1583 = vmatprep.subr.mxu0 0.0
        %1584 = vmatpush2.xpose.msra.mxu0 0.0
        %1585 = vmatprep.subr.mxu0 0.0
        %1586 = vmatpush2.xpose.msra.mxu0 0.0
        %1587 = vmatprep.subr.mxu0 0.0
        %1588 = vmatpush2.xpose.msra.mxu0 0.0
        %1589 = vmatprep.subr.mxu0 0.0
        %1590 = vmatpush2.xpose.msra.mxu0 0.0
        %1591 = vmatprep.subr.mxu0 0.0
        %1592 = vmatpush2.xpose.msra.mxu0 0.0
        %1593 = vmatprep.subr.mxu0 0.0
        %1594 = vmatpush2.xpose.msra.mxu0 0.0
        %1595 = vmatprep.subr.mxu0 0.0
        %1596 = vmatpush2.xpose.msra.mxu0 0.0
        %1597 = vmatprep.subr.mxu0 0.0
        %1598 = vmatpush2.xpose.msra.mxu0 0.0
        %1599 = vmatprep.subr.mxu0 0.0
        %1600 = vmatpush2.xpose.msra.mxu0 0.0
        %1601 = vmatprep.mubr.f32.mxu0 0.0
        %1602 = vmatmul.mubr.f32.gmra.mxu0 %v1533
        %v1603 = vpop.f32.mrf.mxu0
        %v1604 = vadd.f32 0.0, %v1603
        %v1605 = vpop.f32.mrf.mxu0
        %1606 = vdwg.mxu0
        %v1607 = vsel %vm817, %v1604, -inf
        %1608 = vmax.xlane.f32.xlu0 %v1607
        %v1609 = vpop.xlane.xlu0 %1608
        %v1610 = vsub.f32 %v1604, %v1609
        %v1611 = vmul.f32 %v1610, 1.442695
        %v1612 = vpow.pop %v1611
        %v1613 = vsel %vm817, %v1612, 0.0
        %1614 = vadd.xlane.f32.xlu0 %v1613
        %v1615 = vpop.xlane.xlu0 %1614
        %v1616 = vrcp.pop %v1615
        %v1617 = vmul.f32 %v1612, %v1616
        %1618 = vrot.lane.b32.xlu0 %v810, 104
        %v1619 = vpop.permute.xlu0 %1618
        %v1622 = vsel %vm817, %v1617, 0
        %1624 = vmatprep.subr.mxu0 0.0
        %1625 = vmatpush1.msra.mxu0 0.0
        %1626 = vmatprep.subr.mxu0 0.0
        %1627 = vmatpush1.msra.mxu0 0.0
        %1628 = vmatprep.subr.mxu0 0.0
        %1629 = vmatpush1.msra.mxu0 0.0
        %1630 = vmatprep.subr.mxu0 0.0
        %1631 = vmatpush1.msra.mxu0 0.0
        %1632 = vmatprep.subr.mxu0 0.0
        %1633 = vmatpush1.msra.mxu0 0.0
        %1634 = vmatprep.subr.mxu0 0.0
        %1635 = vmatpush1.msra.mxu0 0.0
        %1636 = vmatprep.subr.mxu0 0.0
        %1637 = vmatpush1.msra.mxu0 0.0
        %1638 = vmatprep.subr.mxu0 0.0
        %1639 = vmatpush1.msra.mxu0 0.0
        %1640 = vmatprep.subr.mxu0 0.0
        %1641 = vmatpush1.msra.mxu0 0.0
        %1642 = vmatprep.subr.mxu0 0.0
        %1643 = vmatpush1.msra.mxu0 0.0
        %1644 = vmatprep.subr.mxu0 0.0
        %1645 = vmatpush1.msra.mxu0 0.0
        %1646 = vmatprep.subr.mxu0 0.0
        %1647 = vmatpush1.msra.mxu0 0.0
        %1648 = vmatprep.subr.mxu0 0.0
        %1649 = vmatpush1.msra.mxu0 0.0
        %1650 = vmatprep.subr.mxu0 0.0
        %1651 = vmatpush1.msra.mxu0 0.0
        %1652 = vmatprep.subr.mxu0 0.0
        %1653 = vmatpush1.msra.mxu0 0.0
        %1654 = vmatprep.subr.mxu0 0.0
        %1655 = vmatpush1.msra.mxu0 %v1619
        %1656 = vmatprep.subr.mxu0 0.0
        %1657 = vmatpush2.msra.mxu0 0.0
        %1658 = vmatprep.subr.mxu0 0.0
        %1659 = vmatpush2.msra.mxu0 0.0
        %1660 = vmatprep.subr.mxu0 0.0
        %1661 = vmatpush2.msra.mxu0 0.0
        %1662 = vmatprep.subr.mxu0 0.0
        %1663 = vmatpush2.msra.mxu0 0.0
        %1664 = vmatprep.subr.mxu0 0.0
        %1665 = vmatpush2.msra.mxu0 0.0
        %1666 = vmatprep.subr.mxu0 0.0
        %1667 = vmatpush2.msra.mxu0 0.0
        %1668 = vmatprep.subr.mxu0 0.0
        %1669 = vmatpush2.msra.mxu0 0.0
        %1670 = vmatprep.subr.mxu0 0.0
        %1671 = vmatpush2.msra.mxu0 0.0
        %1672 = vmatprep.subr.mxu0 0.0
        %1673 = vmatpush2.msra.mxu0 0.0
        %1674 = vmatprep.subr.mxu0 0.0
        %1675 = vmatpush2.msra.mxu0 0.0
        %1676 = vmatprep.subr.mxu0 0.0
        %1677 = vmatpush2.msra.mxu0 0.0
        %1678 = vmatprep.subr.mxu0 0.0
        %1679 = vmatpush2.msra.mxu0 0.0
        %1680 = vmatprep.subr.mxu0 0.0
        %1681 = vmatpush2.msra.mxu0 0.0
        %1682 = vmatprep.subr.mxu0 0.0
        %1683 = vmatpush2.msra.mxu0 0.0
        %1684 = vmatprep.subr.mxu0 0.0
        %1685 = vmatpush2.msra.mxu0 0.0
        %1686 = vmatprep.subr.mxu0 0.0
        %1687 = vmatpush2.msra.mxu0 0.0
        %1688 = vmatprep.mubr.f32.mxu0 0.0
        %1689 = vmatmul.mubr.f32.gmra.mxu0 %v1622
        %v1690 = vpop.f32.mrf.mxu0
        %v1691 = vadd.f32 0.0, %v1690
        %v1692 = vpop.f32.mrf.mxu0
        %1693 = vdwg.mxu0
        %v1695 = vsel %vm817, %v1691, 0
        %1697 = vmatprep.subr.mxu0 0.0
        %1698 = vmatpush1.msra.mxu0 0.0
        %1699 = vmatprep.subr.mxu0 0.0
        %1700 = vmatpush1.msra.mxu0 0.0
        %1701 = vmatprep.subr.mxu0 0.0
        %1702 = vmatpush1.msra.mxu0 0.0
        %1703 = vmatprep.subr.mxu0 0.0
        %1704 = vmatpush1.msra.mxu0 0.0
        %1705 = vmatprep.subr.mxu0 0.0
        %1706 = vmatpush1.msra.mxu0 0.0
        %1707 = vmatprep.subr.mxu0 0.0
        %1708 = vmatpush1.msra.mxu0 0.0
        %1709 = vmatprep.subr.mxu0 0.0
        %1710 = vmatpush1.msra.mxu0 0.0
        %1711 = vmatprep.subr.mxu0 0.0
        %1712 = vmatpush1.msra.mxu0 0.0
        %1713 = vmatprep.subr.mxu0 0.0
        %1714 = vmatpush1.msra.mxu0 0.0
        %1715 = vmatprep.subr.mxu0 0.0
        %1716 = vmatpush1.msra.mxu0 0.0
        %1717 = vmatprep.subr.mxu0 0.0
        %1718 = vmatpush1.msra.mxu0 0.0
        %1719 = vmatprep.subr.mxu0 0.0
        %1720 = vmatpush1.msra.mxu0 0.0
        %1721 = vmatprep.subr.mxu0 0.0
        %1722 = vmatpush1.msra.mxu0 0.0
        %1723 = vmatprep.subr.mxu0 0.0
        %1724 = vmatpush1.msra.mxu0 0.0
        %1725 = vmatprep.subr.mxu0 0.0
        %1726 = vmatpush1.msra.mxu0 0.0
        %1727 = vmatprep.subr.mxu0 0.0
        %1728 = vmatpush1.msra.mxu0 %v816
        %1729 = vmatprep.subr.mxu0 0.0
        %1730 = vmatpush2.msra.mxu0 0.0
        %1731 = vmatprep.subr.mxu0 0.0
        %1732 = vmatpush2.msra.mxu0 0.0
        %1733 = vmatprep.subr.mxu0 0.0
        %1734 = vmatpush2.msra.mxu0 0.0
        %1735 = vmatprep.subr.mxu0 0.0
        %1736 = vmatpush2.msra.mxu0 0.0
        %1737 = vmatprep.subr.mxu0 0.0
        %1738 = vmatpush2.msra.mxu0 0.0
        %1739 = vmatprep.subr.mxu0 0.0
        %1740 = vmatpush2.msra.mxu0 0.0
        %1741 = vmatprep.subr.mxu0 0.0
        %1742 = vmatpush2.msra.mxu0 0.0
        %1743 = vmatprep.subr.mxu0 0.0
        %1744 = vmatpush2.msra.mxu0 0.0
        %1745 = vmatprep.subr.mxu0 0.0
        %1746 = vmatpush2.msra.mxu0 0.0
        %1747 = vmatprep.subr.mxu0 0.0
        %1748 = vmatpush2.msra.mxu0 0.0
        %1749 = vmatprep.subr.mxu0 0.0
        %1750 = vmatpush2.msra.mxu0 0.0
        %1751 = vmatprep.subr.mxu0 0.0
        %1752 = vmatpush2.msra.mxu0 0.0
        %1753 = vmatprep.subr.mxu0 0.0
        %1754 = vmatpush2.msra.mxu0 0.0
        %1755 = vmatprep.subr.mxu0 0.0
        %1756 = vmatpush2.msra.mxu0 0.0
        %1757 = vmatprep.subr.mxu0 0.0
        %1758 = vmatpush2.msra.mxu0 0.0
        %1759 = vmatprep.subr.mxu0 0.0
        %1760 = vmatpush2.msra.mxu0 0.0
        %1761 = vmatprep.mubr.f32.mxu0 0.0
        %1762 = vmatmul.mubr.f32.gmra.mxu0 %v1695
        %v1763 = vpop.f32.mrf.mxu0
        %v1764 = vadd.f32 0.0, %v1763
        %v1765 = vpop.f32.mrf.mxu0
        %1766 = vdwg.mxu0
        %v1767 = vadd.f32 %v1528, %v1764
        %v1768 = vld [vmem:[%s8] sm:$0x1]
        %v1770 = vlaneseq
        %v1771 = vshrl.u32 %v1770, 7
        %v1772 = vsub.s32 0, %v1771
        %v1773 = vrot.slane %v1768, %v1772
        %v1775 = vadd.f32 %v1767, %v1773
        %v1776 = vld [vmem:[%s513] sm:$0xff]
        %v1777 = vadd.f32 %v1776, %v1775
        %v1778 = vld [vmem:[%s9] sm:$0x1]
        %v1779 = vld [vmem:[%s10] sm:$0x1]
        %v1780 = vsel %vm576, %v1777, 0.0
        %1781 = vadd.xlane.f32.xlu0 %v1780
        %v1782 = vpop.xlane.xlu0 %1781
        %v1783 = vrcp.pop 32.0
        %v1784 = vmul.f32 %v1782, %v1783
        %v1785 = vsub.f32 %v1777, %v1784
        %v1786 = vmul.f32 %v1785, %v1785
        %v1787 = vsel %vm576, %v1786, 0.0
        %1788 = vadd.xlane.f32.xlu0 %v1787
        %v1789 = vpop.xlane.xlu0 %1788
        %v1790 = vmul.f32 %v1789, %v1783
        %v1791 = vadd.f32 %v1790, 1e-05
        %v1792 = vrsqrt.pop %v1791
        %v1793 = vmul.f32 %v1785, %v1792
        %v1795 = vlaneseq
        %v1796 = vshrl.u32 %v1795, 7
        %v1797 = vsub.s32 0, %v1796
        %v1798 = vrot.slane %v1778, %v1797
        %v1800 = vmul.f32 %v1793, %v1798
        %v1802 = vlaneseq
        %v1803 = vshrl.u32 %v1802, 7
        %v1804 = vsub.s32 0, %v1803
        %v1805 = vrot.slane %v1779, %v1804
        %v1807 = vadd.f32 %v1800, %v1805
        %v1808 = vld [vmem:[%s11] sm:$0xff]
        %v1809 = vld [vmem:[%s11 + $0x8] sm:$0xff]
        %v1810 = vld [vmem:[%s11 + $0x10] sm:$0xff]
        %v1811 = vld [vmem:[%s11 + $0x18] sm:$0xff]
        %v1812 = vld [vmem:[%s12] sm:$0x1]
        %v1814 = vlaneseq
        %v1815 = vshrl.u32 %v1814, 7
        %v1816 = vsub.s32 0, %v1815
        %v1817 = vrot.slane %v1812, %v1816
        %v1820 = vsel %vm576, %v1807, 0
        %1822 = vmatprep.subr.mxu0 0.0
        %1823 = vmatpush1.msra.mxu0 0.0
        %1824 = vmatprep.subr.mxu0 0.0
        %1825 = vmatpush1.msra.mxu0 0.0
        %1826 = vmatprep.subr.mxu0 0.0
        %1827 = vmatpush1.msra.mxu0 0.0
        %1828 = vmatprep.subr.mxu0 0.0
        %1829 = vmatpush1.msra.mxu0 0.0
        %1830 = vmatprep.subr.mxu0 0.0
        %1831 = vmatpush1.msra.mxu0 0.0
        %1832 = vmatprep.subr.mxu0 0.0
        %1833 = vmatpush1.msra.mxu0 0.0
        %1834 = vmatprep.subr.mxu0 0.0
        %1835 = vmatpush1.msra.mxu0 0.0
        %1836 = vmatprep.subr.mxu0 0.0
        %1837 = vmatpush1.msra.mxu0 0.0
        %1838 = vmatprep.subr.mxu0 0.0
        %1839 = vmatpush1.msra.mxu0 0.0
        %1840 = vmatprep.subr.mxu0 0.0
        %1841 = vmatpush1.msra.mxu0 0.0
        %1842 = vmatprep.subr.mxu0 0.0
        %1843 = vmatpush1.msra.mxu0 0.0
        %1844 = vmatprep.subr.mxu0 0.0
        %1845 = vmatpush1.msra.mxu0 0.0
        %1846 = vmatprep.subr.mxu0 0.0
        %1847 = vmatpush1.msra.mxu0 %v1811
        %1848 = vmatprep.subr.mxu0 0.0
        %1849 = vmatpush1.msra.mxu0 %v1810
        %1850 = vmatprep.subr.mxu0 0.0
        %1851 = vmatpush1.msra.mxu0 %v1809
        %1852 = vmatprep.subr.mxu0 0.0
        %1853 = vmatpush1.msra.mxu0 %v1808
        %1854 = vmatprep.subr.mxu0 0.0
        %1855 = vmatpush2.msra.mxu0 0.0
        %1856 = vmatprep.subr.mxu0 0.0
        %1857 = vmatpush2.msra.mxu0 0.0
        %1858 = vmatprep.subr.mxu0 0.0
        %1859 = vmatpush2.msra.mxu0 0.0
        %1860 = vmatprep.subr.mxu0 0.0
        %1861 = vmatpush2.msra.mxu0 0.0
        %1862 = vmatprep.subr.mxu0 0.0
        %1863 = vmatpush2.msra.mxu0 0.0
        %1864 = vmatprep.subr.mxu0 0.0
        %1865 = vmatpush2.msra.mxu0 0.0
        %1866 = vmatprep.subr.mxu0 0.0
        %1867 = vmatpush2.msra.mxu0 0.0
        %1868 = vmatprep.subr.mxu0 0.0
        %1869 = vmatpush2.msra.mxu0 0.0
        %1870 = vmatprep.subr.mxu0 0.0
        %1871 = vmatpush2.msra.mxu0 0.0
        %1872 = vmatprep.subr.mxu0 0.0
        %1873 = vmatpush2.msra.mxu0 0.0
        %1874 = vmatprep.subr.mxu0 0.0
        %1875 = vmatpush2.msra.mxu0 0.0
        %1876 = vmatprep.subr.mxu0 0.0
        %1877 = vmatpush2.msra.mxu0 0.0
        %1878 = vmatprep.subr.mxu0 0.0
        %1879 = vmatpush2.msra.mxu0 0.0
        %1880 = vmatprep.subr.mxu0 0.0
        %1881 = vmatpush2.msra.mxu0 0.0
        %1882 = vmatprep.subr.mxu0 0.0
        %1883 = vmatpush2.msra.mxu0 0.0
        %1884 = vmatprep.subr.mxu0 0.0
        %1885 = vmatpush2.msra.mxu0 0.0
        %1886 = vmatprep.mubr.f32.mxu0 0.0
        %1887 = vmatmul.mubr.f32.gmra.mxu0 %v1820
        %v1888 = vpop.f32.mrf.mxu0
        %v1889 = vadd.f32 %v1817, %v1888
        %v1890 = vpop.f32.mrf.mxu0
        %1891 = vdwg.mxu0
        %v1892 = vmax.f32 %v1889, 0.0
        %v1893 = vld [vmem:[%s13] sm:$0xff]
        %v1894 = vld [vmem:[%s13 + $0x8] sm:$0xff]
        %v1895 = vld [vmem:[%s13 + $0x10] sm:$0xff]
        %v1896 = vld [vmem:[%s13 + $0x18] sm:$0xff]
        %v1897 = vld [vmem:[%s13 + $0x20] sm:$0xff]
        %v1898 = vld [vmem:[%s13 + $0x28] sm:$0xff]
        %v1899 = vld [vmem:[%s13 + $0x30] sm:$0xff]
        %v1900 = vld [vmem:[%s13 + $0x38] sm:$0xff]
        %v1901 = vld [vmem:[%s13 + $0x40] sm:$0xff]
        %v1902 = vld [vmem:[%s13 + $0x48] sm:$0xff]
        %v1903 = vld [vmem:[%s13 + $0x50] sm:$0xff]
        %v1904 = vld [vmem:[%s13 + $0x58] sm:$0xff]
        %v1905 = vld [vmem:[%s13 + $0x60] sm:$0xff]
        %v1906 = vld [vmem:[%s13 + $0x68] sm:$0xff]
        %v1907 = vld [vmem:[%s13 + $0x70] sm:$0xff]
        %v1908 = vld [vmem:[%s13 + $0x78] sm:$0xff]
        %v1909 = vld [vmem:[%s14] sm:$0x1]
        %v1911 = vlaneseq
        %v1912 = vshrl.u32 %v1911, 7
        %v1913 = vsub.s32 0, %v1912
        %v1914 = vrot.slane %v1909, %v1913
        %1916 = vmatprep.subr.mxu0 0.0
        %1917 = vmatpush1.msra.mxu0 %v1908
        %1918 = vmatprep.subr.mxu0 0.0
        %1919 = vmatpush1.msra.mxu0 %v1907
        %1920 = vmatprep.subr.mxu0 0.0
        %1921 = vmatpush1.msra.mxu0 %v1906
        %1922 = vmatprep.subr.mxu0 0.0
        %1923 = vmatpush1.msra.mxu0 %v1905
        %1924 = vmatprep.subr.mxu0 0.0
        %1925 = vmatpush1.msra.mxu0 %v1904
        %1926 = vmatprep.subr.mxu0 0.0
        %1927 = vmatpush1.msra.mxu0 %v1903
        %1928 = vmatprep.subr.mxu0 0.0
        %1929 = vmatpush1.msra.mxu0 %v1902
        %1930 = vmatprep.subr.mxu0 0.0
        %1931 = vmatpush1.msra.mxu0 %v1901
        %1932 = vmatprep.subr.mxu0 0.0
        %1933 = vmatpush1.msra.mxu0 %v1900
        %1934 = vmatprep.subr.mxu0 0.0
        %1935 = vmatpush1.msra.mxu0 %v1899
        %1936 = vmatprep.subr.mxu0 0.0
        %1937 = vmatpush1.msra.mxu0 %v1898
        %1938 = vmatprep.subr.mxu0 0.0
        %1939 = vmatpush1.msra.mxu0 %v1897
        %1940 = vmatprep.subr.mxu0 0.0
        %1941 = vmatpush1.msra.mxu0 %v1896
        %1942 = vmatprep.subr.mxu0 0.0
        %1943 = vmatpush1.msra.mxu0 %v1895
        %1944 = vmatprep.subr.mxu0 0.0
        %1945 = vmatpush1.msra.mxu0 %v1894
        %1946 = vmatprep.subr.mxu0 0.0
        %1947 = vmatpush1.msra.mxu0 %v1893
        %1948 = vmatprep.subr.mxu0 0.0
        %1949 = vmatpush2.msra.mxu0 0.0
        %1950 = vmatprep.subr.mxu0 0.0
        %1951 = vmatpush2.msra.mxu0 0.0
        %1952 = vmatprep.subr.mxu0 0.0
        %1953 = vmatpush2.msra.mxu0 0.0
        %1954 = vmatprep.subr.mxu0 0.0
        %1955 = vmatpush2.msra.mxu0 0.0
        %1956 = vmatprep.subr.mxu0 0.0
        %1957 = vmatpush2.msra.mxu0 0.0
        %1958 = vmatprep.subr.mxu0 0.0
        %1959 = vmatpush2.msra.mxu0 0.0
        %1960 = vmatprep.subr.mxu0 0.0
        %1961 = vmatpush2.msra.mxu0 0.0
        %1962 = vmatprep.subr.mxu0 0.0
        %1963 = vmatpush2.msra.mxu0 0.0
        %1964 = vmatprep.subr.mxu0 0.0
        %1965 = vmatpush2.msra.mxu0 0.0
        %1966 = vmatprep.subr.mxu0 0.0
        %1967 = vmatpush2.msra.mxu0 0.0
        %1968 = vmatprep.subr.mxu0 0.0
        %1969 = vmatpush2.msra.mxu0 0.0
        %1970 = vmatprep.subr.mxu0 0.0
        %1971 = vmatpush2.msra.mxu0 0.0
        %1972 = vmatprep.subr.mxu0 0.0
        %1973 = vmatpush2.msra.mxu0 0.0
        %1974 = vmatprep.subr.mxu0 0.0
        %1975 = vmatpush2.msra.mxu0 0.0
        %1976 = vmatprep.subr.mxu0 0.0
        %1977 = vmatpush2.msra.mxu0 0.0
        %1978 = vmatprep.subr.mxu0 0.0
        %1979 = vmatpush2.msra.mxu0 0.0
        %1980 = vmatprep.mubr.f32.mxu0 0.0
        %1981 = vmatmul.mubr.f32.gmra.mxu0 %v1892
        %v1982 = vpop.f32.mrf.mxu0
        %v1983 = vadd.f32 %v1914, %v1982
        %v1984 = vpop.f32.mrf.mxu0
        %1985 = vdwg.mxu0
        %v1986 = vadd.f32 %v1807, %v1983
        %v1987 = vld [vmem:[%s15] sm:$0x1]
        %v1988 = vld [vmem:[%s16] sm:$0x1]
        %v1989 = vsel %vm576, %v1986, 0.0
        %1990 = vadd.xlane.f32.xlu0 %v1989
        %v1991 = vpop.xlane.xlu0 %1990
        %v1992 = vmul.f32 %v1991, %v1783
        %v1993 = vsub.f32 %v1986, %v1992
        %v1994 = vmul.f32 %v1993, %v1993
        %v1995 = vsel %vm576, %v1994, 0.0
        %1996 = vadd.xlane.f32.xlu0 %v1995
        %v1997 = vpop.xlane.xlu0 %1996
        %v1998 = vmul.f32 %v1997, %v1783
        %v1999 = vadd.f32 %v1998, 1e-05
        %v2000 = vrsqrt.pop %v1999
        %v2001 = vmul.f32 %v1993, %v2000
        %v2003 = vlaneseq
        %v2004 = vshrl.u32 %v2003, 7
        %v2005 = vsub.s32 0, %v2004
        %v2006 = vrot.slane %v1987, %v2005
        %v2008 = vmul.f32 %v2001, %v2006
        %v2010 = vlaneseq
        %v2011 = vshrl.u32 %v2010, 7
        %v2012 = vsub.s32 0, %v2011
        %v2013 = vrot.slane %v1988, %v2012
        %v2015 = vadd.f32 %v2008, %v2013
        %2016 = vst.msk [vmem:[%s563] sm:$0xff] %vm576, %v2015
        %s2017 = sand.u32 %s404, 1
        %s2018 = scalar_lea.sflag [#allocation4], %s2017
        %s2019 = sand.u32 %s404, 1
        %s2020 = smul.addr %s2019, 8
        %s2021 = scalar_lea.vmem [#allocation5], %s2020
        // Predicated region
        $region93: #{tpu_custom_call.1} parent=87 // pred_check
          %p2022 = pneg %p414
        $region94: #{tpu_custom_call.1} parent=87 // pred_check_branch
          %2024 = sbr.rel (%p2022) target = $region96
        $region95: #{tpu_custom_call.1} parent=87 // pred_region
          %s2026 = ssub.s32 128, 128
          %2027 = vsyncadd %s2018, %s2026
          %s2028 = smul.addr %s34, 128
          %s2029 = scalar_lea.hbm %s17, %s2028
          %s2031 = sshll.u32 %s2021, 4
          %s2032 = int_to_ptr.vmem [resolvable:$true] %s2031
          %2034 = dma.vmem_to_hbm [thread:$0]  %s2032, 128, %s2029, %s2018
        $region96: #{tpu_custom_call.1} parent=87 // pred_fallthru
          _
      $region88: #{tpu_custom_call.1} parent=5 // pred_fallthru
        _
      %p2035 = scmp.le.s32.totalorder 2, %s29
      // Predicated region
      $region97: #{tpu_custom_call.1} parent=5 // pred_check
        %p2036 = pneg %p2035
      $region98: #{tpu_custom_call.1} parent=5 // pred_check_branch
        %2038 = sbr.rel (%p2036) target = $region100
      $region99: #{tpu_custom_call.1} parent=5 // pred_region
        %s2039 = ssub.s32 %s29, 2
        // Predicated region
        $region101: #{tpu_custom_call.1} parent=99 // pred_check
          %p2040 = pneg %p420
        $region102: #{tpu_custom_call.1} parent=99 // pred_check_branch
          %2042 = sbr.rel (%p2040) target = $region104
        $region103: #{tpu_custom_call.1} parent=99 // pred_region
          %s2043 = sand.u32 %s405, 1
          %s2044 = scalar_lea.sflag [#allocation4], %s2043
          %s2045 = sand.u32 %s405, 1
          %s2046 = smul.addr %s2045, 8
          %s2047 = scalar_lea.vmem [#allocation5], %s2046
          %2048 = dma.done %s2044, 128
        $region104: #{tpu_custom_call.1} parent=99 // pred_fallthru
          _
      $region100: #{tpu_custom_call.1} parent=5 // pred_fallthru
        _
    $region6: #{tpu_custom_call.1} parent=1 // loop_footer
      %s33 = sadd.s32 1, %s29
    $region7: #{tpu_custom_call.1} parent=1 // loop_footer_branch
      %28 = sbr.rel target = $region3
    $region8: #{tpu_custom_call.1} parent=1 // loop_exit
      _
    %2049 = vsyncpa [#allocation3], 1
    %s2050 = scalar_lea.sflag [#allocation3], 1
    %2051 = vsyncpa %s2050, 1
    %2052 = vsyncpa [#allocation4], 1
    %s2053 = scalar_lea.sflag [#allocation4], 1
    %2054 = vsyncpa %s2053, 1

</llo_original>
